<compile_context>
chip_gen: v6e
topology: v6e:2x2x1
jax: 0.10.0
libtpu: 0.0.40
codegen_flags: <defaults>
</compile_context>

<pallas_src>
import functools

import jax
import jax.numpy as jnp
from jax.experimental import pallas as pl
from jax.experimental.pallas import tpu as pltpu

BN_EPS = 1e-5
LANE = 128


# ----------------------------------------------------------------------------
# Fused Pallas kernel: sa1 -> sa2 -> max-pool -> kenc -> fusion MLP
# ----------------------------------------------------------------------------
def _fused_pointnet_kernel(*refs, tg, ns, n_kenc):
    """One tile = `tg` keypoint groups x `ns` neighbors.

    refs = (gfeat (tg*ns, 8), kin (tg, 8),
            sa1:  w0,t0, w1,t1, w2,t2                       (widths lane-padded)
            sa2:  w_xyz(8,256), w_feat(128,256), t0, w1,t1, w2,t2
            kenc: n_kenc x (w,t)                            (widths lane-padded)
            mlp:  w_kenc(fd,2fd), w_desc(128,2fd), t0, w1,t1,
            out (tg, fd))
    Weights are bf16 (BN scale folded in); shifts are f32 (bias+BN folded).
    """
    gfeat_ref, kin_ref = refs[0], refs[1]
    o_ref = refs[-1]
    w = refs[2:-1]
    (w10, t10, w11, t11, w12, t12) = w[0:6]
    (w2x, w2f, t20, w21, t21, w22, t22) = w[6:13]
    kenc_wt = w[13:13 + 2 * n_kenc]
    (wfk, wfd, tf0, wf1, tf1) = w[13 + 2 * n_kenc:]

    bf16 = jnp.bfloat16

    def layer(x_bf16, w_ref, t_ref, relu=True):
        y = jnp.dot(x_bf16, w_ref[...], preferred_element_type=jnp.float32)
        y = y + t_ref[...]
        if relu:
            y = jnp.maximum(y, 0.0)
        return y  # f32

    # --- sa1 shared MLP [8 -> 64 -> 64 -> 128] (BN+ReLU every layer) ---------
    x8 = gfeat_ref[...].astype(bf16)                        # (tg*ns, 8)
    h = layer(x8, w10, t10).astype(bf16)
    h = layer(h, w11, t11).astype(bf16)
    l1 = layer(h, w12, t12).astype(bf16)                    # (tg*ns, 128)

    # --- sa2 MLP [131 -> 256 -> 256 -> 128]; layer 0 via split dot -----------
    # (rel_xyz sits in channels 0..2 of x8; w2x rows 3..7 are zero)
    y = jnp.dot(x8, w2x[...], preferred_element_type=jnp.float32)
    y = y + jnp.dot(l1, w2f[...], preferred_element_type=jnp.float32)
    h = jnp.maximum(y + t20[...], 0.0).astype(bf16)
    h = layer(h, w21, t21).astype(bf16)
    l2 = layer(h, w22, t22)                                 # (tg*ns, 128) f32

    # --- PointNet max-pool over the neighbor axis (group_all) ----------------
    desc = jnp.max(l2.reshape(tg, ns, l2.shape[-1]), axis=1)   # (tg, 128) f32

    # --- KeypointEncoder MLP([3] + layers + [fd]); input zero-padded 3 -> 8 --
    k = kin_ref[...].astype(bf16)                           # (tg, 8)
    for i in range(n_kenc):
        last = i == n_kenc - 1
        k = layer(k, kenc_wt[2 * i], kenc_wt[2 * i + 1], relu=not last)
        if not last:
            k = k.astype(bf16)
    kenc = k                                                # (tg, fd) f32

    # --- fusion MLP([2fd, 2fd, fd]) on cat([kenc, desc]) via split dot -------
    y = jnp.dot(kenc.astype(bf16), wfk[...], preferred_element_type=jnp.float32)
    y = y + jnp.dot(desc.astype(bf16), wfd[...], preferred_element_type=jnp.float32)
    h = jnp.maximum(y + tf0[...], 0.0).astype(bf16)
    out = layer(h, wf1, tf1, relu=False)                    # (tg, fd)

    o_ref[...] = out.astype(o_ref.dtype)


# ----------------------------------------------------------------------------
# Parameter construction (deterministic, synthetic) + inference-time folding
# ----------------------------------------------------------------------------
def init_mlp(key, channels):
    params = []
    for i in range(1, len(channels)):
        key, k1, k2, k3, k4, k5 = jax.random.split(key, 6)
        cin, cout = channels[i - 1], channels[i]
        params.append(
            dict(
                w=jax.random.normal(k1, (cin, cout), jnp.float32)
                * (1.0 / jnp.sqrt(float(cin))),
                b=0.01 * jax.random.normal(k2, (cout,), jnp.float32),
                gamma=1.0 + 0.1 * jax.random.normal(k3, (cout,), jnp.float32),
                beta=0.1 * jax.random.normal(k4, (cout,), jnp.float32),
                mean=0.05 * jax.random.normal(k5, (cout,), jnp.float32),
                var=jnp.ones((cout,), jnp.float32),
            )
        )
    return params


def init_params(key, feature_dim, layers):
    k0, k1, k2, k3 = jax.random.split(key, 4)
    in_channel = 5  # normal_channel=True
    p = dict(
        sa1=init_mlp(k0, [in_channel + 3, 64, 64, 128]),        # MSG shared MLP
        sa2=init_mlp(k1, [128 + 3, 256, 256, 128]),             # group-all MLP
        kenc=init_mlp(k2, [3] + list(layers) + [feature_dim]),  # KeypointEncoder
        mlp=init_mlp(k3, [feature_dim * 2, feature_dim * 2, feature_dim]),
    )
    # nn.init.constant_(self.encoder[-1].bias, 0.0)
    p["kenc"][-1]["b"] = jnp.zeros_like(p["kenc"][-1]["b"])
    return p


def _fold(p, bn_relu):
    """Fold conv bias + inference-mode BN into (W', shift')."""
    if bn_relu:
        scale = p["gamma"] * jax.lax.rsqrt(p["var"] + BN_EPS)
        w = p["w"] * scale[None, :]
        t = p["beta"] + (p["b"] - p["mean"]) * scale
    else:
        w = p["w"]
        t = p["b"]
    return w, t


def _fold_pad(p, bn_relu, cin_to=None, cout_to=None):
    """Fold, then zero-pad input rows / output columns to lane-friendly widths.

    Padding is exact: padded shift lanes are 0, ReLU keeps them 0, and the next
    layer's padded weight rows are 0, so padded lanes never contribute.
    """
    w, t = _fold(p, bn_relu)
    if cin_to is not None and cin_to > w.shape[0]:
        w = jnp.pad(w, ((0, cin_to - w.shape[0]), (0, 0)))
    if cout_to is not None and cout_to > w.shape[1]:
        w = jnp.pad(w, ((0, 0), (0, cout_to - w.shape[1])))
        t = jnp.pad(t, ((0, cout_to - t.shape[0]),))
    return w, t


def _wt(w, t):
    return [w.astype(jnp.bfloat16), t.reshape(1, -1).astype(jnp.float32)]


def pack_params(params):
    """Flatten folded + lane-padded params in the fixed order the kernel expects."""
    flat = []

    # sa1: 3 layers, BN+ReLU on all; hidden widths (64) lane-padded to 128.
    s0, s1, s2 = params["sa1"]
    flat += _wt(*_fold_pad(s0, True, cout_to=LANE))
    flat += _wt(*_fold_pad(s1, True, cin_to=LANE, cout_to=LANE))
    flat += _wt(*_fold_pad(s2, True, cin_to=LANE))

    # sa2 layer 0: input is cat([rel_xyz(3), l1(128)]) -> split + zero-pad xyz to 8.
    p0, p1, p2 = params["sa2"]
    w, t = _fold(p0, True)
    w_xyz = jnp.zeros((8, w.shape[1]), w.dtype).at[:3].set(w[:3])
    w_feat = w[3:]
    flat += [w_xyz.astype(jnp.bfloat16), w_feat.astype(jnp.bfloat16),
             t.reshape(1, -1).astype(jnp.float32)]
    flat += _wt(*_fold(p1, True))
    flat += _wt(*_fold(p2, True))

    # kenc: BN+ReLU on all but the last; layer-0 input padded 3 -> 8,
    # hidden widths lane-padded to 128, final width = feature_dim (untouched).
    kl = params["kenc"]
    for i, p in enumerate(kl):
        last = i == len(kl) - 1
        flat += _wt(*_fold_pad(p, not last,
                               cin_to=8 if i == 0 else LANE,
                               cout_to=None if last else LANE))

    # fusion MLP: layer 0 (BN+ReLU) split over [kenc(fd) | desc(fd)], layer 1 plain.
    m0, m1 = params["mlp"]
    w, t = _fold(m0, True)
    fd = w.shape[0] // 2
    flat += [w[:fd].astype(jnp.bfloat16), w[fd:].astype(jnp.bfloat16),
             t.reshape(1, -1).astype(jnp.float32)]
    flat += _wt(*_fold(m1, False))
    return flat


# ----------------------------------------------------------------------------
# Grouping glue (plain JAX: data-dependent ball query / gather)
# ----------------------------------------------------------------------------
def ball_query_2d(kpts_xy, xy, radius, nsample):
    """kpts_xy: (B, N, 2), xy: (B, P, 2) -> neighbor indices (B, N, S).

    top_k-based selection of the first `nsample` in-radius point indices
    (same semantics as sort-then-slice, O(P*nsample) instead of O(P log P)).
    Groups with fewer than nsample in-radius points repeat the first one;
    groups with none fall back to the nearest point.
    """
    B, N, _ = kpts_xy.shape
    P = xy.shape[1]
    d2 = jnp.sum((kpts_xy[:, :, None, :] - xy[:, None, :, :]) ** 2, axis=-1)
    ar = jnp.broadcast_to(jnp.arange(P, dtype=jnp.int32), (B, N, P))
    cand = jnp.where(d2 <= radius * radius, ar, P)
    neg_vals, _ = jax.lax.top_k(-cand, nsample)     # nsample smallest indices
    grp = -neg_vals                                 # ascending order
    first = grp[:, :, :1]
    nearest = jnp.argmin(d2, axis=-1).astype(grp.dtype)[..., None]
    first = jnp.where(first == P, nearest, first)
    grp = jnp.where(grp == P, first, grp)
    return grp


def gather_points(x, idx):
    """x: (B, P, C), idx: (B, N, S) -> (B, N, S, C)."""
    B = x.shape[0]
    return x[jnp.arange(B)[:, None, None], idx]


def _pick_group_tile(G, S, target_rows=1024):
    """Groups per tile: ~`target_rows` MLP rows per grid step, multiple of 8."""
    tg = max(1, target_rows // max(S, 1))
    tg = max(8, (tg // 8) * 8)
    gp8 = ((G + 7) // 8) * 8
    return min(tg, gp8)


# ----------------------------------------------------------------------------
# PointnetEncoder forward
# ----------------------------------------------------------------------------
def pointnet_encoder_forward(params, xyz, kpts, score, *, nsample=16, radius=2.0):
    """
    xyz:   (B, P, 8)  point cloud: 3 coords + 5 extra channels (normal_channel=True)
    kpts:  (B, N, 2)  keypoint locations (2-D, consistent with MLP([3]+...))
    score: (B, N)
    returns desc: (B, feature_dim, N)   (matches PyTorch NCW output)
    """
    B, P, _ = xyz.shape
    N = kpts.shape[1]
    S = nsample

    coords = xyz[..., :3]   # (B, P, 3)
    extra = xyz[..., 3:]    # (B, P, 5)

    # Keypoint-centered ball query + grouping.
    # TODO(synk): the neighbor gather stays in XLA (data-dependent); an in-kernel
    # DMA gather via scalar-prefetched indices would avoid materializing g_feat.
    idx = ball_query_2d(kpts, coords[..., :2], radius, S)           # (B, N, S)
    g_xyz = gather_points(coords, idx)                              # (B, N, S, 3)
    center3 = jnp.concatenate([kpts, jnp.zeros((B, N, 1), kpts.dtype)], -1)
    g_xyz = g_xyz - center3[:, :, None, :]                          # relative coords
    g_extra = gather_points(extra, idx)                             # (B, N, S, 5)
    g_feat = jnp.concatenate([g_xyz, g_extra], axis=-1)             # (B, N, S, 8)

    # Keypoint-encoder input [x, y, score], zero-padded to 8 channels.
    kin = jnp.concatenate(
        [kpts, score[..., None], jnp.zeros((B, N, 5), kpts.dtype)], axis=-1)

    flat = pack_params(params)
    fd = params["mlp"][-1]["w"].shape[1]
    n_kenc = len(params["kenc"])

    G = B * N
    TG = _pick_group_tile(G, S)
    Gp = ((G + TG - 1) // TG) * TG

    rows = g_feat.reshape(G * S, g_feat.shape[-1]).astype(jnp.float32)
    krows = kin.reshape(G, kin.shape[-1]).astype(jnp.float32)
    if Gp != G:
        rows = jnp.pad(rows, ((0, (Gp - G) * S), (0, 0)))
        krows = jnp.pad(krows, ((0, Gp - G), (0, 0)))

    in_specs = [
        pl.BlockSpec((TG * S, rows.shape[1]), lambda i: (i, 0)),
        pl.BlockSpec((TG, krows.shape[1]), lambda i: (i, 0)),
    ] + [pl.BlockSpec(w.shape, lambda i: (0, 0)) for w in flat]

    out = pl.pallas_call(
        functools.partial(_fused_pointnet_kernel, tg=TG, ns=S, n_kenc=n_kenc),
        out_shape=jax.ShapeDtypeStruct((Gp, fd), jnp.float32),
        grid=(Gp // TG,),
        in_specs=in_specs,
        out_specs=pl.BlockSpec((TG, fd), lambda i: (i, 0)),
        compiler_params=pltpu.CompilerParams(
            dimension_semantics=("parallel",)),
    )(rows, krows, *flat)

    out = out[:G]
    return jnp.transpose(out.reshape(B, N, fd), (0, 2, 1))          # (B, fd, N)


# ----------------------------------------------------------------------------
if __name__ == "__main__":
    B, P, N, S = 2, 64, 8, 16          # small stand-ins (module default nsample=32)
    feature_dim = 128                  # forced by cat([kenc(fd), desc(128)]) -> 2*fd
    layers = [32, 64]

    key = jax.random.PRNGKey(0)
    k_xyz, k_kpt, k_sc, k_par = jax.random.split(key, 4)
    xyz = jax.random.uniform(k_xyz, (B, P, 8), minval=-1.0, maxval=1.0,
                             dtype=jnp.float32)
    kpts = jax.random.uniform(k_kpt, (B, N, 2), minval=-1.0, maxval=1.0,
                              dtype=jnp.float32)
    score = jax.random.uniform(k_sc, (B, N), dtype=jnp.float32)

    params = init_params(k_par, feature_dim, layers)

    fwd = jax.jit(functools.partial(pointnet_encoder_forward,
                                    nsample=S, radius=2.0))
    desc = fwd(params, xyz, kpts, score)
    desc = jax.block_until_ready(desc)
    assert desc.shape == (B, feature_dim, N), desc.shape
    assert jnp.all(jnp.isfinite(desc))
    print("KERNEL_OK")
</pallas_src>

<mosaic_0001>
module attributes {stable_mosaic.version = 11 : i64} {
  func.func @_fused_pointnet_kernel(%arg0: i32, %arg1: memref<256x8xf32, #tpu.memory_space<vmem>>, %arg2: memref<16x8xf32, #tpu.memory_space<vmem>>, %arg3: memref<8x128xbf16, #tpu.memory_space<vmem>>, %arg4: memref<1x128xf32, #tpu.memory_space<vmem>>, %arg5: memref<128x128xbf16, #tpu.memory_space<vmem>>, %arg6: memref<1x128xf32, #tpu.memory_space<vmem>>, %arg7: memref<128x128xbf16, #tpu.memory_space<vmem>>, %arg8: memref<1x128xf32, #tpu.memory_space<vmem>>, %arg9: memref<8x256xbf16, #tpu.memory_space<vmem>>, %arg10: memref<128x256xbf16, #tpu.memory_space<vmem>>, %arg11: memref<1x256xf32, #tpu.memory_space<vmem>>, %arg12: memref<256x256xbf16, #tpu.memory_space<vmem>>, %arg13: memref<1x256xf32, #tpu.memory_space<vmem>>, %arg14: memref<256x128xbf16, #tpu.memory_space<vmem>>, %arg15: memref<1x128xf32, #tpu.memory_space<vmem>>, %arg16: memref<8x128xbf16, #tpu.memory_space<vmem>>, %arg17: memref<1x128xf32, #tpu.memory_space<vmem>>, %arg18: memref<128x128xbf16, #tpu.memory_space<vmem>>, %arg19: memref<1x128xf32, #tpu.memory_space<vmem>>, %arg20: memref<128x128xbf16, #tpu.memory_space<vmem>>, %arg21: memref<1x128xf32, #tpu.memory_space<vmem>>, %arg22: memref<128x256xbf16, #tpu.memory_space<vmem>>, %arg23: memref<128x256xbf16, #tpu.memory_space<vmem>>, %arg24: memref<1x256xf32, #tpu.memory_space<vmem>>, %arg25: memref<256x128xbf16, #tpu.memory_space<vmem>>, %arg26: memref<1x128xf32, #tpu.memory_space<vmem>>, %arg27: memref<16x128xf32, #tpu.memory_space<vmem>>) attributes {dimension_semantics = [#tpu.dimension_semantics<parallel>], iteration_bounds = array<i64: 1>, scalar_prefetch = 0 : i64, scratch_operands = 0 : i64, tpu.core_type = #tpu.core_type<tc>, window_params = [{transform_indices = @transform_0, window_bounds = array<i64: 256, 8>}, {transform_indices = @transform_1, window_bounds = array<i64: 16, 8>}, {pipeline_mode = #tpu.pipeline_mode<synchronous>, transform_indices = @transform_2, window_bounds = array<i64: 8, 128>}, {pipeline_mode = #tpu.pipeline_mode<synchronous>, transform_indices = @transform_3, window_bounds = array<i64: 1, 128>}, {pipeline_mode = #tpu.pipeline_mode<synchronous>, transform_indices = @transform_4, window_bounds = array<i64: 128, 128>}, {pipeline_mode = #tpu.pipeline_mode<synchronous>, transform_indices = @transform_5, window_bounds = array<i64: 1, 128>}, {pipeline_mode = #tpu.pipeline_mode<synchronous>, transform_indices = @transform_6, window_bounds = array<i64: 128, 128>}, {pipeline_mode = #tpu.pipeline_mode<synchronous>, transform_indices = @transform_7, window_bounds = array<i64: 1, 128>}, {pipeline_mode = #tpu.pipeline_mode<synchronous>, transform_indices = @transform_8, window_bounds = array<i64: 8, 256>}, {pipeline_mode = #tpu.pipeline_mode<synchronous>, transform_indices = @transform_9, window_bounds = array<i64: 128, 256>}, {pipeline_mode = #tpu.pipeline_mode<synchronous>, transform_indices = @transform_10, window_bounds = array<i64: 1, 256>}, {pipeline_mode = #tpu.pipeline_mode<synchronous>, transform_indices = @transform_11, window_bounds = array<i64: 256, 256>}, {pipeline_mode = #tpu.pipeline_mode<synchronous>, transform_indices = @transform_12, window_bounds = array<i64: 1, 256>}, {pipeline_mode = #tpu.pipeline_mode<synchronous>, transform_indices = @transform_13, window_bounds = array<i64: 256, 128>}, {pipeline_mode = #tpu.pipeline_mode<synchronous>, transform_indices = @transform_14, window_bounds = array<i64: 1, 128>}, {pipeline_mode = #tpu.pipeline_mode<synchronous>, transform_indices = @transform_15, window_bounds = array<i64: 8, 128>}, {pipeline_mode = #tpu.pipeline_mode<synchronous>, transform_indices = @transform_16, window_bounds = array<i64: 1, 128>}, {pipeline_mode = #tpu.pipeline_mode<synchronous>, transform_indices = @transform_17, window_bounds = array<i64: 128, 128>}, {pipeline_mode = #tpu.pipeline_mode<synchronous>, transform_indices = @transform_18, window_bounds = array<i64: 1, 128>}, {pipeline_mode = #tpu.pipeline_mode<synchronous>, transform_indices = @transform_19, window_bounds = array<i64: 128, 128>}, {pipeline_mode = #tpu.pipeline_mode<synchronous>, transform_indices = @transform_20, window_bounds = array<i64: 1, 128>}, {pipeline_mode = #tpu.pipeline_mode<synchronous>, transform_indices = @transform_21, window_bounds = array<i64: 128, 256>}, {pipeline_mode = #tpu.pipeline_mode<synchronous>, transform_indices = @transform_22, window_bounds = array<i64: 128, 256>}, {pipeline_mode = #tpu.pipeline_mode<synchronous>, transform_indices = @transform_23, window_bounds = array<i64: 1, 256>}, {pipeline_mode = #tpu.pipeline_mode<synchronous>, transform_indices = @transform_24, window_bounds = array<i64: 256, 128>}, {pipeline_mode = #tpu.pipeline_mode<synchronous>, transform_indices = @transform_25, window_bounds = array<i64: 1, 128>}, {transform_indices = @transform_26, window_bounds = array<i64: 16, 128>}]} {
    %c0 = arith.constant 0 : index
    %c0_0 = arith.constant 0 : index
    %0 = vector.load %arg1[%c0, %c0_0] : memref<256x8xf32, #tpu.memory_space<vmem>>, vector<256x8xf32>
    %1 = arith.truncf %0 : vector<256x8xf32> to vector<256x8xbf16>
    %c0_1 = arith.constant 0 : index
    %c0_2 = arith.constant 0 : index
    %2 = vector.load %arg3[%c0_1, %c0_2] : memref<8x128xbf16, #tpu.memory_space<vmem>>, vector<8x128xbf16>
    %cst = arith.constant dense<0.000000e+00> : vector<256x128xf32>
    %3 = tpu.matmul %1, %2, %cst {dimension_numbers = #tpu.dot_dimension_numbers<[1], [0], [0], [1], [0, 0, 1, 1], [], []>} : vector<256x8xbf16>, vector<8x128xbf16>, vector<256x128xf32> -> vector<256x128xf32>
    %c0_3 = arith.constant 0 : index
    %c0_4 = arith.constant 0 : index
    %4 = vector.load %arg4[%c0_3, %c0_4] : memref<1x128xf32, #tpu.memory_space<vmem>>, vector<1x128xf32>
    %5 = vector.broadcast %4 : vector<1x128xf32> to vector<256x128xf32>
    %6 = arith.addf %3, %5 : vector<256x128xf32>
    %cst_5 = arith.constant 0.000000e+00 : f32
    %7 = vector.broadcast %cst_5 : f32 to vector<256x128xf32>
    %8 = arith.maximumf %6, %7 : vector<256x128xf32>
    %9 = arith.truncf %8 : vector<256x128xf32> to vector<256x128xbf16>
    %c0_6 = arith.constant 0 : index
    %c0_7 = arith.constant 0 : index
    %10 = vector.load %arg5[%c0_6, %c0_7] : memref<128x128xbf16, #tpu.memory_space<vmem>>, vector<128x128xbf16>
    %cst_8 = arith.constant dense<0.000000e+00> : vector<256x128xf32>
    %11 = tpu.matmul %9, %10, %cst_8 {dimension_numbers = #tpu.dot_dimension_numbers<[1], [0], [0], [1], [0, 0, 1, 1], [], []>} : vector<256x128xbf16>, vector<128x128xbf16>, vector<256x128xf32> -> vector<256x128xf32>
    %c0_9 = arith.constant 0 : index
    %c0_10 = arith.constant 0 : index
    %12 = vector.load %arg6[%c0_9, %c0_10] : memref<1x128xf32, #tpu.memory_space<vmem>>, vector<1x128xf32>
    %13 = vector.broadcast %12 : vector<1x128xf32> to vector<256x128xf32>
    %14 = arith.addf %11, %13 : vector<256x128xf32>
    %cst_11 = arith.constant 0.000000e+00 : f32
    %15 = vector.broadcast %cst_11 : f32 to vector<256x128xf32>
    %16 = arith.maximumf %14, %15 : vector<256x128xf32>
    %17 = arith.truncf %16 : vector<256x128xf32> to vector<256x128xbf16>
    %c0_12 = arith.constant 0 : index
    %c0_13 = arith.constant 0 : index
    %18 = vector.load %arg7[%c0_12, %c0_13] : memref<128x128xbf16, #tpu.memory_space<vmem>>, vector<128x128xbf16>
    %cst_14 = arith.constant dense<0.000000e+00> : vector<256x128xf32>
    %19 = tpu.matmul %17, %18, %cst_14 {dimension_numbers = #tpu.dot_dimension_numbers<[1], [0], [0], [1], [0, 0, 1, 1], [], []>} : vector<256x128xbf16>, vector<128x128xbf16>, vector<256x128xf32> -> vector<256x128xf32>
    %c0_15 = arith.constant 0 : index
    %c0_16 = arith.constant 0 : index
    %20 = vector.load %arg8[%c0_15, %c0_16] : memref<1x128xf32, #tpu.memory_space<vmem>>, vector<1x128xf32>
    %21 = vector.broadcast %20 : vector<1x128xf32> to vector<256x128xf32>
    %22 = arith.addf %19, %21 : vector<256x128xf32>
    %cst_17 = arith.constant 0.000000e+00 : f32
    %23 = vector.broadcast %cst_17 : f32 to vector<256x128xf32>
    %24 = arith.maximumf %22, %23 : vector<256x128xf32>
    %25 = arith.truncf %24 : vector<256x128xf32> to vector<256x128xbf16>
    %c0_18 = arith.constant 0 : index
    %c0_19 = arith.constant 0 : index
    %26 = vector.load %arg9[%c0_18, %c0_19] : memref<8x256xbf16, #tpu.memory_space<vmem>>, vector<8x256xbf16>
    %cst_20 = arith.constant dense<0.000000e+00> : vector<256x256xf32>
    %27 = tpu.matmul %1, %26, %cst_20 {dimension_numbers = #tpu.dot_dimension_numbers<[1], [0], [0], [1], [0, 0, 1, 1], [], []>} : vector<256x8xbf16>, vector<8x256xbf16>, vector<256x256xf32> -> vector<256x256xf32>
    %c0_21 = arith.constant 0 : index
    %c0_22 = arith.constant 0 : index
    %28 = vector.load %arg10[%c0_21, %c0_22] : memref<128x256xbf16, #tpu.memory_space<vmem>>, vector<128x256xbf16>
    %cst_23 = arith.constant dense<0.000000e+00> : vector<256x256xf32>
    %29 = tpu.matmul %25, %28, %cst_23 {dimension_numbers = #tpu.dot_dimension_numbers<[1], [0], [0], [1], [0, 0, 1, 1], [], []>} : vector<256x128xbf16>, vector<128x256xbf16>, vector<256x256xf32> -> vector<256x256xf32>
    %30 = arith.addf %27, %29 : vector<256x256xf32>
    %c0_24 = arith.constant 0 : index
    %c0_25 = arith.constant 0 : index
    %31 = vector.load %arg11[%c0_24, %c0_25] : memref<1x256xf32, #tpu.memory_space<vmem>>, vector<1x256xf32>
    %32 = vector.broadcast %31 : vector<1x256xf32> to vector<256x256xf32>
    %33 = arith.addf %30, %32 : vector<256x256xf32>
    %cst_26 = arith.constant 0.000000e+00 : f32
    %34 = vector.broadcast %cst_26 : f32 to vector<256x256xf32>
    %35 = arith.maximumf %33, %34 : vector<256x256xf32>
    %36 = arith.truncf %35 : vector<256x256xf32> to vector<256x256xbf16>
    %c0_27 = arith.constant 0 : index
    %c0_28 = arith.constant 0 : index
    %37 = vector.load %arg12[%c0_27, %c0_28] : memref<256x256xbf16, #tpu.memory_space<vmem>>, vector<256x256xbf16>
    %cst_29 = arith.constant dense<0.000000e+00> : vector<256x256xf32>
    %38 = tpu.matmul %36, %37, %cst_29 {dimension_numbers = #tpu.dot_dimension_numbers<[1], [0], [0], [1], [0, 0, 1, 1], [], []>} : vector<256x256xbf16>, vector<256x256xbf16>, vector<256x256xf32> -> vector<256x256xf32>
    %c0_30 = arith.constant 0 : index
    %c0_31 = arith.constant 0 : index
    %39 = vector.load %arg13[%c0_30, %c0_31] : memref<1x256xf32, #tpu.memory_space<vmem>>, vector<1x256xf32>
    %40 = vector.broadcast %39 : vector<1x256xf32> to vector<256x256xf32>
    %41 = arith.addf %38, %40 : vector<256x256xf32>
    %cst_32 = arith.constant 0.000000e+00 : f32
    %42 = vector.broadcast %cst_32 : f32 to vector<256x256xf32>
    %43 = arith.maximumf %41, %42 : vector<256x256xf32>
    %44 = arith.truncf %43 : vector<256x256xf32> to vector<256x256xbf16>
    %c0_33 = arith.constant 0 : index
    %c0_34 = arith.constant 0 : index
    %45 = vector.load %arg14[%c0_33, %c0_34] : memref<256x128xbf16, #tpu.memory_space<vmem>>, vector<256x128xbf16>
    %cst_35 = arith.constant dense<0.000000e+00> : vector<256x128xf32>
    %46 = tpu.matmul %44, %45, %cst_35 {dimension_numbers = #tpu.dot_dimension_numbers<[1], [0], [0], [1], [0, 0, 1, 1], [], []>} : vector<256x256xbf16>, vector<256x128xbf16>, vector<256x128xf32> -> vector<256x128xf32>
    %c0_36 = arith.constant 0 : index
    %c0_37 = arith.constant 0 : index
    %47 = vector.load %arg15[%c0_36, %c0_37] : memref<1x128xf32, #tpu.memory_space<vmem>>, vector<1x128xf32>
    %48 = vector.broadcast %47 : vector<1x128xf32> to vector<256x128xf32>
    %49 = arith.addf %46, %48 : vector<256x128xf32>
    %cst_38 = arith.constant 0.000000e+00 : f32
    %50 = vector.broadcast %cst_38 : f32 to vector<256x128xf32>
    %51 = arith.maximumf %49, %50 : vector<256x128xf32>
    %52 = vector.shape_cast %51 : vector<256x128xf32> to vector<16x16x128xf32>
    %cst_39 = arith.constant dense<0xFF800000> : vector<16x128xf32>
    %53 = vector.multi_reduction <maximumf>, %52, %cst_39 [1] : vector<16x16x128xf32> to vector<16x128xf32>
    %c0_40 = arith.constant 0 : index
    %c0_41 = arith.constant 0 : index
    %54 = vector.load %arg2[%c0_40, %c0_41] : memref<16x8xf32, #tpu.memory_space<vmem>>, vector<16x8xf32>
    %55 = arith.truncf %54 : vector<16x8xf32> to vector<16x8xbf16>
    %c0_42 = arith.constant 0 : index
    %c0_43 = arith.constant 0 : index
    %56 = vector.load %arg16[%c0_42, %c0_43] : memref<8x128xbf16, #tpu.memory_space<vmem>>, vector<8x128xbf16>
    %cst_44 = arith.constant dense<0.000000e+00> : vector<16x128xf32>
    %57 = tpu.matmul %55, %56, %cst_44 {dimension_numbers = #tpu.dot_dimension_numbers<[1], [0], [0], [1], [0, 0, 1, 1], [], []>} : vector<16x8xbf16>, vector<8x128xbf16>, vector<16x128xf32> -> vector<16x128xf32>
    %c0_45 = arith.constant 0 : index
    %c0_46 = arith.constant 0 : index
    %58 = vector.load %arg17[%c0_45, %c0_46] : memref<1x128xf32, #tpu.memory_space<vmem>>, vector<1x128xf32>
    %59 = vector.broadcast %58 : vector<1x128xf32> to vector<16x128xf32>
    %60 = arith.addf %57, %59 : vector<16x128xf32>
    %cst_47 = arith.constant 0.000000e+00 : f32
    %61 = vector.broadcast %cst_47 : f32 to vector<16x128xf32>
    %62 = arith.maximumf %60, %61 : vector<16x128xf32>
    %63 = arith.truncf %62 : vector<16x128xf32> to vector<16x128xbf16>
    %c0_48 = arith.constant 0 : index
    %c0_49 = arith.constant 0 : index
    %64 = vector.load %arg18[%c0_48, %c0_49] : memref<128x128xbf16, #tpu.memory_space<vmem>>, vector<128x128xbf16>
    %cst_50 = arith.constant dense<0.000000e+00> : vector<16x128xf32>
    %65 = tpu.matmul %63, %64, %cst_50 {dimension_numbers = #tpu.dot_dimension_numbers<[1], [0], [0], [1], [0, 0, 1, 1], [], []>} : vector<16x128xbf16>, vector<128x128xbf16>, vector<16x128xf32> -> vector<16x128xf32>
    %c0_51 = arith.constant 0 : index
    %c0_52 = arith.constant 0 : index
    %66 = vector.load %arg19[%c0_51, %c0_52] : memref<1x128xf32, #tpu.memory_space<vmem>>, vector<1x128xf32>
    %67 = vector.broadcast %66 : vector<1x128xf32> to vector<16x128xf32>
    %68 = arith.addf %65, %67 : vector<16x128xf32>
    %cst_53 = arith.constant 0.000000e+00 : f32
    %69 = vector.broadcast %cst_53 : f32 to vector<16x128xf32>
    %70 = arith.maximumf %68, %69 : vector<16x128xf32>
    %71 = arith.truncf %70 : vector<16x128xf32> to vector<16x128xbf16>
    %c0_54 = arith.constant 0 : index
    %c0_55 = arith.constant 0 : index
    %72 = vector.load %arg20[%c0_54, %c0_55] : memref<128x128xbf16, #tpu.memory_space<vmem>>, vector<128x128xbf16>
    %cst_56 = arith.constant dense<0.000000e+00> : vector<16x128xf32>
    %73 = tpu.matmul %71, %72, %cst_56 {dimension_numbers = #tpu.dot_dimension_numbers<[1], [0], [0], [1], [0, 0, 1, 1], [], []>} : vector<16x128xbf16>, vector<128x128xbf16>, vector<16x128xf32> -> vector<16x128xf32>
    %c0_57 = arith.constant 0 : index
    %c0_58 = arith.constant 0 : index
    %74 = vector.load %arg21[%c0_57, %c0_58] : memref<1x128xf32, #tpu.memory_space<vmem>>, vector<1x128xf32>
    %75 = vector.broadcast %74 : vector<1x128xf32> to vector<16x128xf32>
    %76 = arith.addf %73, %75 : vector<16x128xf32>
    %77 = arith.truncf %76 : vector<16x128xf32> to vector<16x128xbf16>
    %c0_59 = arith.constant 0 : index
    %c0_60 = arith.constant 0 : index
    %78 = vector.load %arg22[%c0_59, %c0_60] : memref<128x256xbf16, #tpu.memory_space<vmem>>, vector<128x256xbf16>
    %cst_61 = arith.constant dense<0.000000e+00> : vector<16x256xf32>
    %79 = tpu.matmul %77, %78, %cst_61 {dimension_numbers = #tpu.dot_dimension_numbers<[1], [0], [0], [1], [0, 0, 1, 1], [], []>} : vector<16x128xbf16>, vector<128x256xbf16>, vector<16x256xf32> -> vector<16x256xf32>
    %80 = arith.truncf %53 : vector<16x128xf32> to vector<16x128xbf16>
    %c0_62 = arith.constant 0 : index
    %c0_63 = arith.constant 0 : index
    %81 = vector.load %arg23[%c0_62, %c0_63] : memref<128x256xbf16, #tpu.memory_space<vmem>>, vector<128x256xbf16>
    %cst_64 = arith.constant dense<0.000000e+00> : vector<16x256xf32>
    %82 = tpu.matmul %80, %81, %cst_64 {dimension_numbers = #tpu.dot_dimension_numbers<[1], [0], [0], [1], [0, 0, 1, 1], [], []>} : vector<16x128xbf16>, vector<128x256xbf16>, vector<16x256xf32> -> vector<16x256xf32>
    %83 = arith.addf %79, %82 : vector<16x256xf32>
    %c0_65 = arith.constant 0 : index
    %c0_66 = arith.constant 0 : index
    %84 = vector.load %arg24[%c0_65, %c0_66] : memref<1x256xf32, #tpu.memory_space<vmem>>, vector<1x256xf32>
    %85 = vector.broadcast %84 : vector<1x256xf32> to vector<16x256xf32>
    %86 = arith.addf %83, %85 : vector<16x256xf32>
    %cst_67 = arith.constant 0.000000e+00 : f32
    %87 = vector.broadcast %cst_67 : f32 to vector<16x256xf32>
    %88 = arith.maximumf %86, %87 : vector<16x256xf32>
    %89 = arith.truncf %88 : vector<16x256xf32> to vector<16x256xbf16>
    %c0_68 = arith.constant 0 : index
    %c0_69 = arith.constant 0 : index
    %90 = vector.load %arg25[%c0_68, %c0_69] : memref<256x128xbf16, #tpu.memory_space<vmem>>, vector<256x128xbf16>
    %cst_70 = arith.constant dense<0.000000e+00> : vector<16x128xf32>
    %91 = tpu.matmul %89, %90, %cst_70 {dimension_numbers = #tpu.dot_dimension_numbers<[1], [0], [0], [1], [0, 0, 1, 1], [], []>} : vector<16x256xbf16>, vector<256x128xbf16>, vector<16x128xf32> -> vector<16x128xf32>
    %c0_71 = arith.constant 0 : index
    %c0_72 = arith.constant 0 : index
    %92 = vector.load %arg26[%c0_71, %c0_72] : memref<1x128xf32, #tpu.memory_space<vmem>>, vector<1x128xf32>
    %93 = vector.broadcast %92 : vector<1x128xf32> to vector<16x128xf32>
    %94 = arith.addf %91, %93 : vector<16x128xf32>
    %c0_73 = arith.constant 0 : index
    %c0_74 = arith.constant 0 : index
    %95 = vector.load %arg27[%c0_73, %c0_74] : memref<16x128xf32, #tpu.memory_space<vmem>>, vector<16x128xf32>
    tpu.vector_store %arg27[%c0_73, %c0_74], %94 {strides = array<i32>} : memref<16x128xf32, #tpu.memory_space<vmem>>, vector<16x128xf32>,
    return
  }
  func.func @transform_0(%arg0: i32) -> (i32, i32) {
    %c0_i32 = arith.constant 0 : i32
    %c0_i32_0 = arith.constant 0 : i32
    return %arg0, %c0_i32 : i32, i32
  }
  func.func @transform_1(%arg0: i32) -> (i32, i32) {
    %c0_i32 = arith.constant 0 : i32
    %c0_i32_0 = arith.constant 0 : i32
    return %arg0, %c0_i32 : i32, i32
  }
  func.func @transform_2(%arg0: i32) -> (i32, i32) {
    %c0_i32 = arith.constant 0 : i32
    %c0_i32_0 = arith.constant 0 : i32
    %c0_i32_1 = arith.constant 0 : i32
    return %c0_i32, %c0_i32_0 : i32, i32
  }
  func.func @transform_3(%arg0: i32) -> (i32, i32) {
    %c0_i32 = arith.constant 0 : i32
    %c0_i32_0 = arith.constant 0 : i32
    %c0_i32_1 = arith.constant 0 : i32
    return %c0_i32, %c0_i32_0 : i32, i32
  }
  func.func @transform_4(%arg0: i32) -> (i32, i32) {
    %c0_i32 = arith.constant 0 : i32
    %c0_i32_0 = arith.constant 0 : i32
    %c0_i32_1 = arith.constant 0 : i32
    return %c0_i32, %c0_i32_0 : i32, i32
  }
  func.func @transform_5(%arg0: i32) -> (i32, i32) {
    %c0_i32 = arith.constant 0 : i32
    %c0_i32_0 = arith.constant 0 : i32
    %c0_i32_1 = arith.constant 0 : i32
    return %c0_i32, %c0_i32_0 : i32, i32
  }
  func.func @transform_6(%arg0: i32) -> (i32, i32) {
    %c0_i32 = arith.constant 0 : i32
    %c0_i32_0 = arith.constant 0 : i32
    %c0_i32_1 = arith.constant 0 : i32
    return %c0_i32, %c0_i32_0 : i32, i32
  }
  func.func @transform_7(%arg0: i32) -> (i32, i32) {
    %c0_i32 = arith.constant 0 : i32
    %c0_i32_0 = arith.constant 0 : i32
    %c0_i32_1 = arith.constant 0 : i32
    return %c0_i32, %c0_i32_0 : i32, i32
  }
  func.func @transform_8(%arg0: i32) -> (i32, i32) {
    %c0_i32 = arith.constant 0 : i32
    %c0_i32_0 = arith.constant 0 : i32
    %c0_i32_1 = arith.constant 0 : i32
    return %c0_i32, %c0_i32_0 : i32, i32
  }
  func.func @transform_9(%arg0: i32) -> (i32, i32) {
    %c0_i32 = arith.constant 0 : i32
    %c0_i32_0 = arith.constant 0 : i32
    %c0_i32_1 = arith.constant 0 : i32
    return %c0_i32, %c0_i32_0 : i32, i32
  }
  func.func @transform_10(%arg0: i32) -> (i32, i32) {
    %c0_i32 = arith.constant 0 : i32
    %c0_i32_0 = arith.constant 0 : i32
    %c0_i32_1 = arith.constant 0 : i32
    return %c0_i32, %c0_i32_0 : i32, i32
  }
  func.func @transform_11(%arg0: i32) -> (i32, i32) {
    %c0_i32 = arith.constant 0 : i32
    %c0_i32_0 = arith.constant 0 : i32
    %c0_i32_1 = arith.constant 0 : i32
    return %c0_i32, %c0_i32_0 : i32, i32
  }
  func.func @transform_12(%arg0: i32) -> (i32, i32) {
    %c0_i32 = arith.constant 0 : i32
    %c0_i32_0 = arith.constant 0 : i32
    %c0_i32_1 = arith.constant 0 : i32
    return %c0_i32, %c0_i32_0 : i32, i32
  }
  func.func @transform_13(%arg0: i32) -> (i32, i32) {
    %c0_i32 = arith.constant 0 : i32
    %c0_i32_0 = arith.constant 0 : i32
    %c0_i32_1 = arith.constant 0 : i32
    return %c0_i32, %c0_i32_0 : i32, i32
  }
  func.func @transform_14(%arg0: i32) -> (i32, i32) {
    %c0_i32 = arith.constant 0 : i32
    %c0_i32_0 = arith.constant 0 : i32
    %c0_i32_1 = arith.constant 0 : i32
    return %c0_i32, %c0_i32_0 : i32, i32
  }
  func.func @transform_15(%arg0: i32) -> (i32, i32) {
    %c0_i32 = arith.constant 0 : i32
    %c0_i32_0 = arith.constant 0 : i32
    %c0_i32_1 = arith.constant 0 : i32
    return %c0_i32, %c0_i32_0 : i32, i32
  }
  func.func @transform_16(%arg0: i32) -> (i32, i32) {
    %c0_i32 = arith.constant 0 : i32
    %c0_i32_0 = arith.constant 0 : i32
    %c0_i32_1 = arith.constant 0 : i32
    return %c0_i32, %c0_i32_0 : i32, i32
  }
  func.func @transform_17(%arg0: i32) -> (i32, i32) {
    %c0_i32 = arith.constant 0 : i32
    %c0_i32_0 = arith.constant 0 : i32
    %c0_i32_1 = arith.constant 0 : i32
    return %c0_i32, %c0_i32_0 : i32, i32
  }
  func.func @transform_18(%arg0: i32) -> (i32, i32) {
    %c0_i32 = arith.constant 0 : i32
    %c0_i32_0 = arith.constant 0 : i32
    %c0_i32_1 = arith.constant 0 : i32
    return %c0_i32, %c0_i32_0 : i32, i32
  }
  func.func @transform_19(%arg0: i32) -> (i32, i32) {
    %c0_i32 = arith.constant 0 : i32
    %c0_i32_0 = arith.constant 0 : i32
    %c0_i32_1 = arith.constant 0 : i32
    return %c0_i32, %c0_i32_0 : i32, i32
  }
  func.func @transform_20(%arg0: i32) -> (i32, i32) {
    %c0_i32 = arith.constant 0 : i32
    %c0_i32_0 = arith.constant 0 : i32
    %c0_i32_1 = arith.constant 0 : i32
    return %c0_i32, %c0_i32_0 : i32, i32
  }
  func.func @transform_21(%arg0: i32) -> (i32, i32) {
    %c0_i32 = arith.constant 0 : i32
    %c0_i32_0 = arith.constant 0 : i32
    %c0_i32_1 = arith.constant 0 : i32
    return %c0_i32, %c0_i32_0 : i32, i32
  }
  func.func @transform_22(%arg0: i32) -> (i32, i32) {
    %c0_i32 = arith.constant 0 : i32
    %c0_i32_0 = arith.constant 0 : i32
    %c0_i32_1 = arith.constant 0 : i32
    return %c0_i32, %c0_i32_0 : i32, i32
  }
  func.func @transform_23(%arg0: i32) -> (i32, i32) {
    %c0_i32 = arith.constant 0 : i32
    %c0_i32_0 = arith.constant 0 : i32
    %c0_i32_1 = arith.constant 0 : i32
    return %c0_i32, %c0_i32_0 : i32, i32
  }
  func.func @transform_24(%arg0: i32) -> (i32, i32) {
    %c0_i32 = arith.constant 0 : i32
    %c0_i32_0 = arith.constant 0 : i32
    %c0_i32_1 = arith.constant 0 : i32
    return %c0_i32, %c0_i32_0 : i32, i32
  }
  func.func @transform_25(%arg0: i32) -> (i32, i32) {
    %c0_i32 = arith.constant 0 : i32
    %c0_i32_0 = arith.constant 0 : i32
    %c0_i32_1 = arith.constant 0 : i32
    return %c0_i32, %c0_i32_0 : i32, i32
  }
  func.func @transform_26(%arg0: i32) -> (i32, i32) {
    %c0_i32 = arith.constant 0 : i32
    %c0_i32_0 = arith.constant 0 : i32
    return %arg0, %c0_i32 : i32, i32
  }
}

</mosaic_0001>

<llo_original>
// kernel: pointnet_encoder_forward.1
$region0: #{pointnet_encoder_forward.1}
  #allocation0 [shape = 'u32[]', space=smem, size = 0x4, offset = 0x4, fixed_abs, tag = 'smem constant byte address 0x4 - core index']
  #allocation1 [shape = 'u32[144,128]{1,0:T(1,128)}', space=vmem, size = 0x12000, scoped, tag = 'internal scratch']
  %s0 = inlined_call_operand.vmem [shape: f32[256,8], index: 0, kind: input, shape index: {}]
  %s1 = inlined_call_operand.vmem [shape: f32[16,8], index: 1, kind: input, shape index: {}]
  %s2 = inlined_call_operand.vmem [shape: bf16[8,128], index: 2, kind: input, shape index: {}]
  %s3 = inlined_call_operand.vmem [shape: f32[1,128], index: 3, kind: input, shape index: {}]
  %s4 = inlined_call_operand.vmem [shape: bf16[128,128], index: 4, kind: input, shape index: {}]
  %s5 = inlined_call_operand.vmem [shape: f32[1,128], index: 5, kind: input, shape index: {}]
  %s6 = inlined_call_operand.vmem [shape: bf16[128,128], index: 6, kind: input, shape index: {}]
  %s7 = inlined_call_operand.vmem [shape: f32[1,128], index: 7, kind: input, shape index: {}]
  %s8 = inlined_call_operand.vmem [shape: bf16[8,256], index: 8, kind: input, shape index: {}]
  %s9 = inlined_call_operand.vmem [shape: bf16[128,256], index: 9, kind: input, shape index: {}]
  %s10 = inlined_call_operand.vmem [shape: f32[1,256], index: 10, kind: input, shape index: {}]
  %s11 = inlined_call_operand.vmem [shape: bf16[256,256], index: 11, kind: input, shape index: {}]
  %s12 = inlined_call_operand.vmem [shape: f32[1,256], index: 12, kind: input, shape index: {}]
  %s13 = inlined_call_operand.vmem [shape: bf16[256,128], index: 13, kind: input, shape index: {}]
  %s14 = inlined_call_operand.vmem [shape: f32[1,128], index: 14, kind: input, shape index: {}]
  %s15 = inlined_call_operand.vmem [shape: bf16[8,128], index: 15, kind: input, shape index: {}]
  %s16 = inlined_call_operand.vmem [shape: f32[1,128], index: 16, kind: input, shape index: {}]
  %s17 = inlined_call_operand.vmem [shape: bf16[128,128], index: 17, kind: input, shape index: {}]
  %s18 = inlined_call_operand.vmem [shape: f32[1,128], index: 18, kind: input, shape index: {}]
  %s19 = inlined_call_operand.vmem [shape: bf16[128,128], index: 19, kind: input, shape index: {}]
  %s20 = inlined_call_operand.vmem [shape: f32[1,128], index: 20, kind: input, shape index: {}]
  %s21 = inlined_call_operand.vmem [shape: bf16[128,256], index: 21, kind: input, shape index: {}]
  %s22 = inlined_call_operand.vmem [shape: bf16[128,256], index: 22, kind: input, shape index: {}]
  %s23 = inlined_call_operand.vmem [shape: f32[1,256], index: 23, kind: input, shape index: {}]
  %s24 = inlined_call_operand.vmem [shape: bf16[256,128], index: 24, kind: input, shape index: {}]
  %s25 = inlined_call_operand.vmem [shape: f32[1,128], index: 25, kind: input, shape index: {}]
  %s26 = inlined_call_operand.hbm [shape: f32[16,128], index: 26, kind: output, shape index: {}]
  %s27 = sld [smem:[#allocation0]]
  $region114: #{pointnet_encoder_forward.1} parent=0
    _
  %s29 = ssub.s32 1, %s27
  %s30 = scalar_select 0, %s29, %s27
  $region1: #{pointnet_encoder_forward.1} parent=0
    #allocation2 [shape = 'u8[8192]{0}', space=vmem, size = 0x2000, scoped, tag = 'output window, operand 0, single buffered']
    #allocation3 [shape = 's32[1]{0}', space=sflag, size = 0x4, scoped, tag = 'scoped memory for pointnet_encoder_forward.1']
    %31 = vsyncpa [#allocation3], 0
    // Predicated region
    $region2: #{pointnet_encoder_forward.1} parent=1 // pred_check
      _
    $region3: #{pointnet_encoder_forward.1} parent=1 // pred_check_branch
      %33 = sbr.rel (0) target = $region5
    $region4: #{pointnet_encoder_forward.1} parent=1 // pred_region
      _
    $region5: #{pointnet_encoder_forward.1} parent=1 // pred_fallthru
      _
    // Predicated region
    $region6: #{pointnet_encoder_forward.1} parent=1 // pred_check
      _
    $region7: #{pointnet_encoder_forward.1} parent=1 // pred_check_branch
      %35 = sbr.rel (0) target = $region9
    $region8: #{pointnet_encoder_forward.1} parent=1 // pred_region
      _
    $region9: #{pointnet_encoder_forward.1} parent=1 // pred_fallthru
      _
    // Predicated region
    $region10: #{pointnet_encoder_forward.1} parent=1 // pred_check
      _
    $region11: #{pointnet_encoder_forward.1} parent=1 // pred_check_branch
      %37 = sbr.rel (0) target = $region13
    $region12: #{pointnet_encoder_forward.1} parent=1 // pred_region
      _
    $region13: #{pointnet_encoder_forward.1} parent=1 // pred_fallthru
      _
    // Predicated region
    $region14: #{pointnet_encoder_forward.1} parent=1 // pred_check
      _
    $region15: #{pointnet_encoder_forward.1} parent=1 // pred_check_branch
      %39 = sbr.rel (0) target = $region17
    $region16: #{pointnet_encoder_forward.1} parent=1 // pred_region
      _
    $region17: #{pointnet_encoder_forward.1} parent=1 // pred_fallthru
      _
    // Predicated region
    $region18: #{pointnet_encoder_forward.1} parent=1 // pred_check
      _
    $region19: #{pointnet_encoder_forward.1} parent=1 // pred_check_branch
      %41 = sbr.rel (0) target = $region21
    $region20: #{pointnet_encoder_forward.1} parent=1 // pred_region
      _
    $region21: #{pointnet_encoder_forward.1} parent=1 // pred_fallthru
      _
    // Predicated region
    $region22: #{pointnet_encoder_forward.1} parent=1 // pred_check
      _
    $region23: #{pointnet_encoder_forward.1} parent=1 // pred_check_branch
      %43 = sbr.rel (0) target = $region25
    $region24: #{pointnet_encoder_forward.1} parent=1 // pred_region
      _
    $region25: #{pointnet_encoder_forward.1} parent=1 // pred_fallthru
      _
    // Predicated region
    $region26: #{pointnet_encoder_forward.1} parent=1 // pred_check
      _
    $region27: #{pointnet_encoder_forward.1} parent=1 // pred_check_branch
      %45 = sbr.rel (0) target = $region29
    $region28: #{pointnet_encoder_forward.1} parent=1 // pred_region
      _
    $region29: #{pointnet_encoder_forward.1} parent=1 // pred_fallthru
      _
    // Predicated region
    $region30: #{pointnet_encoder_forward.1} parent=1 // pred_check
      _
    $region31: #{pointnet_encoder_forward.1} parent=1 // pred_check_branch
      %47 = sbr.rel (0) target = $region33
    $region32: #{pointnet_encoder_forward.1} parent=1 // pred_region
      _
    $region33: #{pointnet_encoder_forward.1} parent=1 // pred_fallthru
      _
    // Predicated region
    $region34: #{pointnet_encoder_forward.1} parent=1 // pred_check
      _
    $region35: #{pointnet_encoder_forward.1} parent=1 // pred_check_branch
      %49 = sbr.rel (0) target = $region37
    $region36: #{pointnet_encoder_forward.1} parent=1 // pred_region
      _
    $region37: #{pointnet_encoder_forward.1} parent=1 // pred_fallthru
      _
    // Predicated region
    $region38: #{pointnet_encoder_forward.1} parent=1 // pred_check
      _
    $region39: #{pointnet_encoder_forward.1} parent=1 // pred_check_branch
      %51 = sbr.rel (0) target = $region41
    $region40: #{pointnet_encoder_forward.1} parent=1 // pred_region
      _
    $region41: #{pointnet_encoder_forward.1} parent=1 // pred_fallthru
      _
    // Predicated region
    $region42: #{pointnet_encoder_forward.1} parent=1 // pred_check
      _
    $region43: #{pointnet_encoder_forward.1} parent=1 // pred_check_branch
      %53 = sbr.rel (0) target = $region45
    $region44: #{pointnet_encoder_forward.1} parent=1 // pred_region
      _
    $region45: #{pointnet_encoder_forward.1} parent=1 // pred_fallthru
      _
    // Predicated region
    $region46: #{pointnet_encoder_forward.1} parent=1 // pred_check
      _
    $region47: #{pointnet_encoder_forward.1} parent=1 // pred_check_branch
      %55 = sbr.rel (0) target = $region49
    $region48: #{pointnet_encoder_forward.1} parent=1 // pred_region
      _
    $region49: #{pointnet_encoder_forward.1} parent=1 // pred_fallthru
      _
    // Predicated region
    $region50: #{pointnet_encoder_forward.1} parent=1 // pred_check
      _
    $region51: #{pointnet_encoder_forward.1} parent=1 // pred_check_branch
      %57 = sbr.rel (0) target = $region53
    $region52: #{pointnet_encoder_forward.1} parent=1 // pred_region
      _
    $region53: #{pointnet_encoder_forward.1} parent=1 // pred_fallthru
      _
    // Predicated region
    $region54: #{pointnet_encoder_forward.1} parent=1 // pred_check
      _
    $region55: #{pointnet_encoder_forward.1} parent=1 // pred_check_branch
      %59 = sbr.rel (0) target = $region57
    $region56: #{pointnet_encoder_forward.1} parent=1 // pred_region
      _
    $region57: #{pointnet_encoder_forward.1} parent=1 // pred_fallthru
      _
    // Predicated region
    $region58: #{pointnet_encoder_forward.1} parent=1 // pred_check
      _
    $region59: #{pointnet_encoder_forward.1} parent=1 // pred_check_branch
      %61 = sbr.rel (0) target = $region61
    $region60: #{pointnet_encoder_forward.1} parent=1 // pred_region
      _
    $region61: #{pointnet_encoder_forward.1} parent=1 // pred_fallthru
      _
    // Predicated region
    $region62: #{pointnet_encoder_forward.1} parent=1 // pred_check
      _
    $region63: #{pointnet_encoder_forward.1} parent=1 // pred_check_branch
      %63 = sbr.rel (0) target = $region65
    $region64: #{pointnet_encoder_forward.1} parent=1 // pred_region
      _
    $region65: #{pointnet_encoder_forward.1} parent=1 // pred_fallthru
      _
    // Predicated region
    $region66: #{pointnet_encoder_forward.1} parent=1 // pred_check
      _
    $region67: #{pointnet_encoder_forward.1} parent=1 // pred_check_branch
      %65 = sbr.rel (0) target = $region69
    $region68: #{pointnet_encoder_forward.1} parent=1 // pred_region
      _
    $region69: #{pointnet_encoder_forward.1} parent=1 // pred_fallthru
      _
    // Predicated region
    $region70: #{pointnet_encoder_forward.1} parent=1 // pred_check
      _
    $region71: #{pointnet_encoder_forward.1} parent=1 // pred_check_branch
      %67 = sbr.rel (0) target = $region73
    $region72: #{pointnet_encoder_forward.1} parent=1 // pred_region
      _
    $region73: #{pointnet_encoder_forward.1} parent=1 // pred_fallthru
      _
    // Predicated region
    $region74: #{pointnet_encoder_forward.1} parent=1 // pred_check
      _
    $region75: #{pointnet_encoder_forward.1} parent=1 // pred_check_branch
      %69 = sbr.rel (0) target = $region77
    $region76: #{pointnet_encoder_forward.1} parent=1 // pred_region
      _
    $region77: #{pointnet_encoder_forward.1} parent=1 // pred_fallthru
      _
    // Predicated region
    $region78: #{pointnet_encoder_forward.1} parent=1 // pred_check
      _
    $region79: #{pointnet_encoder_forward.1} parent=1 // pred_check_branch
      %71 = sbr.rel (0) target = $region81
    $region80: #{pointnet_encoder_forward.1} parent=1 // pred_region
      _
    $region81: #{pointnet_encoder_forward.1} parent=1 // pred_fallthru
      _
    // Predicated region
    $region82: #{pointnet_encoder_forward.1} parent=1 // pred_check
      _
    $region83: #{pointnet_encoder_forward.1} parent=1 // pred_check_branch
      %73 = sbr.rel (0) target = $region85
    $region84: #{pointnet_encoder_forward.1} parent=1 // pred_region
      _
    $region85: #{pointnet_encoder_forward.1} parent=1 // pred_fallthru
      _
    // Predicated region
    $region86: #{pointnet_encoder_forward.1} parent=1 // pred_check
      _
    $region87: #{pointnet_encoder_forward.1} parent=1 // pred_check_branch
      %75 = sbr.rel (0) target = $region89
    $region88: #{pointnet_encoder_forward.1} parent=1 // pred_region
      _
    $region89: #{pointnet_encoder_forward.1} parent=1 // pred_fallthru
      _
    // Predicated region
    $region90: #{pointnet_encoder_forward.1} parent=1 // pred_check
      _
    $region91: #{pointnet_encoder_forward.1} parent=1 // pred_check_branch
      %77 = sbr.rel (0) target = $region93
    $region92: #{pointnet_encoder_forward.1} parent=1 // pred_region
      _
    $region93: #{pointnet_encoder_forward.1} parent=1 // pred_fallthru
      _
    // Predicated region
    $region94: #{pointnet_encoder_forward.1} parent=1 // pred_check
      _
    $region95: #{pointnet_encoder_forward.1} parent=1 // pred_check_branch
      %79 = sbr.rel (0) target = $region97
    $region96: #{pointnet_encoder_forward.1} parent=1 // pred_region
      _
    $region97: #{pointnet_encoder_forward.1} parent=1 // pred_fallthru
      _
    // Predicated region
    $region98: #{pointnet_encoder_forward.1} parent=1 // pred_check
      _
    $region99: #{pointnet_encoder_forward.1} parent=1 // pred_check_branch
      %81 = sbr.rel (0) target = $region101
    $region100: #{pointnet_encoder_forward.1} parent=1 // pred_region
      _
    $region101: #{pointnet_encoder_forward.1} parent=1 // pred_fallthru
      _
    // Predicated region
    $region102: #{pointnet_encoder_forward.1} parent=1 // pred_check
      _
    $region103: #{pointnet_encoder_forward.1} parent=1 // pred_check_branch
      %83 = sbr.rel (0) target = $region105
    $region104: #{pointnet_encoder_forward.1} parent=1 // pred_region
      _
    $region105: #{pointnet_encoder_forward.1} parent=1 // pred_fallthru
      _
    %v85 = vld [vmem:[%s0] sm:$0xff]
    %v86 = vld [vmem:[%s0 + $0x8] sm:$0xff]
    %v87 = vld [vmem:[%s0 + $0x10] sm:$0xff]
    %v88 = vld [vmem:[%s0 + $0x18] sm:$0xff]
    %v89 = vld [vmem:[%s0 + $0x20] sm:$0xff]
    %v90 = vld [vmem:[%s0 + $0x28] sm:$0xff]
    %v91 = vld [vmem:[%s0 + $0x30] sm:$0xff]
    %v92 = vld [vmem:[%s0 + $0x38] sm:$0xff]
    %v93 = vld [vmem:[%s0 + $0x40] sm:$0xff]
    %v94 = vld [vmem:[%s0 + $0x48] sm:$0xff]
    %v95 = vld [vmem:[%s0 + $0x50] sm:$0xff]
    %v96 = vld [vmem:[%s0 + $0x58] sm:$0xff]
    %v97 = vld [vmem:[%s0 + $0x60] sm:$0xff]
    %v98 = vld [vmem:[%s0 + $0x68] sm:$0xff]
    %v99 = vld [vmem:[%s0 + $0x70] sm:$0xff]
    %v100 = vld [vmem:[%s0 + $0x78] sm:$0xff]
    %v101 = vld [vmem:[%s0 + $0x80] sm:$0xff]
    %v102 = vld [vmem:[%s0 + $0x88] sm:$0xff]
    %v103 = vld [vmem:[%s0 + $0x90] sm:$0xff]
    %v104 = vld [vmem:[%s0 + $0x98] sm:$0xff]
    %v105 = vld [vmem:[%s0 + $0xa0] sm:$0xff]
    %v106 = vld [vmem:[%s0 + $0xa8] sm:$0xff]
    %v107 = vld [vmem:[%s0 + $0xb0] sm:$0xff]
    %v108 = vld [vmem:[%s0 + $0xb8] sm:$0xff]
    %v109 = vld [vmem:[%s0 + $0xc0] sm:$0xff]
    %v110 = vld [vmem:[%s0 + $0xc8] sm:$0xff]
    %v111 = vld [vmem:[%s0 + $0xd0] sm:$0xff]
    %v112 = vld [vmem:[%s0 + $0xd8] sm:$0xff]
    %v113 = vld [vmem:[%s0 + $0xe0] sm:$0xff]
    %v114 = vld [vmem:[%s0 + $0xe8] sm:$0xff]
    %v115 = vld [vmem:[%s0 + $0xf0] sm:$0xff]
    %v116 = vld [vmem:[%s0 + $0xf8] sm:$0xff]
    %v117 = vpack.c.bf16 %v86, %v85
    %v118 = vpack.c.bf16 %v88, %v87
    %v119 = vpack.c.bf16 %v90, %v89
    %v120 = vpack.c.bf16 %v92, %v91
    %v121 = vpack.c.bf16 %v94, %v93
    %v122 = vpack.c.bf16 %v96, %v95
    %v123 = vpack.c.bf16 %v98, %v97
    %v124 = vpack.c.bf16 %v100, %v99
    %v125 = vpack.c.bf16 %v102, %v101
    %v126 = vpack.c.bf16 %v104, %v103
    %v127 = vpack.c.bf16 %v106, %v105
    %v128 = vpack.c.bf16 %v108, %v107
    %v129 = vpack.c.bf16 %v110, %v109
    %v130 = vpack.c.bf16 %v112, %v111
    %v131 = vpack.c.bf16 %v114, %v113
    %v132 = vpack.c.bf16 %v116, %v115
    %v133 = vld [vmem:[%s2] sm:$0xf]
    %v134 = vld [vmem:[%s3] sm:$0x1]
    %v136 = vlaneseq
    %v137 = vshrl.u32 %v136, 7
    %v138 = vsub.s32 0, %v137
    %v139 = vrot.slane %v134, %v138
    %vm141 = vcmask 64512
    %v143 = vsel %vm141, %v117, 0
    %v146 = vsel %vm141, %v118, 0
    %v149 = vsel %vm141, %v119, 0
    %v152 = vsel %vm141, %v120, 0
    %v155 = vsel %vm141, %v121, 0
    %v158 = vsel %vm141, %v122, 0
    %v161 = vsel %vm141, %v123, 0
    %v164 = vsel %vm141, %v124, 0
    %v167 = vsel %vm141, %v125, 0
    %v170 = vsel %vm141, %v126, 0
    %v173 = vsel %vm141, %v127, 0
    %v176 = vsel %vm141, %v128, 0
    %v179 = vsel %vm141, %v129, 0
    %v182 = vsel %vm141, %v130, 0
    %v185 = vsel %vm141, %v131, 0
    %v188 = vsel %vm141, %v132, 0
    %vm190 = vcmask 1043456
    %v192 = vsel %vm190, %v133, 0
    %194 = vmatprep.subr.bf16.mxu0 0
    %195 = vmatpush1.bf16.msra.mxu0 0
    %196 = vmatprep.subr.bf16.mxu0 0
    %197 = vmatpush1.bf16.msra.mxu0 0
    %198 = vmatprep.subr.bf16.mxu0 0
    %199 = vmatpush1.bf16.msra.mxu0 0
    %200 = vmatprep.subr.bf16.mxu0 0
    %201 = vmatpush1.bf16.msra.mxu0 0
    %202 = vmatprep.subr.bf16.mxu0 0
    %203 = vmatpush1.bf16.msra.mxu0 0
    %204 = vmatprep.subr.bf16.mxu0 0
    %205 = vmatpush1.bf16.msra.mxu0 0
    %206 = vmatprep.subr.bf16.mxu0 0
    %207 = vmatpush1.bf16.msra.mxu0 0
    %208 = vmatprep.subr.bf16.mxu0 0
    %209 = vmatpush1.bf16.msra.mxu0 %v192
    %210 = vmatprep.subr.bf16.mxu0 0
    %211 = vmatpush2.bf16.msra.mxu0 0
    %212 = vmatprep.subr.bf16.mxu0 0
    %213 = vmatpush2.bf16.msra.mxu0 0
    %214 = vmatprep.subr.bf16.mxu0 0
    %215 = vmatpush2.bf16.msra.mxu0 0
    %216 = vmatprep.subr.bf16.mxu0 0
    %217 = vmatpush2.bf16.msra.mxu0 0
    %218 = vmatprep.subr.bf16.mxu0 0
    %219 = vmatpush2.bf16.msra.mxu0 0
    %220 = vmatprep.subr.bf16.mxu0 0
    %221 = vmatpush2.bf16.msra.mxu0 0
    %222 = vmatprep.subr.bf16.mxu0 0
    %223 = vmatpush2.bf16.msra.mxu0 0
    %224 = vmatprep.subr.bf16.mxu0 0
    %225 = vmatpush2.bf16.msra.mxu0 0
    %226 = vmatprep.mubr.bf16.mxu0 0
    %227 = vmatmul.mubr.bf16.gmra.mxu0 %v143
    %v228 = vpop.f32.mrf.mxu0
    %v229 = vadd.f32 %v139, %v228
    %v230 = vpop.f32.mrf.mxu0
    %v231 = vpop.f32.mrf.mxu0
    %v232 = vadd.f32 %v139, %v231
    %v233 = vpop.f32.mrf.mxu0
    %234 = vmatprep.mubr.bf16.mxu0 0
    %235 = vmatmul.mubr.bf16.gmra.mxu0 %v146
    %v236 = vpop.f32.mrf.mxu0
    %v237 = vadd.f32 %v139, %v236
    %v238 = vpop.f32.mrf.mxu0
    %v239 = vpop.f32.mrf.mxu0
    %v240 = vadd.f32 %v139, %v239
    %v241 = vpop.f32.mrf.mxu0
    %242 = vmatprep.mubr.bf16.mxu0 0
    %243 = vmatmul.mubr.bf16.gmra.mxu0 %v149
    %v244 = vpop.f32.mrf.mxu0
    %v245 = vadd.f32 %v139, %v244
    %v246 = vpop.f32.mrf.mxu0
    %v247 = vpop.f32.mrf.mxu0
    %v248 = vadd.f32 %v139, %v247
    %v249 = vpop.f32.mrf.mxu0
    %250 = vmatprep.mubr.bf16.mxu0 0
    %251 = vmatmul.mubr.bf16.gmra.mxu0 %v152
    %v252 = vpop.f32.mrf.mxu0
    %v253 = vadd.f32 %v139, %v252
    %v254 = vpop.f32.mrf.mxu0
    %v255 = vpop.f32.mrf.mxu0
    %v256 = vadd.f32 %v139, %v255
    %v257 = vpop.f32.mrf.mxu0
    %258 = vmatprep.mubr.bf16.mxu0 0
    %259 = vmatmul.mubr.bf16.gmra.mxu0 %v155
    %v260 = vpop.f32.mrf.mxu0
    %v261 = vadd.f32 %v139, %v260
    %v262 = vpop.f32.mrf.mxu0
    %v263 = vpop.f32.mrf.mxu0
    %v264 = vadd.f32 %v139, %v263
    %v265 = vpop.f32.mrf.mxu0
    %266 = vmatprep.mubr.bf16.mxu0 0
    %267 = vmatmul.mubr.bf16.gmra.mxu0 %v158
    %v268 = vpop.f32.mrf.mxu0
    %v269 = vadd.f32 %v139, %v268
    %v270 = vpop.f32.mrf.mxu0
    %v271 = vpop.f32.mrf.mxu0
    %v272 = vadd.f32 %v139, %v271
    %v273 = vpop.f32.mrf.mxu0
    %274 = vmatprep.mubr.bf16.mxu0 0
    %275 = vmatmul.mubr.bf16.gmra.mxu0 %v161
    %v276 = vpop.f32.mrf.mxu0
    %v277 = vadd.f32 %v139, %v276
    %v278 = vpop.f32.mrf.mxu0
    %v279 = vpop.f32.mrf.mxu0
    %v280 = vadd.f32 %v139, %v279
    %v281 = vpop.f32.mrf.mxu0
    %282 = vmatprep.mubr.bf16.mxu0 0
    %283 = vmatmul.mubr.bf16.gmra.mxu0 %v164
    %v284 = vpop.f32.mrf.mxu0
    %v285 = vadd.f32 %v139, %v284
    %v286 = vpop.f32.mrf.mxu0
    %v287 = vpop.f32.mrf.mxu0
    %v288 = vadd.f32 %v139, %v287
    %v289 = vpop.f32.mrf.mxu0
    %290 = vmatprep.mubr.bf16.mxu0 0
    %291 = vmatmul.mubr.bf16.gmra.mxu0 %v167
    %v292 = vpop.f32.mrf.mxu0
    %v293 = vadd.f32 %v139, %v292
    %v294 = vpop.f32.mrf.mxu0
    %v295 = vpop.f32.mrf.mxu0
    %v296 = vadd.f32 %v139, %v295
    %v297 = vpop.f32.mrf.mxu0
    %298 = vmatprep.mubr.bf16.mxu0 0
    %299 = vmatmul.mubr.bf16.gmra.mxu0 %v170
    %v300 = vpop.f32.mrf.mxu0
    %v301 = vadd.f32 %v139, %v300
    %v302 = vpop.f32.mrf.mxu0
    %v303 = vpop.f32.mrf.mxu0
    %v304 = vadd.f32 %v139, %v303
    %v305 = vpop.f32.mrf.mxu0
    %306 = vmatprep.mubr.bf16.mxu0 0
    %307 = vmatmul.mubr.bf16.gmra.mxu0 %v173
    %v308 = vpop.f32.mrf.mxu0
    %v309 = vadd.f32 %v139, %v308
    %v310 = vpop.f32.mrf.mxu0
    %v311 = vpop.f32.mrf.mxu0
    %v312 = vadd.f32 %v139, %v311
    %v313 = vpop.f32.mrf.mxu0
    %314 = vmatprep.mubr.bf16.mxu0 0
    %315 = vmatmul.mubr.bf16.gmra.mxu0 %v176
    %v316 = vpop.f32.mrf.mxu0
    %v317 = vadd.f32 %v139, %v316
    %v318 = vpop.f32.mrf.mxu0
    %v319 = vpop.f32.mrf.mxu0
    %v320 = vadd.f32 %v139, %v319
    %v321 = vpop.f32.mrf.mxu0
    %322 = vmatprep.mubr.bf16.mxu0 0
    %323 = vmatmul.mubr.bf16.gmra.mxu0 %v179
    %v324 = vpop.f32.mrf.mxu0
    %v325 = vadd.f32 %v139, %v324
    %v326 = vpop.f32.mrf.mxu0
    %v327 = vpop.f32.mrf.mxu0
    %v328 = vadd.f32 %v139, %v327
    %v329 = vpop.f32.mrf.mxu0
    %330 = vmatprep.mubr.bf16.mxu0 0
    %331 = vmatmul.mubr.bf16.gmra.mxu0 %v182
    %v332 = vpop.f32.mrf.mxu0
    %v333 = vadd.f32 %v139, %v332
    %v334 = vpop.f32.mrf.mxu0
    %v335 = vpop.f32.mrf.mxu0
    %v336 = vadd.f32 %v139, %v335
    %v337 = vpop.f32.mrf.mxu0
    %338 = vmatprep.mubr.bf16.mxu0 0
    %339 = vmatmul.mubr.bf16.gmra.mxu0 %v185
    %v340 = vpop.f32.mrf.mxu0
    %v341 = vadd.f32 %v139, %v340
    %v342 = vpop.f32.mrf.mxu0
    %v343 = vpop.f32.mrf.mxu0
    %v344 = vadd.f32 %v139, %v343
    %v345 = vpop.f32.mrf.mxu0
    %346 = vmatprep.mubr.bf16.mxu0 0
    %347 = vmatmul.mubr.bf16.gmra.mxu0 %v188
    %v348 = vpop.f32.mrf.mxu0
    %v349 = vadd.f32 %v139, %v348
    %v350 = vpop.f32.mrf.mxu0
    %v351 = vpop.f32.mrf.mxu0
    %v352 = vadd.f32 %v139, %v351
    %v353 = vpop.f32.mrf.mxu0
    %354 = vdwg.mxu0
    %v355 = vmax.f32 %v229, 0.0
    %v356 = vmax.f32 %v232, 0.0
    %v357 = vmax.f32 %v237, 0.0
    %v358 = vmax.f32 %v240, 0.0
    %v359 = vmax.f32 %v245, 0.0
    %v360 = vmax.f32 %v248, 0.0
    %v361 = vmax.f32 %v253, 0.0
    %v362 = vmax.f32 %v256, 0.0
    %v363 = vmax.f32 %v261, 0.0
    %v364 = vmax.f32 %v264, 0.0
    %v365 = vmax.f32 %v269, 0.0
    %v366 = vmax.f32 %v272, 0.0
    %v367 = vmax.f32 %v277, 0.0
    %v368 = vmax.f32 %v280, 0.0
    %v369 = vmax.f32 %v285, 0.0
    %v370 = vmax.f32 %v288, 0.0
    %v371 = vmax.f32 %v293, 0.0
    %v372 = vmax.f32 %v296, 0.0
    %v373 = vmax.f32 %v301, 0.0
    %v374 = vmax.f32 %v304, 0.0
    %v375 = vmax.f32 %v309, 0.0
    %v376 = vmax.f32 %v312, 0.0
    %v377 = vmax.f32 %v317, 0.0
    %v378 = vmax.f32 %v320, 0.0
    %v379 = vmax.f32 %v325, 0.0
    %v380 = vmax.f32 %v328, 0.0
    %v381 = vmax.f32 %v333, 0.0
    %v382 = vmax.f32 %v336, 0.0
    %v383 = vmax.f32 %v341, 0.0
    %v384 = vmax.f32 %v344, 0.0
    %v385 = vmax.f32 %v349, 0.0
    %v386 = vmax.f32 %v352, 0.0
    %v387 = vpack.c.bf16 %v356, %v355
    %v388 = vpack.c.bf16 %v358, %v357
    %v389 = vpack.c.bf16 %v360, %v359
    %v390 = vpack.c.bf16 %v362, %v361
    %v391 = vpack.c.bf16 %v364, %v363
    %v392 = vpack.c.bf16 %v366, %v365
    %v393 = vpack.c.bf16 %v368, %v367
    %v394 = vpack.c.bf16 %v370, %v369
    %v395 = vpack.c.bf16 %v372, %v371
    %v396 = vpack.c.bf16 %v374, %v373
    %v397 = vpack.c.bf16 %v376, %v375
    %v398 = vpack.c.bf16 %v378, %v377
    %v399 = vpack.c.bf16 %v380, %v379
    %v400 = vpack.c.bf16 %v382, %v381
    %v401 = vpack.c.bf16 %v384, %v383
    %v402 = vpack.c.bf16 %v386, %v385
    %v403 = vld [vmem:[%s4] sm:$0xf]
    %v404 = vld [vmem:[%s4 + $0x4] sm:$0xf]
    %v405 = vld [vmem:[%s4 + $0x8] sm:$0xf]
    %v406 = vld [vmem:[%s4 + $0xc] sm:$0xf]
    %v407 = vld [vmem:[%s4 + $0x10] sm:$0xf]
    %v408 = vld [vmem:[%s4 + $0x14] sm:$0xf]
    %v409 = vld [vmem:[%s4 + $0x18] sm:$0xf]
    %v410 = vld [vmem:[%s4 + $0x1c] sm:$0xf]
    %v411 = vld [vmem:[%s4 + $0x20] sm:$0xf]
    %v412 = vld [vmem:[%s4 + $0x24] sm:$0xf]
    %v413 = vld [vmem:[%s4 + $0x28] sm:$0xf]
    %v414 = vld [vmem:[%s4 + $0x2c] sm:$0xf]
    %v415 = vld [vmem:[%s4 + $0x30] sm:$0xf]
    %v416 = vld [vmem:[%s4 + $0x34] sm:$0xf]
    %v417 = vld [vmem:[%s4 + $0x38] sm:$0xf]
    %v418 = vld [vmem:[%s4 + $0x3c] sm:$0xf]
    %v419 = vld [vmem:[%s5] sm:$0x1]
    %v421 = vlaneseq
    %v422 = vshrl.u32 %v421, 7
    %v423 = vsub.s32 0, %v422
    %v424 = vrot.slane %v419, %v423
    %v442 = vunpack.c.l.b16 %v403
    %v443 = vunpack.c.l.b16 %v404
    %v444 = vunpack.c.l.b16 %v405
    %v445 = vunpack.c.l.b16 %v406
    %v446 = vunpack.c.l.b16 %v407
    %v447 = vunpack.c.l.b16 %v408
    %v448 = vunpack.c.l.b16 %v409
    %v449 = vunpack.c.l.b16 %v410
    %v450 = vunpack.c.l.b16 %v411
    %v451 = vunpack.c.l.b16 %v412
    %v452 = vunpack.c.l.b16 %v413
    %v453 = vunpack.c.l.b16 %v414
    %v454 = vunpack.c.l.b16 %v415
    %v455 = vunpack.c.l.b16 %v416
    %v456 = vunpack.c.l.b16 %v417
    %v457 = vunpack.c.l.b16 %v418
    %v458 = vpack.c.b16 %v443, %v442
    %v459 = vpack.c.b16 %v445, %v444
    %v460 = vpack.c.b16 %v447, %v446
    %v461 = vpack.c.b16 %v449, %v448
    %v462 = vpack.c.b16 %v451, %v450
    %v463 = vpack.c.b16 %v453, %v452
    %v464 = vpack.c.b16 %v455, %v454
    %v465 = vpack.c.b16 %v457, %v456
    %474 = vmatprep.subr.bf16.mxu0 0
    %475 = vmatpush1.bf16.msra.mxu0 %v465
    %476 = vmatprep.subr.bf16.mxu0 0
    %477 = vmatpush1.bf16.msra.mxu0 %v464
    %478 = vmatprep.subr.bf16.mxu0 0
    %479 = vmatpush1.bf16.msra.mxu0 %v463
    %480 = vmatprep.subr.bf16.mxu0 0
    %481 = vmatpush1.bf16.msra.mxu0 %v462
    %482 = vmatprep.subr.bf16.mxu0 0
    %483 = vmatpush1.bf16.msra.mxu0 %v461
    %484 = vmatprep.subr.bf16.mxu0 0
    %485 = vmatpush1.bf16.msra.mxu0 %v460
    %486 = vmatprep.subr.bf16.mxu0 0
    %487 = vmatpush1.bf16.msra.mxu0 %v459
    %488 = vmatprep.subr.bf16.mxu0 0
    %489 = vmatpush1.bf16.msra.mxu0 %v458
    %490 = vmatprep.subr.bf16.mxu0 0
    %491 = vmatpush2.bf16.msra.mxu0 0
    %492 = vmatprep.subr.bf16.mxu0 0
    %493 = vmatpush2.bf16.msra.mxu0 0
    %494 = vmatprep.subr.bf16.mxu0 0
    %495 = vmatpush2.bf16.msra.mxu0 0
    %496 = vmatprep.subr.bf16.mxu0 0
    %497 = vmatpush2.bf16.msra.mxu0 0
    %498 = vmatprep.subr.bf16.mxu0 0
    %499 = vmatpush2.bf16.msra.mxu0 0
    %500 = vmatprep.subr.bf16.mxu0 0
    %501 = vmatpush2.bf16.msra.mxu0 0
    %502 = vmatprep.subr.bf16.mxu0 0
    %503 = vmatpush2.bf16.msra.mxu0 0
    %504 = vmatprep.subr.bf16.mxu0 0
    %505 = vmatpush2.bf16.msra.mxu0 0
    %506 = vmatprep.mubr.bf16.mxu0 0
    %507 = vmatmul.mubr.bf16.gmra.mxu0 %v387
    %v508 = vpop.f32.mrf.mxu0
    %v509 = vadd.f32 %v424, %v508
    %v510 = vpop.f32.mrf.mxu0
    %v511 = vpop.f32.mrf.mxu0
    %v512 = vadd.f32 %v424, %v511
    %v513 = vpop.f32.mrf.mxu0
    %514 = vmatprep.mubr.bf16.mxu0 0
    %515 = vmatmul.mubr.bf16.gmra.mxu0 %v388
    %v516 = vpop.f32.mrf.mxu0
    %v517 = vadd.f32 %v424, %v516
    %v518 = vpop.f32.mrf.mxu0
    %v519 = vpop.f32.mrf.mxu0
    %v520 = vadd.f32 %v424, %v519
    %v521 = vpop.f32.mrf.mxu0
    %522 = vmatprep.mubr.bf16.mxu0 0
    %523 = vmatmul.mubr.bf16.gmra.mxu0 %v389
    %v524 = vpop.f32.mrf.mxu0
    %v525 = vadd.f32 %v424, %v524
    %v526 = vpop.f32.mrf.mxu0
    %v527 = vpop.f32.mrf.mxu0
    %v528 = vadd.f32 %v424, %v527
    %v529 = vpop.f32.mrf.mxu0
    %530 = vmatprep.mubr.bf16.mxu0 0
    %531 = vmatmul.mubr.bf16.gmra.mxu0 %v390
    %v532 = vpop.f32.mrf.mxu0
    %v533 = vadd.f32 %v424, %v532
    %v534 = vpop.f32.mrf.mxu0
    %v535 = vpop.f32.mrf.mxu0
    %v536 = vadd.f32 %v424, %v535
    %v537 = vpop.f32.mrf.mxu0
    %538 = vmatprep.mubr.bf16.mxu0 0
    %539 = vmatmul.mubr.bf16.gmra.mxu0 %v391
    %v540 = vpop.f32.mrf.mxu0
    %v541 = vadd.f32 %v424, %v540
    %v542 = vpop.f32.mrf.mxu0
    %v543 = vpop.f32.mrf.mxu0
    %v544 = vadd.f32 %v424, %v543
    %v545 = vpop.f32.mrf.mxu0
    %546 = vmatprep.mubr.bf16.mxu0 0
    %547 = vmatmul.mubr.bf16.gmra.mxu0 %v392
    %v548 = vpop.f32.mrf.mxu0
    %v549 = vadd.f32 %v424, %v548
    %v550 = vpop.f32.mrf.mxu0
    %v551 = vpop.f32.mrf.mxu0
    %v552 = vadd.f32 %v424, %v551
    %v553 = vpop.f32.mrf.mxu0
    %554 = vmatprep.mubr.bf16.mxu0 0
    %555 = vmatmul.mubr.bf16.gmra.mxu0 %v393
    %v556 = vpop.f32.mrf.mxu0
    %v557 = vadd.f32 %v424, %v556
    %v558 = vpop.f32.mrf.mxu0
    %v559 = vpop.f32.mrf.mxu0
    %v560 = vadd.f32 %v424, %v559
    %v561 = vpop.f32.mrf.mxu0
    %562 = vmatprep.mubr.bf16.mxu0 0
    %563 = vmatmul.mubr.bf16.gmra.mxu0 %v394
    %v564 = vpop.f32.mrf.mxu0
    %v565 = vadd.f32 %v424, %v564
    %v566 = vpop.f32.mrf.mxu0
    %v567 = vpop.f32.mrf.mxu0
    %v568 = vadd.f32 %v424, %v567
    %v569 = vpop.f32.mrf.mxu0
    %570 = vmatprep.mubr.bf16.mxu0 0
    %571 = vmatmul.mubr.bf16.gmra.mxu0 %v395
    %v572 = vpop.f32.mrf.mxu0
    %v573 = vadd.f32 %v424, %v572
    %v574 = vpop.f32.mrf.mxu0
    %v575 = vpop.f32.mrf.mxu0
    %v576 = vadd.f32 %v424, %v575
    %v577 = vpop.f32.mrf.mxu0
    %578 = vmatprep.mubr.bf16.mxu0 0
    %579 = vmatmul.mubr.bf16.gmra.mxu0 %v396
    %v580 = vpop.f32.mrf.mxu0
    %v581 = vadd.f32 %v424, %v580
    %v582 = vpop.f32.mrf.mxu0
    %v583 = vpop.f32.mrf.mxu0
    %v584 = vadd.f32 %v424, %v583
    %v585 = vpop.f32.mrf.mxu0
    %586 = vmatprep.mubr.bf16.mxu0 0
    %587 = vmatmul.mubr.bf16.gmra.mxu0 %v397
    %v588 = vpop.f32.mrf.mxu0
    %v589 = vadd.f32 %v424, %v588
    %v590 = vpop.f32.mrf.mxu0
    %v591 = vpop.f32.mrf.mxu0
    %v592 = vadd.f32 %v424, %v591
    %v593 = vpop.f32.mrf.mxu0
    %594 = vmatprep.mubr.bf16.mxu0 0
    %595 = vmatmul.mubr.bf16.gmra.mxu0 %v398
    %v596 = vpop.f32.mrf.mxu0
    %v597 = vadd.f32 %v424, %v596
    %v598 = vpop.f32.mrf.mxu0
    %v599 = vpop.f32.mrf.mxu0
    %v600 = vadd.f32 %v424, %v599
    %v601 = vpop.f32.mrf.mxu0
    %602 = vmatprep.mubr.bf16.mxu0 0
    %603 = vmatmul.mubr.bf16.gmra.mxu0 %v399
    %v604 = vpop.f32.mrf.mxu0
    %v605 = vadd.f32 %v424, %v604
    %v606 = vpop.f32.mrf.mxu0
    %v607 = vpop.f32.mrf.mxu0
    %v608 = vadd.f32 %v424, %v607
    %v609 = vpop.f32.mrf.mxu0
    %610 = vmatprep.mubr.bf16.mxu0 0
    %611 = vmatmul.mubr.bf16.gmra.mxu0 %v400
    %v612 = vpop.f32.mrf.mxu0
    %v613 = vadd.f32 %v424, %v612
    %v614 = vpop.f32.mrf.mxu0
    %v615 = vpop.f32.mrf.mxu0
    %v616 = vadd.f32 %v424, %v615
    %v617 = vpop.f32.mrf.mxu0
    %618 = vmatprep.mubr.bf16.mxu0 0
    %619 = vmatmul.mubr.bf16.gmra.mxu0 %v401
    %v620 = vpop.f32.mrf.mxu0
    %v621 = vadd.f32 %v424, %v620
    %v622 = vpop.f32.mrf.mxu0
    %v623 = vpop.f32.mrf.mxu0
    %v624 = vadd.f32 %v424, %v623
    %v625 = vpop.f32.mrf.mxu0
    %626 = vmatprep.mubr.bf16.mxu0 0
    %627 = vmatmul.mubr.bf16.gmra.mxu0 %v402
    %v628 = vpop.f32.mrf.mxu0
    %v629 = vadd.f32 %v424, %v628
    %v630 = vpop.f32.mrf.mxu0
    %v631 = vpop.f32.mrf.mxu0
    %v632 = vadd.f32 %v424, %v631
    %v633 = vpop.f32.mrf.mxu0
    %634 = vdwg.mxu0
    %v635 = vmax.f32 %v509, 0.0
    %v636 = vmax.f32 %v512, 0.0
    %v637 = vmax.f32 %v517, 0.0
    %v638 = vmax.f32 %v520, 0.0
    %v639 = vmax.f32 %v525, 0.0
    %v640 = vmax.f32 %v528, 0.0
    %v641 = vmax.f32 %v533, 0.0
    %v642 = vmax.f32 %v536, 0.0
    %v643 = vmax.f32 %v541, 0.0
    %v644 = vmax.f32 %v544, 0.0
    %v645 = vmax.f32 %v549, 0.0
    %v646 = vmax.f32 %v552, 0.0
    %v647 = vmax.f32 %v557, 0.0
    %v648 = vmax.f32 %v560, 0.0
    %v649 = vmax.f32 %v565, 0.0
    %v650 = vmax.f32 %v568, 0.0
    %v651 = vmax.f32 %v573, 0.0
    %v652 = vmax.f32 %v576, 0.0
    %v653 = vmax.f32 %v581, 0.0
    %v654 = vmax.f32 %v584, 0.0
    %v655 = vmax.f32 %v589, 0.0
    %v656 = vmax.f32 %v592, 0.0
    %v657 = vmax.f32 %v597, 0.0
    %v658 = vmax.f32 %v600, 0.0
    %v659 = vmax.f32 %v605, 0.0
    %v660 = vmax.f32 %v608, 0.0
    %v661 = vmax.f32 %v613, 0.0
    %v662 = vmax.f32 %v616, 0.0
    %v663 = vmax.f32 %v621, 0.0
    %v664 = vmax.f32 %v624, 0.0
    %v665 = vmax.f32 %v629, 0.0
    %v666 = vmax.f32 %v632, 0.0
    %v667 = vpack.c.bf16 %v636, %v635
    %v668 = vpack.c.bf16 %v638, %v637
    %v669 = vpack.c.bf16 %v640, %v639
    %v670 = vpack.c.bf16 %v642, %v641
    %v671 = vpack.c.bf16 %v644, %v643
    %v672 = vpack.c.bf16 %v646, %v645
    %v673 = vpack.c.bf16 %v648, %v647
    %v674 = vpack.c.bf16 %v650, %v649
    %v675 = vpack.c.bf16 %v652, %v651
    %v676 = vpack.c.bf16 %v654, %v653
    %v677 = vpack.c.bf16 %v656, %v655
    %v678 = vpack.c.bf16 %v658, %v657
    %v679 = vpack.c.bf16 %v660, %v659
    %v680 = vpack.c.bf16 %v662, %v661
    %v681 = vpack.c.bf16 %v664, %v663
    %v682 = vpack.c.bf16 %v666, %v665
    %v683 = vld [vmem:[%s6] sm:$0xf]
    %v684 = vld [vmem:[%s6 + $0x4] sm:$0xf]
    %v685 = vld [vmem:[%s6 + $0x8] sm:$0xf]
    %v686 = vld [vmem:[%s6 + $0xc] sm:$0xf]
    %v687 = vld [vmem:[%s6 + $0x10] sm:$0xf]
    %v688 = vld [vmem:[%s6 + $0x14] sm:$0xf]
    %v689 = vld [vmem:[%s6 + $0x18] sm:$0xf]
    %v690 = vld [vmem:[%s6 + $0x1c] sm:$0xf]
    %v691 = vld [vmem:[%s6 + $0x20] sm:$0xf]
    %v692 = vld [vmem:[%s6 + $0x24] sm:$0xf]
    %v693 = vld [vmem:[%s6 + $0x28] sm:$0xf]
    %v694 = vld [vmem:[%s6 + $0x2c] sm:$0xf]
    %v695 = vld [vmem:[%s6 + $0x30] sm:$0xf]
    %v696 = vld [vmem:[%s6 + $0x34] sm:$0xf]
    %v697 = vld [vmem:[%s6 + $0x38] sm:$0xf]
    %v698 = vld [vmem:[%s6 + $0x3c] sm:$0xf]
    %v699 = vld [vmem:[%s7] sm:$0x1]
    %v701 = vlaneseq
    %v702 = vshrl.u32 %v701, 7
    %v703 = vsub.s32 0, %v702
    %v704 = vrot.slane %v699, %v703
    %v722 = vunpack.c.l.b16 %v683
    %v723 = vunpack.c.l.b16 %v684
    %v724 = vunpack.c.l.b16 %v685
    %v725 = vunpack.c.l.b16 %v686
    %v726 = vunpack.c.l.b16 %v687
    %v727 = vunpack.c.l.b16 %v688
    %v728 = vunpack.c.l.b16 %v689
    %v729 = vunpack.c.l.b16 %v690
    %v730 = vunpack.c.l.b16 %v691
    %v731 = vunpack.c.l.b16 %v692
    %v732 = vunpack.c.l.b16 %v693
    %v733 = vunpack.c.l.b16 %v694
    %v734 = vunpack.c.l.b16 %v695
    %v735 = vunpack.c.l.b16 %v696
    %v736 = vunpack.c.l.b16 %v697
    %v737 = vunpack.c.l.b16 %v698
    %v738 = vpack.c.b16 %v723, %v722
    %v739 = vpack.c.b16 %v725, %v724
    %v740 = vpack.c.b16 %v727, %v726
    %v741 = vpack.c.b16 %v729, %v728
    %v742 = vpack.c.b16 %v731, %v730
    %v743 = vpack.c.b16 %v733, %v732
    %v744 = vpack.c.b16 %v735, %v734
    %v745 = vpack.c.b16 %v737, %v736
    %754 = vmatprep.subr.bf16.mxu0 0
    %755 = vmatpush1.bf16.msra.mxu0 %v745
    %756 = vmatprep.subr.bf16.mxu0 0
    %757 = vmatpush1.bf16.msra.mxu0 %v744
    %758 = vmatprep.subr.bf16.mxu0 0
    %759 = vmatpush1.bf16.msra.mxu0 %v743
    %760 = vmatprep.subr.bf16.mxu0 0
    %761 = vmatpush1.bf16.msra.mxu0 %v742
    %762 = vmatprep.subr.bf16.mxu0 0
    %763 = vmatpush1.bf16.msra.mxu0 %v741
    %764 = vmatprep.subr.bf16.mxu0 0
    %765 = vmatpush1.bf16.msra.mxu0 %v740
    %766 = vmatprep.subr.bf16.mxu0 0
    %767 = vmatpush1.bf16.msra.mxu0 %v739
    %768 = vmatprep.subr.bf16.mxu0 0
    %769 = vmatpush1.bf16.msra.mxu0 %v738
    %770 = vmatprep.subr.bf16.mxu0 0
    %771 = vmatpush2.bf16.msra.mxu0 0
    %772 = vmatprep.subr.bf16.mxu0 0
    %773 = vmatpush2.bf16.msra.mxu0 0
    %774 = vmatprep.subr.bf16.mxu0 0
    %775 = vmatpush2.bf16.msra.mxu0 0
    %776 = vmatprep.subr.bf16.mxu0 0
    %777 = vmatpush2.bf16.msra.mxu0 0
    %778 = vmatprep.subr.bf16.mxu0 0
    %779 = vmatpush2.bf16.msra.mxu0 0
    %780 = vmatprep.subr.bf16.mxu0 0
    %781 = vmatpush2.bf16.msra.mxu0 0
    %782 = vmatprep.subr.bf16.mxu0 0
    %783 = vmatpush2.bf16.msra.mxu0 0
    %784 = vmatprep.subr.bf16.mxu0 0
    %785 = vmatpush2.bf16.msra.mxu0 0
    %786 = vmatprep.mubr.bf16.mxu0 0
    %787 = vmatmul.mubr.bf16.gmra.mxu0 %v667
    %v788 = vpop.f32.mrf.mxu0
    %v789 = vadd.f32 %v704, %v788
    %v790 = vpop.f32.mrf.mxu0
    %v791 = vpop.f32.mrf.mxu0
    %v792 = vadd.f32 %v704, %v791
    %v793 = vpop.f32.mrf.mxu0
    %794 = vmatprep.mubr.bf16.mxu0 0
    %795 = vmatmul.mubr.bf16.gmra.mxu0 %v668
    %v796 = vpop.f32.mrf.mxu0
    %v797 = vadd.f32 %v704, %v796
    %v798 = vpop.f32.mrf.mxu0
    %v799 = vpop.f32.mrf.mxu0
    %v800 = vadd.f32 %v704, %v799
    %v801 = vpop.f32.mrf.mxu0
    %802 = vmatprep.mubr.bf16.mxu0 0
    %803 = vmatmul.mubr.bf16.gmra.mxu0 %v669
    %v804 = vpop.f32.mrf.mxu0
    %v805 = vadd.f32 %v704, %v804
    %v806 = vpop.f32.mrf.mxu0
    %v807 = vpop.f32.mrf.mxu0
    %v808 = vadd.f32 %v704, %v807
    %v809 = vpop.f32.mrf.mxu0
    %810 = vmatprep.mubr.bf16.mxu0 0
    %811 = vmatmul.mubr.bf16.gmra.mxu0 %v670
    %v812 = vpop.f32.mrf.mxu0
    %v813 = vadd.f32 %v704, %v812
    %v814 = vpop.f32.mrf.mxu0
    %v815 = vpop.f32.mrf.mxu0
    %v816 = vadd.f32 %v704, %v815
    %v817 = vpop.f32.mrf.mxu0
    %818 = vmatprep.mubr.bf16.mxu0 0
    %819 = vmatmul.mubr.bf16.gmra.mxu0 %v671
    %v820 = vpop.f32.mrf.mxu0
    %v821 = vadd.f32 %v704, %v820
    %v822 = vpop.f32.mrf.mxu0
    %v823 = vpop.f32.mrf.mxu0
    %v824 = vadd.f32 %v704, %v823
    %v825 = vpop.f32.mrf.mxu0
    %826 = vmatprep.mubr.bf16.mxu0 0
    %827 = vmatmul.mubr.bf16.gmra.mxu0 %v672
    %v828 = vpop.f32.mrf.mxu0
    %v829 = vadd.f32 %v704, %v828
    %v830 = vpop.f32.mrf.mxu0
    %v831 = vpop.f32.mrf.mxu0
    %v832 = vadd.f32 %v704, %v831
    %v833 = vpop.f32.mrf.mxu0
    %834 = vmatprep.mubr.bf16.mxu0 0
    %835 = vmatmul.mubr.bf16.gmra.mxu0 %v673
    %v836 = vpop.f32.mrf.mxu0
    %v837 = vadd.f32 %v704, %v836
    %v838 = vpop.f32.mrf.mxu0
    %v839 = vpop.f32.mrf.mxu0
    %v840 = vadd.f32 %v704, %v839
    %v841 = vpop.f32.mrf.mxu0
    %842 = vmatprep.mubr.bf16.mxu0 0
    %843 = vmatmul.mubr.bf16.gmra.mxu0 %v674
    %v844 = vpop.f32.mrf.mxu0
    %v845 = vadd.f32 %v704, %v844
    %v846 = vpop.f32.mrf.mxu0
    %v847 = vpop.f32.mrf.mxu0
    %v848 = vadd.f32 %v704, %v847
    %v849 = vpop.f32.mrf.mxu0
    %850 = vmatprep.mubr.bf16.mxu0 0
    %851 = vmatmul.mubr.bf16.gmra.mxu0 %v675
    %v852 = vpop.f32.mrf.mxu0
    %v853 = vadd.f32 %v704, %v852
    %v854 = vpop.f32.mrf.mxu0
    %v855 = vpop.f32.mrf.mxu0
    %v856 = vadd.f32 %v704, %v855
    %v857 = vpop.f32.mrf.mxu0
    %858 = vmatprep.mubr.bf16.mxu0 0
    %859 = vmatmul.mubr.bf16.gmra.mxu0 %v676
    %v860 = vpop.f32.mrf.mxu0
    %v861 = vadd.f32 %v704, %v860
    %v862 = vpop.f32.mrf.mxu0
    %v863 = vpop.f32.mrf.mxu0
    %v864 = vadd.f32 %v704, %v863
    %v865 = vpop.f32.mrf.mxu0
    %866 = vmatprep.mubr.bf16.mxu0 0
    %867 = vmatmul.mubr.bf16.gmra.mxu0 %v677
    %v868 = vpop.f32.mrf.mxu0
    %v869 = vadd.f32 %v704, %v868
    %v870 = vpop.f32.mrf.mxu0
    %v871 = vpop.f32.mrf.mxu0
    %v872 = vadd.f32 %v704, %v871
    %v873 = vpop.f32.mrf.mxu0
    %874 = vmatprep.mubr.bf16.mxu0 0
    %875 = vmatmul.mubr.bf16.gmra.mxu0 %v678
    %v876 = vpop.f32.mrf.mxu0
    %v877 = vadd.f32 %v704, %v876
    %v878 = vpop.f32.mrf.mxu0
    %v879 = vpop.f32.mrf.mxu0
    %v880 = vadd.f32 %v704, %v879
    %v881 = vpop.f32.mrf.mxu0
    %882 = vmatprep.mubr.bf16.mxu0 0
    %883 = vmatmul.mubr.bf16.gmra.mxu0 %v679
    %v884 = vpop.f32.mrf.mxu0
    %v885 = vadd.f32 %v704, %v884
    %v886 = vpop.f32.mrf.mxu0
    %v887 = vpop.f32.mrf.mxu0
    %v888 = vadd.f32 %v704, %v887
    %v889 = vpop.f32.mrf.mxu0
    %890 = vmatprep.mubr.bf16.mxu0 0
    %891 = vmatmul.mubr.bf16.gmra.mxu0 %v680
    %v892 = vpop.f32.mrf.mxu0
    %v893 = vadd.f32 %v704, %v892
    %v894 = vpop.f32.mrf.mxu0
    %v895 = vpop.f32.mrf.mxu0
    %v896 = vadd.f32 %v704, %v895
    %v897 = vpop.f32.mrf.mxu0
    %898 = vmatprep.mubr.bf16.mxu0 0
    %899 = vmatmul.mubr.bf16.gmra.mxu0 %v681
    %v900 = vpop.f32.mrf.mxu0
    %v901 = vadd.f32 %v704, %v900
    %v902 = vpop.f32.mrf.mxu0
    %v903 = vpop.f32.mrf.mxu0
    %v904 = vadd.f32 %v704, %v903
    %v905 = vpop.f32.mrf.mxu0
    %906 = vmatprep.mubr.bf16.mxu0 0
    %907 = vmatmul.mubr.bf16.gmra.mxu0 %v682
    %v908 = vpop.f32.mrf.mxu0
    %v909 = vadd.f32 %v704, %v908
    %v910 = vpop.f32.mrf.mxu0
    %v911 = vpop.f32.mrf.mxu0
    %v912 = vadd.f32 %v704, %v911
    %v913 = vpop.f32.mrf.mxu0
    %914 = vdwg.mxu0
    %v915 = vmax.f32 %v789, 0.0
    %v916 = vmax.f32 %v792, 0.0
    %v917 = vmax.f32 %v797, 0.0
    %v918 = vmax.f32 %v800, 0.0
    %v919 = vmax.f32 %v805, 0.0
    %v920 = vmax.f32 %v808, 0.0
    %v921 = vmax.f32 %v813, 0.0
    %v922 = vmax.f32 %v816, 0.0
    %v923 = vmax.f32 %v821, 0.0
    %v924 = vmax.f32 %v824, 0.0
    %v925 = vmax.f32 %v829, 0.0
    %v926 = vmax.f32 %v832, 0.0
    %v927 = vmax.f32 %v837, 0.0
    %v928 = vmax.f32 %v840, 0.0
    %v929 = vmax.f32 %v845, 0.0
    %v930 = vmax.f32 %v848, 0.0
    %v931 = vmax.f32 %v853, 0.0
    %v932 = vmax.f32 %v856, 0.0
    %v933 = vmax.f32 %v861, 0.0
    %v934 = vmax.f32 %v864, 0.0
    %v935 = vmax.f32 %v869, 0.0
    %v936 = vmax.f32 %v872, 0.0
    %v937 = vmax.f32 %v877, 0.0
    %v938 = vmax.f32 %v880, 0.0
    %v939 = vmax.f32 %v885, 0.0
    %v940 = vmax.f32 %v888, 0.0
    %v941 = vmax.f32 %v893, 0.0
    %v942 = vmax.f32 %v896, 0.0
    %v943 = vmax.f32 %v901, 0.0
    %v944 = vmax.f32 %v904, 0.0
    %v945 = vmax.f32 %v909, 0.0
    %v946 = vmax.f32 %v912, 0.0
    %v947 = vpack.c.bf16 %v916, %v915
    %v948 = vpack.c.bf16 %v918, %v917
    %v949 = vpack.c.bf16 %v920, %v919
    %v950 = vpack.c.bf16 %v922, %v921
    %v951 = vpack.c.bf16 %v924, %v923
    %v952 = vpack.c.bf16 %v926, %v925
    %v953 = vpack.c.bf16 %v928, %v927
    %v954 = vpack.c.bf16 %v930, %v929
    %v955 = vpack.c.bf16 %v932, %v931
    %v956 = vpack.c.bf16 %v934, %v933
    %v957 = vpack.c.bf16 %v936, %v935
    %v958 = vpack.c.bf16 %v938, %v937
    %v959 = vpack.c.bf16 %v940, %v939
    %v960 = vpack.c.bf16 %v942, %v941
    %v961 = vpack.c.bf16 %v944, %v943
    %v962 = vpack.c.bf16 %v946, %v945
    %v963 = vld [vmem:[%s8] sm:$0xff]
    %v964 = vld [vmem:[%s9] sm:$0xff]
    %v965 = vld [vmem:[%s9 + $0x8] sm:$0xff]
    %v966 = vld [vmem:[%s9 + $0x10] sm:$0xff]
    %v967 = vld [vmem:[%s9 + $0x18] sm:$0xff]
    %v968 = vld [vmem:[%s9 + $0x20] sm:$0xff]
    %v969 = vld [vmem:[%s9 + $0x28] sm:$0xff]
    %v970 = vld [vmem:[%s9 + $0x30] sm:$0xff]
    %v971 = vld [vmem:[%s9 + $0x38] sm:$0xff]
    %v972 = vld [vmem:[%s9 + $0x40] sm:$0xff]
    %v973 = vld [vmem:[%s9 + $0x48] sm:$0xff]
    %v974 = vld [vmem:[%s9 + $0x50] sm:$0xff]
    %v975 = vld [vmem:[%s9 + $0x58] sm:$0xff]
    %v976 = vld [vmem:[%s9 + $0x60] sm:$0xff]
    %v977 = vld [vmem:[%s9 + $0x68] sm:$0xff]
    %v978 = vld [vmem:[%s9 + $0x70] sm:$0xff]
    %v979 = vld [vmem:[%s9 + $0x78] sm:$0xff]
    %v996 = vunpack.c.l.b16 %v964
    %v997 = vunpack.c.h.b16 %v964
    %v998 = vunpack.c.l.b16 %v965
    %v999 = vunpack.c.h.b16 %v965
    %v1000 = vunpack.c.l.b16 %v966
    %v1001 = vunpack.c.h.b16 %v966
    %v1002 = vunpack.c.l.b16 %v967
    %v1003 = vunpack.c.h.b16 %v967
    %v1004 = vunpack.c.l.b16 %v968
    %v1005 = vunpack.c.h.b16 %v968
    %v1006 = vunpack.c.l.b16 %v969
    %v1007 = vunpack.c.h.b16 %v969
    %v1008 = vunpack.c.l.b16 %v970
    %v1009 = vunpack.c.h.b16 %v970
    %v1010 = vunpack.c.l.b16 %v971
    %v1011 = vunpack.c.h.b16 %v971
    %v1012 = vunpack.c.l.b16 %v972
    %v1013 = vunpack.c.h.b16 %v972
    %v1014 = vunpack.c.l.b16 %v973
    %v1015 = vunpack.c.h.b16 %v973
    %v1016 = vunpack.c.l.b16 %v974
    %v1017 = vunpack.c.h.b16 %v974
    %v1018 = vunpack.c.l.b16 %v975
    %v1019 = vunpack.c.h.b16 %v975
    %v1020 = vunpack.c.l.b16 %v976
    %v1021 = vunpack.c.h.b16 %v976
    %v1022 = vunpack.c.l.b16 %v977
    %v1023 = vunpack.c.h.b16 %v977
    %v1024 = vunpack.c.l.b16 %v978
    %v1025 = vunpack.c.h.b16 %v978
    %v1026 = vunpack.c.l.b16 %v979
    %v1027 = vunpack.c.h.b16 %v979
    %v1028 = vpack.c.b16 %v998, %v996
    %v1029 = vpack.c.b16 %v999, %v997
    %v1030 = vpack.c.b16 %v1002, %v1000
    %v1031 = vpack.c.b16 %v1003, %v1001
    %v1032 = vpack.c.b16 %v1006, %v1004
    %v1033 = vpack.c.b16 %v1007, %v1005
    %v1034 = vpack.c.b16 %v1010, %v1008
    %v1035 = vpack.c.b16 %v1011, %v1009
    %v1036 = vpack.c.b16 %v1014, %v1012
    %v1037 = vpack.c.b16 %v1015, %v1013
    %v1038 = vpack.c.b16 %v1018, %v1016
    %v1039 = vpack.c.b16 %v1019, %v1017
    %v1040 = vpack.c.b16 %v1022, %v1020
    %v1041 = vpack.c.b16 %v1023, %v1021
    %v1042 = vpack.c.b16 %v1026, %v1024
    %v1043 = vpack.c.b16 %v1027, %v1025
    %1060 = vmatprep.subr.bf16.mxu0 %v1043
    %1061 = vmatpush1.bf16.msra.mxu0 %v1042
    %1062 = vmatprep.subr.bf16.mxu0 %v1041
    %1063 = vmatpush1.bf16.msra.mxu0 %v1040
    %1064 = vmatprep.subr.bf16.mxu0 %v1039
    %1065 = vmatpush1.bf16.msra.mxu0 %v1038
    %1066 = vmatprep.subr.bf16.mxu0 %v1037
    %1067 = vmatpush1.bf16.msra.mxu0 %v1036
    %1068 = vmatprep.subr.bf16.mxu0 %v1035
    %1069 = vmatpush1.bf16.msra.mxu0 %v1034
    %1070 = vmatprep.subr.bf16.mxu0 %v1033
    %1071 = vmatpush1.bf16.msra.mxu0 %v1032
    %1072 = vmatprep.subr.bf16.mxu0 %v1031
    %1073 = vmatpush1.bf16.msra.mxu0 %v1030
    %1074 = vmatprep.subr.bf16.mxu0 %v1029
    %1075 = vmatpush1.bf16.msra.mxu0 %v1028
    %1076 = vmatprep.subr.bf16.mxu0 0
    %1077 = vmatpush2.bf16.msra.mxu0 0
    %1078 = vmatprep.subr.bf16.mxu0 0
    %1079 = vmatpush2.bf16.msra.mxu0 0
    %1080 = vmatprep.subr.bf16.mxu0 0
    %1081 = vmatpush2.bf16.msra.mxu0 0
    %1082 = vmatprep.subr.bf16.mxu0 0
    %1083 = vmatpush2.bf16.msra.mxu0 0
    %1084 = vmatprep.subr.bf16.mxu0 0
    %1085 = vmatpush2.bf16.msra.mxu0 0
    %1086 = vmatprep.subr.bf16.mxu0 0
    %1087 = vmatpush2.bf16.msra.mxu0 0
    %1088 = vmatprep.subr.bf16.mxu0 0
    %1089 = vmatpush2.bf16.msra.mxu0 0
    %1090 = vmatprep.subr.bf16.mxu0 0
    %1091 = vmatpush2.bf16.msra.mxu0 0
    %1092 = vmatprep.mubr.bf16.mxu0 0
    %1093 = vmatmul.mubr.bf16.gmra.mxu0 %v947
    %v1094 = vpop.f32.mrf.mxu0
    %v1095 = vadd.f32 0.0, %v1094
    %v1096 = vpop.f32.mrf.mxu0
    %v1097 = vadd.f32 0.0, %v1096
    %v1098 = vpop.f32.mrf.mxu0
    %v1099 = vadd.f32 0.0, %v1098
    %v1100 = vpop.f32.mrf.mxu0
    %v1101 = vadd.f32 0.0, %v1100
    %1102 = vmatprep.mubr.bf16.mxu0 0
    %1103 = vmatmul.mubr.bf16.gmra.mxu0 %v948
    %v1104 = vpop.f32.mrf.mxu0
    %v1105 = vadd.f32 0.0, %v1104
    %v1106 = vpop.f32.mrf.mxu0
    %v1107 = vadd.f32 0.0, %v1106
    %v1108 = vpop.f32.mrf.mxu0
    %v1109 = vadd.f32 0.0, %v1108
    %v1110 = vpop.f32.mrf.mxu0
    %v1111 = vadd.f32 0.0, %v1110
    %1112 = vmatprep.mubr.bf16.mxu0 0
    %1113 = vmatmul.mubr.bf16.gmra.mxu0 %v949
    %v1114 = vpop.f32.mrf.mxu0
    %v1115 = vadd.f32 0.0, %v1114
    %v1116 = vpop.f32.mrf.mxu0
    %v1117 = vadd.f32 0.0, %v1116
    %v1118 = vpop.f32.mrf.mxu0
    %v1119 = vadd.f32 0.0, %v1118
    %v1120 = vpop.f32.mrf.mxu0
    %v1121 = vadd.f32 0.0, %v1120
    %1122 = vmatprep.mubr.bf16.mxu0 0
    %1123 = vmatmul.mubr.bf16.gmra.mxu0 %v950
    %v1124 = vpop.f32.mrf.mxu0
    %v1125 = vadd.f32 0.0, %v1124
    %v1126 = vpop.f32.mrf.mxu0
    %v1127 = vadd.f32 0.0, %v1126
    %v1128 = vpop.f32.mrf.mxu0
    %v1129 = vadd.f32 0.0, %v1128
    %v1130 = vpop.f32.mrf.mxu0
    %v1131 = vadd.f32 0.0, %v1130
    %1132 = vmatprep.mubr.bf16.mxu0 0
    %1133 = vmatmul.mubr.bf16.gmra.mxu0 %v951
    %v1134 = vpop.f32.mrf.mxu0
    %v1135 = vadd.f32 0.0, %v1134
    %v1136 = vpop.f32.mrf.mxu0
    %v1137 = vadd.f32 0.0, %v1136
    %v1138 = vpop.f32.mrf.mxu0
    %v1139 = vadd.f32 0.0, %v1138
    %v1140 = vpop.f32.mrf.mxu0
    %v1141 = vadd.f32 0.0, %v1140
    %1142 = vmatprep.mubr.bf16.mxu0 0
    %1143 = vmatmul.mubr.bf16.gmra.mxu0 %v952
    %v1144 = vpop.f32.mrf.mxu0
    %v1145 = vadd.f32 0.0, %v1144
    %v1146 = vpop.f32.mrf.mxu0
    %v1147 = vadd.f32 0.0, %v1146
    %v1148 = vpop.f32.mrf.mxu0
    %v1149 = vadd.f32 0.0, %v1148
    %v1150 = vpop.f32.mrf.mxu0
    %v1151 = vadd.f32 0.0, %v1150
    %1152 = vmatprep.mubr.bf16.mxu0 0
    %1153 = vmatmul.mubr.bf16.gmra.mxu0 %v953
    %v1154 = vpop.f32.mrf.mxu0
    %v1155 = vadd.f32 0.0, %v1154
    %v1156 = vpop.f32.mrf.mxu0
    %v1157 = vadd.f32 0.0, %v1156
    %v1158 = vpop.f32.mrf.mxu0
    %v1159 = vadd.f32 0.0, %v1158
    %v1160 = vpop.f32.mrf.mxu0
    %v1161 = vadd.f32 0.0, %v1160
    %1162 = vmatprep.mubr.bf16.mxu0 0
    %1163 = vmatmul.mubr.bf16.gmra.mxu0 %v954
    %v1164 = vpop.f32.mrf.mxu0
    %v1165 = vadd.f32 0.0, %v1164
    %v1166 = vpop.f32.mrf.mxu0
    %v1167 = vadd.f32 0.0, %v1166
    %v1168 = vpop.f32.mrf.mxu0
    %v1169 = vadd.f32 0.0, %v1168
    %v1170 = vpop.f32.mrf.mxu0
    %v1171 = vadd.f32 0.0, %v1170
    %1172 = vmatprep.mubr.bf16.mxu0 0
    %1173 = vmatmul.mubr.bf16.gmra.mxu0 %v955
    %v1174 = vpop.f32.mrf.mxu0
    %v1175 = vadd.f32 0.0, %v1174
    %v1176 = vpop.f32.mrf.mxu0
    %v1177 = vadd.f32 0.0, %v1176
    %v1178 = vpop.f32.mrf.mxu0
    %v1179 = vadd.f32 0.0, %v1178
    %v1180 = vpop.f32.mrf.mxu0
    %v1181 = vadd.f32 0.0, %v1180
    %1182 = vmatprep.mubr.bf16.mxu0 0
    %1183 = vmatmul.mubr.bf16.gmra.mxu0 %v956
    %v1184 = vpop.f32.mrf.mxu0
    %v1185 = vadd.f32 0.0, %v1184
    %v1186 = vpop.f32.mrf.mxu0
    %v1187 = vadd.f32 0.0, %v1186
    %v1188 = vpop.f32.mrf.mxu0
    %v1189 = vadd.f32 0.0, %v1188
    %v1190 = vpop.f32.mrf.mxu0
    %v1191 = vadd.f32 0.0, %v1190
    %1192 = vmatprep.mubr.bf16.mxu0 0
    %1193 = vmatmul.mubr.bf16.gmra.mxu0 %v957
    %v1194 = vpop.f32.mrf.mxu0
    %v1195 = vadd.f32 0.0, %v1194
    %v1196 = vpop.f32.mrf.mxu0
    %v1197 = vadd.f32 0.0, %v1196
    %v1198 = vpop.f32.mrf.mxu0
    %v1199 = vadd.f32 0.0, %v1198
    %v1200 = vpop.f32.mrf.mxu0
    %v1201 = vadd.f32 0.0, %v1200
    %1202 = vmatprep.mubr.bf16.mxu0 0
    %1203 = vmatmul.mubr.bf16.gmra.mxu0 %v958
    %v1204 = vpop.f32.mrf.mxu0
    %v1205 = vadd.f32 0.0, %v1204
    %v1206 = vpop.f32.mrf.mxu0
    %v1207 = vadd.f32 0.0, %v1206
    %v1208 = vpop.f32.mrf.mxu0
    %v1209 = vadd.f32 0.0, %v1208
    %v1210 = vpop.f32.mrf.mxu0
    %v1211 = vadd.f32 0.0, %v1210
    %1212 = vmatprep.mubr.bf16.mxu0 0
    %1213 = vmatmul.mubr.bf16.gmra.mxu0 %v959
    %v1214 = vpop.f32.mrf.mxu0
    %v1215 = vadd.f32 0.0, %v1214
    %v1216 = vpop.f32.mrf.mxu0
    %v1217 = vadd.f32 0.0, %v1216
    %v1218 = vpop.f32.mrf.mxu0
    %v1219 = vadd.f32 0.0, %v1218
    %v1220 = vpop.f32.mrf.mxu0
    %v1221 = vadd.f32 0.0, %v1220
    %1222 = vmatprep.mubr.bf16.mxu0 0
    %1223 = vmatmul.mubr.bf16.gmra.mxu0 %v960
    %v1224 = vpop.f32.mrf.mxu0
    %v1225 = vadd.f32 0.0, %v1224
    %v1226 = vpop.f32.mrf.mxu0
    %v1227 = vadd.f32 0.0, %v1226
    %v1228 = vpop.f32.mrf.mxu0
    %v1229 = vadd.f32 0.0, %v1228
    %v1230 = vpop.f32.mrf.mxu0
    %v1231 = vadd.f32 0.0, %v1230
    %1232 = vmatprep.mubr.bf16.mxu0 0
    %1233 = vmatmul.mubr.bf16.gmra.mxu0 %v961
    %v1234 = vpop.f32.mrf.mxu0
    %v1235 = vadd.f32 0.0, %v1234
    %v1236 = vpop.f32.mrf.mxu0
    %v1237 = vadd.f32 0.0, %v1236
    %v1238 = vpop.f32.mrf.mxu0
    %v1239 = vadd.f32 0.0, %v1238
    %v1240 = vpop.f32.mrf.mxu0
    %v1241 = vadd.f32 0.0, %v1240
    %1242 = vmatprep.mubr.bf16.mxu0 0
    %1243 = vmatmul.mubr.bf16.gmra.mxu0 %v962
    %v1244 = vpop.f32.mrf.mxu0
    %v1245 = vadd.f32 0.0, %v1244
    %v1246 = vpop.f32.mrf.mxu0
    %v1247 = vadd.f32 0.0, %v1246
    %v1248 = vpop.f32.mrf.mxu0
    %v1249 = vadd.f32 0.0, %v1248
    %v1250 = vpop.f32.mrf.mxu0
    %v1251 = vadd.f32 0.0, %v1250
    %1252 = vdwg.mxu0
    %v1254 = vunpack.c.l.b16 %v963
    %v1255 = vunpack.c.h.b16 %v963
    %v1256 = vpack.c.b16 %v1254, %v1254
    %v1257 = vpack.c.b16 %v1255, %v1255
    %v1259 = vsel %vm190, %v1256, 0
    %v1262 = vsel %vm190, %v1257, 0
    %1264 = vmatprep.subr.bf16.mxu0 0
    %1265 = vmatpush1.bf16.msra.mxu0 0
    %1266 = vmatprep.subr.bf16.mxu0 0
    %1267 = vmatpush1.bf16.msra.mxu0 0
    %1268 = vmatprep.subr.bf16.mxu0 0
    %1269 = vmatpush1.bf16.msra.mxu0 0
    %1270 = vmatprep.subr.bf16.mxu0 0
    %1271 = vmatpush1.bf16.msra.mxu0 0
    %1272 = vmatprep.subr.bf16.mxu0 0
    %1273 = vmatpush1.bf16.msra.mxu0 0
    %1274 = vmatprep.subr.bf16.mxu0 0
    %1275 = vmatpush1.bf16.msra.mxu0 0
    %1276 = vmatprep.subr.bf16.mxu0 0
    %1277 = vmatpush1.bf16.msra.mxu0 0
    %1278 = vmatprep.subr.bf16.mxu0 %v1262
    %1279 = vmatpush1.bf16.msra.mxu0 %v1259
    %1280 = vmatprep.subr.bf16.mxu0 0
    %1281 = vmatpush2.bf16.msra.mxu0 0
    %1282 = vmatprep.subr.bf16.mxu0 0
    %1283 = vmatpush2.bf16.msra.mxu0 0
    %1284 = vmatprep.subr.bf16.mxu0 0
    %1285 = vmatpush2.bf16.msra.mxu0 0
    %1286 = vmatprep.subr.bf16.mxu0 0
    %1287 = vmatpush2.bf16.msra.mxu0 0
    %1288 = vmatprep.subr.bf16.mxu0 0
    %1289 = vmatpush2.bf16.msra.mxu0 0
    %1290 = vmatprep.subr.bf16.mxu0 0
    %1291 = vmatpush2.bf16.msra.mxu0 0
    %1292 = vmatprep.subr.bf16.mxu0 0
    %1293 = vmatpush2.bf16.msra.mxu0 0
    %1294 = vmatprep.subr.bf16.mxu0 0
    %1295 = vmatpush2.bf16.msra.mxu0 0
    %1296 = vmatprep.mubr.bf16.mxu0 0
    %1297 = vmatmul.mubr.bf16.gmra.mxu0 %v143
    %v1298 = vpop.f32.mrf.mxu0
    %v1299 = vadd.f32 %v1095, %v1298
    %v1300 = vpop.f32.mrf.mxu0
    %v1301 = vadd.f32 %v1097, %v1300
    %v1302 = vpop.f32.mrf.mxu0
    %v1303 = vadd.f32 %v1099, %v1302
    %v1304 = vpop.f32.mrf.mxu0
    %v1305 = vadd.f32 %v1101, %v1304
    %1306 = vmatprep.mubr.bf16.mxu0 0
    %1307 = vmatmul.mubr.bf16.gmra.mxu0 %v146
    %v1308 = vpop.f32.mrf.mxu0
    %v1309 = vadd.f32 %v1105, %v1308
    %v1310 = vpop.f32.mrf.mxu0
    %v1311 = vadd.f32 %v1107, %v1310
    %v1312 = vpop.f32.mrf.mxu0
    %v1313 = vadd.f32 %v1109, %v1312
    %v1314 = vpop.f32.mrf.mxu0
    %v1315 = vadd.f32 %v1111, %v1314
    %1316 = vmatprep.mubr.bf16.mxu0 0
    %1317 = vmatmul.mubr.bf16.gmra.mxu0 %v149
    %v1318 = vpop.f32.mrf.mxu0
    %v1319 = vadd.f32 %v1115, %v1318
    %v1320 = vpop.f32.mrf.mxu0
    %v1321 = vadd.f32 %v1117, %v1320
    %v1322 = vpop.f32.mrf.mxu0
    %v1323 = vadd.f32 %v1119, %v1322
    %v1324 = vpop.f32.mrf.mxu0
    %v1325 = vadd.f32 %v1121, %v1324
    %1326 = vmatprep.mubr.bf16.mxu0 0
    %1327 = vmatmul.mubr.bf16.gmra.mxu0 %v152
    %v1328 = vpop.f32.mrf.mxu0
    %v1329 = vadd.f32 %v1125, %v1328
    %v1330 = vpop.f32.mrf.mxu0
    %v1331 = vadd.f32 %v1127, %v1330
    %v1332 = vpop.f32.mrf.mxu0
    %v1333 = vadd.f32 %v1129, %v1332
    %v1334 = vpop.f32.mrf.mxu0
    %v1335 = vadd.f32 %v1131, %v1334
    %1336 = vmatprep.mubr.bf16.mxu0 0
    %1337 = vmatmul.mubr.bf16.gmra.mxu0 %v155
    %v1338 = vpop.f32.mrf.mxu0
    %v1339 = vadd.f32 %v1135, %v1338
    %v1340 = vpop.f32.mrf.mxu0
    %v1341 = vadd.f32 %v1137, %v1340
    %v1342 = vpop.f32.mrf.mxu0
    %v1343 = vadd.f32 %v1139, %v1342
    %v1344 = vpop.f32.mrf.mxu0
    %v1345 = vadd.f32 %v1141, %v1344
    %1346 = vmatprep.mubr.bf16.mxu0 0
    %1347 = vmatmul.mubr.bf16.gmra.mxu0 %v158
    %v1348 = vpop.f32.mrf.mxu0
    %v1349 = vadd.f32 %v1145, %v1348
    %v1350 = vpop.f32.mrf.mxu0
    %v1351 = vadd.f32 %v1147, %v1350
    %v1352 = vpop.f32.mrf.mxu0
    %v1353 = vadd.f32 %v1149, %v1352
    %v1354 = vpop.f32.mrf.mxu0
    %v1355 = vadd.f32 %v1151, %v1354
    %1356 = vmatprep.mubr.bf16.mxu0 0
    %1357 = vmatmul.mubr.bf16.gmra.mxu0 %v161
    %v1358 = vpop.f32.mrf.mxu0
    %v1359 = vadd.f32 %v1155, %v1358
    %v1360 = vpop.f32.mrf.mxu0
    %v1361 = vadd.f32 %v1157, %v1360
    %v1362 = vpop.f32.mrf.mxu0
    %v1363 = vadd.f32 %v1159, %v1362
    %v1364 = vpop.f32.mrf.mxu0
    %v1365 = vadd.f32 %v1161, %v1364
    %1366 = vmatprep.mubr.bf16.mxu0 0
    %1367 = vmatmul.mubr.bf16.gmra.mxu0 %v164
    %v1368 = vpop.f32.mrf.mxu0
    %v1369 = vadd.f32 %v1165, %v1368
    %v1370 = vpop.f32.mrf.mxu0
    %v1371 = vadd.f32 %v1167, %v1370
    %v1372 = vpop.f32.mrf.mxu0
    %v1373 = vadd.f32 %v1169, %v1372
    %v1374 = vpop.f32.mrf.mxu0
    %v1375 = vadd.f32 %v1171, %v1374
    %1376 = vmatprep.mubr.bf16.mxu0 0
    %1377 = vmatmul.mubr.bf16.gmra.mxu0 %v167
    %v1378 = vpop.f32.mrf.mxu0
    %v1379 = vadd.f32 %v1175, %v1378
    %v1380 = vpop.f32.mrf.mxu0
    %v1381 = vadd.f32 %v1177, %v1380
    %v1382 = vpop.f32.mrf.mxu0
    %v1383 = vadd.f32 %v1179, %v1382
    %v1384 = vpop.f32.mrf.mxu0
    %v1385 = vadd.f32 %v1181, %v1384
    %1386 = vmatprep.mubr.bf16.mxu0 0
    %1387 = vmatmul.mubr.bf16.gmra.mxu0 %v170
    %v1388 = vpop.f32.mrf.mxu0
    %v1389 = vadd.f32 %v1185, %v1388
    %v1390 = vpop.f32.mrf.mxu0
    %v1391 = vadd.f32 %v1187, %v1390
    %v1392 = vpop.f32.mrf.mxu0
    %v1393 = vadd.f32 %v1189, %v1392
    %v1394 = vpop.f32.mrf.mxu0
    %v1395 = vadd.f32 %v1191, %v1394
    %1396 = vmatprep.mubr.bf16.mxu0 0
    %1397 = vmatmul.mubr.bf16.gmra.mxu0 %v173
    %v1398 = vpop.f32.mrf.mxu0
    %v1399 = vadd.f32 %v1195, %v1398
    %v1400 = vpop.f32.mrf.mxu0
    %v1401 = vadd.f32 %v1197, %v1400
    %v1402 = vpop.f32.mrf.mxu0
    %v1403 = vadd.f32 %v1199, %v1402
    %v1404 = vpop.f32.mrf.mxu0
    %v1405 = vadd.f32 %v1201, %v1404
    %1406 = vmatprep.mubr.bf16.mxu0 0
    %1407 = vmatmul.mubr.bf16.gmra.mxu0 %v176
    %v1408 = vpop.f32.mrf.mxu0
    %v1409 = vadd.f32 %v1205, %v1408
    %v1410 = vpop.f32.mrf.mxu0
    %v1411 = vadd.f32 %v1207, %v1410
    %v1412 = vpop.f32.mrf.mxu0
    %v1413 = vadd.f32 %v1209, %v1412
    %v1414 = vpop.f32.mrf.mxu0
    %v1415 = vadd.f32 %v1211, %v1414
    %1416 = vmatprep.mubr.bf16.mxu0 0
    %1417 = vmatmul.mubr.bf16.gmra.mxu0 %v179
    %v1418 = vpop.f32.mrf.mxu0
    %v1419 = vadd.f32 %v1215, %v1418
    %v1420 = vpop.f32.mrf.mxu0
    %v1421 = vadd.f32 %v1217, %v1420
    %v1422 = vpop.f32.mrf.mxu0
    %v1423 = vadd.f32 %v1219, %v1422
    %v1424 = vpop.f32.mrf.mxu0
    %v1425 = vadd.f32 %v1221, %v1424
    %1426 = vmatprep.mubr.bf16.mxu0 0
    %1427 = vmatmul.mubr.bf16.gmra.mxu0 %v182
    %v1428 = vpop.f32.mrf.mxu0
    %v1429 = vadd.f32 %v1225, %v1428
    %v1430 = vpop.f32.mrf.mxu0
    %v1431 = vadd.f32 %v1227, %v1430
    %v1432 = vpop.f32.mrf.mxu0
    %v1433 = vadd.f32 %v1229, %v1432
    %v1434 = vpop.f32.mrf.mxu0
    %v1435 = vadd.f32 %v1231, %v1434
    %1436 = vmatprep.mubr.bf16.mxu0 0
    %1437 = vmatmul.mubr.bf16.gmra.mxu0 %v185
    %v1438 = vpop.f32.mrf.mxu0
    %v1439 = vadd.f32 %v1235, %v1438
    %v1440 = vpop.f32.mrf.mxu0
    %v1441 = vadd.f32 %v1237, %v1440
    %v1442 = vpop.f32.mrf.mxu0
    %v1443 = vadd.f32 %v1239, %v1442
    %v1444 = vpop.f32.mrf.mxu0
    %v1445 = vadd.f32 %v1241, %v1444
    %1446 = vmatprep.mubr.bf16.mxu0 0
    %1447 = vmatmul.mubr.bf16.gmra.mxu0 %v188
    %v1448 = vpop.f32.mrf.mxu0
    %v1449 = vadd.f32 %v1245, %v1448
    %v1450 = vpop.f32.mrf.mxu0
    %v1451 = vadd.f32 %v1247, %v1450
    %v1452 = vpop.f32.mrf.mxu0
    %v1453 = vadd.f32 %v1249, %v1452
    %v1454 = vpop.f32.mrf.mxu0
    %v1455 = vadd.f32 %v1251, %v1454
    %1456 = vdwg.mxu0
    %v1457 = vld [vmem:[%s10] sm:$0x3]
    %v1459 = vlaneseq
    %v1460 = vshrl.u32 %v1459, 7
    %v1461 = vsub.s32 0, %v1460
    %v1462 = vrot.slane %v1457, %v1461
    %v1463 = vlaneseq
    %v1464 = vshrl.u32 %v1463, 7
    %v1465 = vsub.s32 1, %v1464
    %v1466 = vrot.slane %v1457, %v1465
    %v1469 = vadd.f32 %v1299, %v1462
    %v1470 = vadd.f32 %v1301, %v1466
    %v1471 = vadd.f32 %v1303, %v1462
    %v1472 = vadd.f32 %v1305, %v1466
    %v1473 = vadd.f32 %v1309, %v1462
    %v1474 = vadd.f32 %v1311, %v1466
    %v1475 = vadd.f32 %v1313, %v1462
    %v1476 = vadd.f32 %v1315, %v1466
    %v1477 = vadd.f32 %v1319, %v1462
    %v1478 = vadd.f32 %v1321, %v1466
    %v1479 = vadd.f32 %v1323, %v1462
    %v1480 = vadd.f32 %v1325, %v1466
    %v1481 = vadd.f32 %v1329, %v1462
    %v1482 = vadd.f32 %v1331, %v1466
    %v1483 = vadd.f32 %v1333, %v1462
    %v1484 = vadd.f32 %v1335, %v1466
    %v1485 = vadd.f32 %v1339, %v1462
    %v1486 = vadd.f32 %v1341, %v1466
    %v1487 = vadd.f32 %v1343, %v1462
    %v1488 = vadd.f32 %v1345, %v1466
    %v1489 = vadd.f32 %v1349, %v1462
    %v1490 = vadd.f32 %v1351, %v1466
    %v1491 = vadd.f32 %v1353, %v1462
    %v1492 = vadd.f32 %v1355, %v1466
    %v1493 = vadd.f32 %v1359, %v1462
    %v1494 = vadd.f32 %v1361, %v1466
    %v1495 = vadd.f32 %v1363, %v1462
    %v1496 = vadd.f32 %v1365, %v1466
    %v1497 = vadd.f32 %v1369, %v1462
    %v1498 = vadd.f32 %v1371, %v1466
    %v1499 = vadd.f32 %v1373, %v1462
    %v1500 = vadd.f32 %v1375, %v1466
    %v1501 = vadd.f32 %v1379, %v1462
    %v1502 = vadd.f32 %v1381, %v1466
    %v1503 = vadd.f32 %v1383, %v1462
    %v1504 = vadd.f32 %v1385, %v1466
    %v1505 = vadd.f32 %v1389, %v1462
    %v1506 = vadd.f32 %v1391, %v1466
    %v1507 = vadd.f32 %v1393, %v1462
    %v1508 = vadd.f32 %v1395, %v1466
    %v1509 = vadd.f32 %v1399, %v1462
    %v1510 = vadd.f32 %v1401, %v1466
    %v1511 = vadd.f32 %v1403, %v1462
    %v1512 = vadd.f32 %v1405, %v1466
    %v1513 = vadd.f32 %v1409, %v1462
    %v1514 = vadd.f32 %v1411, %v1466
    %v1515 = vadd.f32 %v1413, %v1462
    %v1516 = vadd.f32 %v1415, %v1466
    %v1517 = vadd.f32 %v1419, %v1462
    %v1518 = vadd.f32 %v1421, %v1466
    %v1519 = vadd.f32 %v1423, %v1462
    %v1520 = vadd.f32 %v1425, %v1466
    %v1521 = vadd.f32 %v1429, %v1462
    %v1522 = vadd.f32 %v1431, %v1466
    %v1523 = vadd.f32 %v1433, %v1462
    %v1524 = vadd.f32 %v1435, %v1466
    %v1525 = vadd.f32 %v1439, %v1462
    %v1526 = vadd.f32 %v1441, %v1466
    %v1527 = vadd.f32 %v1443, %v1462
    %v1528 = vadd.f32 %v1445, %v1466
    %v1529 = vadd.f32 %v1449, %v1462
    %v1530 = vadd.f32 %v1451, %v1466
    %v1531 = vadd.f32 %v1453, %v1462
    %v1532 = vadd.f32 %v1455, %v1466
    %v1533 = vmax.f32 %v1469, 0.0
    %v1534 = vmax.f32 %v1470, 0.0
    %v1535 = vmax.f32 %v1471, 0.0
    %v1536 = vmax.f32 %v1472, 0.0
    %v1537 = vmax.f32 %v1473, 0.0
    %v1538 = vmax.f32 %v1474, 0.0
    %v1539 = vmax.f32 %v1475, 0.0
    %v1540 = vmax.f32 %v1476, 0.0
    %v1541 = vmax.f32 %v1477, 0.0
    %v1542 = vmax.f32 %v1478, 0.0
    %v1543 = vmax.f32 %v1479, 0.0
    %v1544 = vmax.f32 %v1480, 0.0
    %v1545 = vmax.f32 %v1481, 0.0
    %v1546 = vmax.f32 %v1482, 0.0
    %v1547 = vmax.f32 %v1483, 0.0
    %v1548 = vmax.f32 %v1484, 0.0
    %v1549 = vmax.f32 %v1485, 0.0
    %v1550 = vmax.f32 %v1486, 0.0
    %v1551 = vmax.f32 %v1487, 0.0
    %v1552 = vmax.f32 %v1488, 0.0
    %v1553 = vmax.f32 %v1489, 0.0
    %v1554 = vmax.f32 %v1490, 0.0
    %v1555 = vmax.f32 %v1491, 0.0
    %v1556 = vmax.f32 %v1492, 0.0
    %v1557 = vmax.f32 %v1493, 0.0
    %v1558 = vmax.f32 %v1494, 0.0
    %v1559 = vmax.f32 %v1495, 0.0
    %v1560 = vmax.f32 %v1496, 0.0
    %v1561 = vmax.f32 %v1497, 0.0
    %v1562 = vmax.f32 %v1498, 0.0
    %v1563 = vmax.f32 %v1499, 0.0
    %v1564 = vmax.f32 %v1500, 0.0
    %v1565 = vmax.f32 %v1501, 0.0
    %v1566 = vmax.f32 %v1502, 0.0
    %v1567 = vmax.f32 %v1503, 0.0
    %v1568 = vmax.f32 %v1504, 0.0
    %v1569 = vmax.f32 %v1505, 0.0
    %v1570 = vmax.f32 %v1506, 0.0
    %v1571 = vmax.f32 %v1507, 0.0
    %v1572 = vmax.f32 %v1508, 0.0
    %v1573 = vmax.f32 %v1509, 0.0
    %v1574 = vmax.f32 %v1510, 0.0
    %v1575 = vmax.f32 %v1511, 0.0
    %v1576 = vmax.f32 %v1512, 0.0
    %v1577 = vmax.f32 %v1513, 0.0
    %v1578 = vmax.f32 %v1514, 0.0
    %v1579 = vmax.f32 %v1515, 0.0
    %v1580 = vmax.f32 %v1516, 0.0
    %v1581 = vmax.f32 %v1517, 0.0
    %v1582 = vmax.f32 %v1518, 0.0
    %v1583 = vmax.f32 %v1519, 0.0
    %v1584 = vmax.f32 %v1520, 0.0
    %v1585 = vmax.f32 %v1521, 0.0
    %v1586 = vmax.f32 %v1522, 0.0
    %v1587 = vmax.f32 %v1523, 0.0
    %v1588 = vmax.f32 %v1524, 0.0
    %v1589 = vmax.f32 %v1525, 0.0
    %v1590 = vmax.f32 %v1526, 0.0
    %v1591 = vmax.f32 %v1527, 0.0
    %v1592 = vmax.f32 %v1528, 0.0
    %v1593 = vmax.f32 %v1529, 0.0
    %v1594 = vmax.f32 %v1530, 0.0
    %v1595 = vmax.f32 %v1531, 0.0
    %v1596 = vmax.f32 %v1532, 0.0
    %v1597 = vpack.c.bf16 %v1535, %v1533
    %v1598 = vpack.c.bf16 %v1536, %v1534
    %v1599 = vpack.c.bf16 %v1539, %v1537
    %v1600 = vpack.c.bf16 %v1540, %v1538
    %v1601 = vpack.c.bf16 %v1543, %v1541
    %v1602 = vpack.c.bf16 %v1544, %v1542
    %v1603 = vpack.c.bf16 %v1547, %v1545
    %v1604 = vpack.c.bf16 %v1548, %v1546
    %v1605 = vpack.c.bf16 %v1551, %v1549
    %v1606 = vpack.c.bf16 %v1552, %v1550
    %v1607 = vpack.c.bf16 %v1555, %v1553
    %v1608 = vpack.c.bf16 %v1556, %v1554
    %v1609 = vpack.c.bf16 %v1559, %v1557
    %v1610 = vpack.c.bf16 %v1560, %v1558
    %v1611 = vpack.c.bf16 %v1563, %v1561
    %v1612 = vpack.c.bf16 %v1564, %v1562
    %v1613 = vpack.c.bf16 %v1567, %v1565
    %v1614 = vpack.c.bf16 %v1568, %v1566
    %v1615 = vpack.c.bf16 %v1571, %v1569
    %v1616 = vpack.c.bf16 %v1572, %v1570
    %v1617 = vpack.c.bf16 %v1575, %v1573
    %v1618 = vpack.c.bf16 %v1576, %v1574
    %v1619 = vpack.c.bf16 %v1579, %v1577
    %v1620 = vpack.c.bf16 %v1580, %v1578
    %v1621 = vpack.c.bf16 %v1583, %v1581
    %v1622 = vpack.c.bf16 %v1584, %v1582
    %v1623 = vpack.c.bf16 %v1587, %v1585
    %v1624 = vpack.c.bf16 %v1588, %v1586
    %v1625 = vpack.c.bf16 %v1591, %v1589
    %v1626 = vpack.c.bf16 %v1592, %v1590
    %v1627 = vpack.c.bf16 %v1595, %v1593
    %v1628 = vpack.c.bf16 %v1596, %v1594
    %v1629 = vld [vmem:[%s11] sm:$0xff]
    %v1630 = vld [vmem:[%s11 + $0x8] sm:$0xff]
    %v1631 = vld [vmem:[%s11 + $0x10] sm:$0xff]
    %v1632 = vld [vmem:[%s11 + $0x18] sm:$0xff]
    %v1633 = vld [vmem:[%s11 + $0x20] sm:$0xff]
    %v1634 = vld [vmem:[%s11 + $0x28] sm:$0xff]
    %v1635 = vld [vmem:[%s11 + $0x30] sm:$0xff]
    %v1636 = vld [vmem:[%s11 + $0x38] sm:$0xff]
    %v1637 = vld [vmem:[%s11 + $0x40] sm:$0xff]
    %v1638 = vld [vmem:[%s11 + $0x48] sm:$0xff]
    %v1639 = vld [vmem:[%s11 + $0x50] sm:$0xff]
    %v1640 = vld [vmem:[%s11 + $0x58] sm:$0xff]
    %v1641 = vld [vmem:[%s11 + $0x60] sm:$0xff]
    %v1642 = vld [vmem:[%s11 + $0x68] sm:$0xff]
    %v1643 = vld [vmem:[%s11 + $0x70] sm:$0xff]
    %v1644 = vld [vmem:[%s11 + $0x78] sm:$0xff]
    %v1645 = vld [vmem:[%s11 + $0x80] sm:$0xff]
    %v1646 = vld [vmem:[%s11 + $0x88] sm:$0xff]
    %v1647 = vld [vmem:[%s11 + $0x90] sm:$0xff]
    %v1648 = vld [vmem:[%s11 + $0x98] sm:$0xff]
    %v1649 = vld [vmem:[%s11 + $0xa0] sm:$0xff]
    %v1650 = vld [vmem:[%s11 + $0xa8] sm:$0xff]
    %v1651 = vld [vmem:[%s11 + $0xb0] sm:$0xff]
    %v1652 = vld [vmem:[%s11 + $0xb8] sm:$0xff]
    %v1653 = vld [vmem:[%s11 + $0xc0] sm:$0xff]
    %v1654 = vld [vmem:[%s11 + $0xc8] sm:$0xff]
    %v1655 = vld [vmem:[%s11 + $0xd0] sm:$0xff]
    %v1656 = vld [vmem:[%s11 + $0xd8] sm:$0xff]
    %v1657 = vld [vmem:[%s11 + $0xe0] sm:$0xff]
    %v1658 = vld [vmem:[%s11 + $0xe8] sm:$0xff]
    %v1659 = vld [vmem:[%s11 + $0xf0] sm:$0xff]
    %v1660 = vld [vmem:[%s11 + $0xf8] sm:$0xff]
    %v1661 = vld [vmem:[%s12] sm:$0x3]
    %v1663 = vlaneseq
    %v1664 = vshrl.u32 %v1663, 7
    %v1665 = vsub.s32 0, %v1664
    %v1666 = vrot.slane %v1661, %v1665
    %v1667 = vlaneseq
    %v1668 = vshrl.u32 %v1667, 7
    %v1669 = vsub.s32 1, %v1668
    %v1670 = vrot.slane %v1661, %v1669
    %v1705 = vunpack.c.l.b16 %v1629
    %v1706 = vunpack.c.h.b16 %v1629
    %v1707 = vunpack.c.l.b16 %v1630
    %v1708 = vunpack.c.h.b16 %v1630
    %v1709 = vunpack.c.l.b16 %v1631
    %v1710 = vunpack.c.h.b16 %v1631
    %v1711 = vunpack.c.l.b16 %v1632
    %v1712 = vunpack.c.h.b16 %v1632
    %v1713 = vunpack.c.l.b16 %v1633
    %v1714 = vunpack.c.h.b16 %v1633
    %v1715 = vunpack.c.l.b16 %v1634
    %v1716 = vunpack.c.h.b16 %v1634
    %v1717 = vunpack.c.l.b16 %v1635
    %v1718 = vunpack.c.h.b16 %v1635
    %v1719 = vunpack.c.l.b16 %v1636
    %v1720 = vunpack.c.h.b16 %v1636
    %v1721 = vunpack.c.l.b16 %v1637
    %v1722 = vunpack.c.h.b16 %v1637
    %v1723 = vunpack.c.l.b16 %v1638
    %v1724 = vunpack.c.h.b16 %v1638
    %v1725 = vunpack.c.l.b16 %v1639
    %v1726 = vunpack.c.h.b16 %v1639
    %v1727 = vunpack.c.l.b16 %v1640
    %v1728 = vunpack.c.h.b16 %v1640
    %v1729 = vunpack.c.l.b16 %v1641
    %v1730 = vunpack.c.h.b16 %v1641
    %v1731 = vunpack.c.l.b16 %v1642
    %v1732 = vunpack.c.h.b16 %v1642
    %v1733 = vunpack.c.l.b16 %v1643
    %v1734 = vunpack.c.h.b16 %v1643
    %v1735 = vunpack.c.l.b16 %v1644
    %v1736 = vunpack.c.h.b16 %v1644
    %v1737 = vunpack.c.l.b16 %v1645
    %v1738 = vunpack.c.h.b16 %v1645
    %v1739 = vunpack.c.l.b16 %v1646
    %v1740 = vunpack.c.h.b16 %v1646
    %v1741 = vunpack.c.l.b16 %v1647
    %v1742 = vunpack.c.h.b16 %v1647
    %v1743 = vunpack.c.l.b16 %v1648
    %v1744 = vunpack.c.h.b16 %v1648
    %v1745 = vunpack.c.l.b16 %v1649
    %v1746 = vunpack.c.h.b16 %v1649
    %v1747 = vunpack.c.l.b16 %v1650
    %v1748 = vunpack.c.h.b16 %v1650
    %v1749 = vunpack.c.l.b16 %v1651
    %v1750 = vunpack.c.h.b16 %v1651
    %v1751 = vunpack.c.l.b16 %v1652
    %v1752 = vunpack.c.h.b16 %v1652
    %v1753 = vunpack.c.l.b16 %v1653
    %v1754 = vunpack.c.h.b16 %v1653
    %v1755 = vunpack.c.l.b16 %v1654
    %v1756 = vunpack.c.h.b16 %v1654
    %v1757 = vunpack.c.l.b16 %v1655
    %v1758 = vunpack.c.h.b16 %v1655
    %v1759 = vunpack.c.l.b16 %v1656
    %v1760 = vunpack.c.h.b16 %v1656
    %v1761 = vunpack.c.l.b16 %v1657
    %v1762 = vunpack.c.h.b16 %v1657
    %v1763 = vunpack.c.l.b16 %v1658
    %v1764 = vunpack.c.h.b16 %v1658
    %v1765 = vunpack.c.l.b16 %v1659
    %v1766 = vunpack.c.h.b16 %v1659
    %v1767 = vunpack.c.l.b16 %v1660
    %v1768 = vunpack.c.h.b16 %v1660
    %v1769 = vpack.c.b16 %v1707, %v1705
    %v1770 = vpack.c.b16 %v1708, %v1706
    %v1771 = vpack.c.b16 %v1711, %v1709
    %v1772 = vpack.c.b16 %v1712, %v1710
    %v1773 = vpack.c.b16 %v1715, %v1713
    %v1774 = vpack.c.b16 %v1716, %v1714
    %v1775 = vpack.c.b16 %v1719, %v1717
    %v1776 = vpack.c.b16 %v1720, %v1718
    %v1777 = vpack.c.b16 %v1723, %v1721
    %v1778 = vpack.c.b16 %v1724, %v1722
    %v1779 = vpack.c.b16 %v1727, %v1725
    %v1780 = vpack.c.b16 %v1728, %v1726
    %v1781 = vpack.c.b16 %v1731, %v1729
    %v1782 = vpack.c.b16 %v1732, %v1730
    %v1783 = vpack.c.b16 %v1735, %v1733
    %v1784 = vpack.c.b16 %v1736, %v1734
    %v1785 = vpack.c.b16 %v1739, %v1737
    %v1786 = vpack.c.b16 %v1740, %v1738
    %v1787 = vpack.c.b16 %v1743, %v1741
    %v1788 = vpack.c.b16 %v1744, %v1742
    %v1789 = vpack.c.b16 %v1747, %v1745
    %v1790 = vpack.c.b16 %v1748, %v1746
    %v1791 = vpack.c.b16 %v1751, %v1749
    %v1792 = vpack.c.b16 %v1752, %v1750
    %v1793 = vpack.c.b16 %v1755, %v1753
    %v1794 = vpack.c.b16 %v1756, %v1754
    %v1795 = vpack.c.b16 %v1759, %v1757
    %v1796 = vpack.c.b16 %v1760, %v1758
    %v1797 = vpack.c.b16 %v1763, %v1761
    %v1798 = vpack.c.b16 %v1764, %v1762
    %v1799 = vpack.c.b16 %v1767, %v1765
    %v1800 = vpack.c.b16 %v1768, %v1766
    %1833 = vmatprep.subr.bf16.mxu0 %v1784
    %1834 = vmatpush1.bf16.msra.mxu0 %v1783
    %1835 = vmatprep.subr.bf16.mxu0 %v1782
    %1836 = vmatpush1.bf16.msra.mxu0 %v1781
    %1837 = vmatprep.subr.bf16.mxu0 %v1780
    %1838 = vmatpush1.bf16.msra.mxu0 %v1779
    %1839 = vmatprep.subr.bf16.mxu0 %v1778
    %1840 = vmatpush1.bf16.msra.mxu0 %v1777
    %1841 = vmatprep.subr.bf16.mxu0 %v1776
    %1842 = vmatpush1.bf16.msra.mxu0 %v1775
    %1843 = vmatprep.subr.bf16.mxu0 %v1774
    %1844 = vmatpush1.bf16.msra.mxu0 %v1773
    %1845 = vmatprep.subr.bf16.mxu0 %v1772
    %1846 = vmatpush1.bf16.msra.mxu0 %v1771
    %1847 = vmatprep.subr.bf16.mxu0 %v1770
    %1848 = vmatpush1.bf16.msra.mxu0 %v1769
    %1849 = vmatprep.subr.bf16.mxu0 %v1800
    %1850 = vmatpush2.bf16.msra.mxu0 %v1799
    %1851 = vmatprep.subr.bf16.mxu0 %v1798
    %1852 = vmatpush2.bf16.msra.mxu0 %v1797
    %1853 = vmatprep.subr.bf16.mxu0 %v1796
    %1854 = vmatpush2.bf16.msra.mxu0 %v1795
    %1855 = vmatprep.subr.bf16.mxu0 %v1794
    %1856 = vmatpush2.bf16.msra.mxu0 %v1793
    %1857 = vmatprep.subr.bf16.mxu0 %v1792
    %1858 = vmatpush2.bf16.msra.mxu0 %v1791
    %1859 = vmatprep.subr.bf16.mxu0 %v1790
    %1860 = vmatpush2.bf16.msra.mxu0 %v1789
    %1861 = vmatprep.subr.bf16.mxu0 %v1788
    %1862 = vmatpush2.bf16.msra.mxu0 %v1787
    %1863 = vmatprep.subr.bf16.mxu0 %v1786
    %1864 = vmatpush2.bf16.msra.mxu0 %v1785
    %1865 = vmatprep.mubr.bf16.mxu0 %v1598
    %1866 = vmatmul.mubr.bf16.gmra.mxu0 %v1597
    %v1867 = vpop.f32.mrf.mxu0
    %v1868 = vadd.f32 %v1666, %v1867
    %v1869 = vpop.f32.mrf.mxu0
    %v1870 = vadd.f32 %v1670, %v1869
    %v1871 = vpop.f32.mrf.mxu0
    %v1872 = vadd.f32 %v1666, %v1871
    %v1873 = vpop.f32.mrf.mxu0
    %v1874 = vadd.f32 %v1670, %v1873
    %1875 = vmatprep.mubr.bf16.mxu0 %v1600
    %1876 = vmatmul.mubr.bf16.gmra.mxu0 %v1599
    %v1877 = vpop.f32.mrf.mxu0
    %v1878 = vadd.f32 %v1666, %v1877
    %v1879 = vpop.f32.mrf.mxu0
    %v1880 = vadd.f32 %v1670, %v1879
    %v1881 = vpop.f32.mrf.mxu0
    %v1882 = vadd.f32 %v1666, %v1881
    %v1883 = vpop.f32.mrf.mxu0
    %v1884 = vadd.f32 %v1670, %v1883
    %1885 = vmatprep.mubr.bf16.mxu0 %v1602
    %1886 = vmatmul.mubr.bf16.gmra.mxu0 %v1601
    %v1887 = vpop.f32.mrf.mxu0
    %v1888 = vadd.f32 %v1666, %v1887
    %v1889 = vpop.f32.mrf.mxu0
    %v1890 = vadd.f32 %v1670, %v1889
    %v1891 = vpop.f32.mrf.mxu0
    %v1892 = vadd.f32 %v1666, %v1891
    %v1893 = vpop.f32.mrf.mxu0
    %v1894 = vadd.f32 %v1670, %v1893
    %1895 = vmatprep.mubr.bf16.mxu0 %v1604
    %1896 = vmatmul.mubr.bf16.gmra.mxu0 %v1603
    %v1897 = vpop.f32.mrf.mxu0
    %v1898 = vadd.f32 %v1666, %v1897
    %v1899 = vpop.f32.mrf.mxu0
    %v1900 = vadd.f32 %v1670, %v1899
    %v1901 = vpop.f32.mrf.mxu0
    %v1902 = vadd.f32 %v1666, %v1901
    %v1903 = vpop.f32.mrf.mxu0
    %v1904 = vadd.f32 %v1670, %v1903
    %1905 = vmatprep.mubr.bf16.mxu0 %v1606
    %1906 = vmatmul.mubr.bf16.gmra.mxu0 %v1605
    %v1907 = vpop.f32.mrf.mxu0
    %v1908 = vadd.f32 %v1666, %v1907
    %v1909 = vpop.f32.mrf.mxu0
    %v1910 = vadd.f32 %v1670, %v1909
    %v1911 = vpop.f32.mrf.mxu0
    %v1912 = vadd.f32 %v1666, %v1911
    %v1913 = vpop.f32.mrf.mxu0
    %v1914 = vadd.f32 %v1670, %v1913
    %1915 = vmatprep.mubr.bf16.mxu0 %v1608
    %1916 = vmatmul.mubr.bf16.gmra.mxu0 %v1607
    %v1917 = vpop.f32.mrf.mxu0
    %v1918 = vadd.f32 %v1666, %v1917
    %v1919 = vpop.f32.mrf.mxu0
    %v1920 = vadd.f32 %v1670, %v1919
    %v1921 = vpop.f32.mrf.mxu0
    %v1922 = vadd.f32 %v1666, %v1921
    %v1923 = vpop.f32.mrf.mxu0
    %v1924 = vadd.f32 %v1670, %v1923
    %1925 = vmatprep.mubr.bf16.mxu0 %v1610
    %1926 = vmatmul.mubr.bf16.gmra.mxu0 %v1609
    %v1927 = vpop.f32.mrf.mxu0
    %v1928 = vadd.f32 %v1666, %v1927
    %v1929 = vpop.f32.mrf.mxu0
    %v1930 = vadd.f32 %v1670, %v1929
    %v1931 = vpop.f32.mrf.mxu0
    %v1932 = vadd.f32 %v1666, %v1931
    %v1933 = vpop.f32.mrf.mxu0
    %v1934 = vadd.f32 %v1670, %v1933
    %1935 = vmatprep.mubr.bf16.mxu0 %v1612
    %1936 = vmatmul.mubr.bf16.gmra.mxu0 %v1611
    %v1937 = vpop.f32.mrf.mxu0
    %v1938 = vadd.f32 %v1666, %v1937
    %v1939 = vpop.f32.mrf.mxu0
    %v1940 = vadd.f32 %v1670, %v1939
    %v1941 = vpop.f32.mrf.mxu0
    %v1942 = vadd.f32 %v1666, %v1941
    %v1943 = vpop.f32.mrf.mxu0
    %v1944 = vadd.f32 %v1670, %v1943
    %1945 = vmatprep.mubr.bf16.mxu0 %v1614
    %1946 = vmatmul.mubr.bf16.gmra.mxu0 %v1613
    %v1947 = vpop.f32.mrf.mxu0
    %v1948 = vadd.f32 %v1666, %v1947
    %v1949 = vpop.f32.mrf.mxu0
    %v1950 = vadd.f32 %v1670, %v1949
    %v1951 = vpop.f32.mrf.mxu0
    %v1952 = vadd.f32 %v1666, %v1951
    %v1953 = vpop.f32.mrf.mxu0
    %v1954 = vadd.f32 %v1670, %v1953
    %1955 = vmatprep.mubr.bf16.mxu0 %v1616
    %1956 = vmatmul.mubr.bf16.gmra.mxu0 %v1615
    %v1957 = vpop.f32.mrf.mxu0
    %v1958 = vadd.f32 %v1666, %v1957
    %v1959 = vpop.f32.mrf.mxu0
    %v1960 = vadd.f32 %v1670, %v1959
    %v1961 = vpop.f32.mrf.mxu0
    %v1962 = vadd.f32 %v1666, %v1961
    %v1963 = vpop.f32.mrf.mxu0
    %v1964 = vadd.f32 %v1670, %v1963
    %1965 = vmatprep.mubr.bf16.mxu0 %v1618
    %1966 = vmatmul.mubr.bf16.gmra.mxu0 %v1617
    %v1967 = vpop.f32.mrf.mxu0
    %v1968 = vadd.f32 %v1666, %v1967
    %v1969 = vpop.f32.mrf.mxu0
    %v1970 = vadd.f32 %v1670, %v1969
    %v1971 = vpop.f32.mrf.mxu0
    %v1972 = vadd.f32 %v1666, %v1971
    %v1973 = vpop.f32.mrf.mxu0
    %v1974 = vadd.f32 %v1670, %v1973
    %1975 = vmatprep.mubr.bf16.mxu0 %v1620
    %1976 = vmatmul.mubr.bf16.gmra.mxu0 %v1619
    %v1977 = vpop.f32.mrf.mxu0
    %v1978 = vadd.f32 %v1666, %v1977
    %v1979 = vpop.f32.mrf.mxu0
    %v1980 = vadd.f32 %v1670, %v1979
    %v1981 = vpop.f32.mrf.mxu0
    %v1982 = vadd.f32 %v1666, %v1981
    %v1983 = vpop.f32.mrf.mxu0
    %v1984 = vadd.f32 %v1670, %v1983
    %1985 = vmatprep.mubr.bf16.mxu0 %v1622
    %1986 = vmatmul.mubr.bf16.gmra.mxu0 %v1621
    %v1987 = vpop.f32.mrf.mxu0
    %v1988 = vadd.f32 %v1666, %v1987
    %v1989 = vpop.f32.mrf.mxu0
    %v1990 = vadd.f32 %v1670, %v1989
    %v1991 = vpop.f32.mrf.mxu0
    %v1992 = vadd.f32 %v1666, %v1991
    %v1993 = vpop.f32.mrf.mxu0
    %v1994 = vadd.f32 %v1670, %v1993
    %1995 = vmatprep.mubr.bf16.mxu0 %v1624
    %1996 = vmatmul.mubr.bf16.gmra.mxu0 %v1623
    %v1997 = vpop.f32.mrf.mxu0
    %v1998 = vadd.f32 %v1666, %v1997
    %v1999 = vpop.f32.mrf.mxu0
    %v2000 = vadd.f32 %v1670, %v1999
    %v2001 = vpop.f32.mrf.mxu0
    %v2002 = vadd.f32 %v1666, %v2001
    %v2003 = vpop.f32.mrf.mxu0
    %v2004 = vadd.f32 %v1670, %v2003
    %2005 = vmatprep.mubr.bf16.mxu0 %v1626
    %2006 = vmatmul.mubr.bf16.gmra.mxu0 %v1625
    %v2007 = vpop.f32.mrf.mxu0
    %v2008 = vadd.f32 %v1666, %v2007
    %v2009 = vpop.f32.mrf.mxu0
    %v2010 = vadd.f32 %v1670, %v2009
    %v2011 = vpop.f32.mrf.mxu0
    %v2012 = vadd.f32 %v1666, %v2011
    %v2013 = vpop.f32.mrf.mxu0
    %v2014 = vadd.f32 %v1670, %v2013
    %2015 = vmatprep.mubr.bf16.mxu0 %v1628
    %2016 = vmatmul.mubr.bf16.gmra.mxu0 %v1627
    %v2017 = vpop.f32.mrf.mxu0
    %v2018 = vadd.f32 %v1666, %v2017
    %v2019 = vpop.f32.mrf.mxu0
    %v2020 = vadd.f32 %v1670, %v2019
    %v2021 = vpop.f32.mrf.mxu0
    %v2022 = vadd.f32 %v1666, %v2021
    %v2023 = vpop.f32.mrf.mxu0
    %v2024 = vadd.f32 %v1670, %v2023
    %2025 = vdwg.mxu0
    %v2026 = vmax.f32 %v1868, 0.0
    %v2027 = vmax.f32 %v1870, 0.0
    %v2028 = vmax.f32 %v1872, 0.0
    %v2029 = vmax.f32 %v1874, 0.0
    %v2030 = vmax.f32 %v1878, 0.0
    %v2031 = vmax.f32 %v1880, 0.0
    %v2032 = vmax.f32 %v1882, 0.0
    %v2033 = vmax.f32 %v1884, 0.0
    %v2034 = vmax.f32 %v1888, 0.0
    %v2035 = vmax.f32 %v1890, 0.0
    %v2036 = vmax.f32 %v1892, 0.0
    %v2037 = vmax.f32 %v1894, 0.0
    %v2038 = vmax.f32 %v1898, 0.0
    %v2039 = vmax.f32 %v1900, 0.0
    %v2040 = vmax.f32 %v1902, 0.0
    %v2041 = vmax.f32 %v1904, 0.0
    %v2042 = vmax.f32 %v1908, 0.0
    %v2043 = vmax.f32 %v1910, 0.0
    %v2044 = vmax.f32 %v1912, 0.0
    %v2045 = vmax.f32 %v1914, 0.0
    %v2046 = vmax.f32 %v1918, 0.0
    %v2047 = vmax.f32 %v1920, 0.0
    %v2048 = vmax.f32 %v1922, 0.0
    %v2049 = vmax.f32 %v1924, 0.0
    %v2050 = vmax.f32 %v1928, 0.0
    %v2051 = vmax.f32 %v1930, 0.0
    %v2052 = vmax.f32 %v1932, 0.0
    %v2053 = vmax.f32 %v1934, 0.0
    %v2054 = vmax.f32 %v1938, 0.0
    %v2055 = vmax.f32 %v1940, 0.0
    %v2056 = vmax.f32 %v1942, 0.0
    %v2057 = vmax.f32 %v1944, 0.0
    %v2058 = vmax.f32 %v1948, 0.0
    %v2059 = vmax.f32 %v1950, 0.0
    %v2060 = vmax.f32 %v1952, 0.0
    %v2061 = vmax.f32 %v1954, 0.0
    %v2062 = vmax.f32 %v1958, 0.0
    %v2063 = vmax.f32 %v1960, 0.0
    %v2064 = vmax.f32 %v1962, 0.0
    %v2065 = vmax.f32 %v1964, 0.0
    %v2066 = vmax.f32 %v1968, 0.0
    %v2067 = vmax.f32 %v1970, 0.0
    %v2068 = vmax.f32 %v1972, 0.0
    %v2069 = vmax.f32 %v1974, 0.0
    %v2070 = vmax.f32 %v1978, 0.0
    %v2071 = vmax.f32 %v1980, 0.0
    %v2072 = vmax.f32 %v1982, 0.0
    %v2073 = vmax.f32 %v1984, 0.0
    %v2074 = vmax.f32 %v1988, 0.0
    %v2075 = vmax.f32 %v1990, 0.0
    %v2076 = vmax.f32 %v1992, 0.0
    %v2077 = vmax.f32 %v1994, 0.0
    %v2078 = vmax.f32 %v1998, 0.0
    %v2079 = vmax.f32 %v2000, 0.0
    %v2080 = vmax.f32 %v2002, 0.0
    %v2081 = vmax.f32 %v2004, 0.0
    %v2082 = vmax.f32 %v2008, 0.0
    %v2083 = vmax.f32 %v2010, 0.0
    %v2084 = vmax.f32 %v2012, 0.0
    %v2085 = vmax.f32 %v2014, 0.0
    %v2086 = vmax.f32 %v2018, 0.0
    %v2087 = vmax.f32 %v2020, 0.0
    %v2088 = vmax.f32 %v2022, 0.0
    %v2089 = vmax.f32 %v2024, 0.0
    %v2090 = vpack.c.bf16 %v2028, %v2026
    %v2091 = vpack.c.bf16 %v2029, %v2027
    %v2092 = vpack.c.bf16 %v2032, %v2030
    %v2093 = vpack.c.bf16 %v2033, %v2031
    %v2094 = vpack.c.bf16 %v2036, %v2034
    %v2095 = vpack.c.bf16 %v2037, %v2035
    %v2096 = vpack.c.bf16 %v2040, %v2038
    %v2097 = vpack.c.bf16 %v2041, %v2039
    %v2098 = vpack.c.bf16 %v2044, %v2042
    %v2099 = vpack.c.bf16 %v2045, %v2043
    %v2100 = vpack.c.bf16 %v2048, %v2046
    %v2101 = vpack.c.bf16 %v2049, %v2047
    %v2102 = vpack.c.bf16 %v2052, %v2050
    %v2103 = vpack.c.bf16 %v2053, %v2051
    %v2104 = vpack.c.bf16 %v2056, %v2054
    %v2105 = vpack.c.bf16 %v2057, %v2055
    %v2106 = vpack.c.bf16 %v2060, %v2058
    %v2107 = vpack.c.bf16 %v2061, %v2059
    %v2108 = vpack.c.bf16 %v2064, %v2062
    %v2109 = vpack.c.bf16 %v2065, %v2063
    %v2110 = vpack.c.bf16 %v2068, %v2066
    %v2111 = vpack.c.bf16 %v2069, %v2067
    %v2112 = vpack.c.bf16 %v2072, %v2070
    %v2113 = vpack.c.bf16 %v2073, %v2071
    %v2114 = vpack.c.bf16 %v2076, %v2074
    %v2115 = vpack.c.bf16 %v2077, %v2075
    %v2116 = vpack.c.bf16 %v2080, %v2078
    %v2117 = vpack.c.bf16 %v2081, %v2079
    %v2118 = vpack.c.bf16 %v2084, %v2082
    %v2119 = vpack.c.bf16 %v2085, %v2083
    %v2120 = vpack.c.bf16 %v2088, %v2086
    %v2121 = vpack.c.bf16 %v2089, %v2087
    %v2122 = vld [vmem:[%s13] sm:$0xf]
    %v2123 = vld [vmem:[%s13 + $0x4] sm:$0xf]
    %v2124 = vld [vmem:[%s13 + $0x8] sm:$0xf]
    %v2125 = vld [vmem:[%s13 + $0xc] sm:$0xf]
    %v2126 = vld [vmem:[%s13 + $0x10] sm:$0xf]
    %v2127 = vld [vmem:[%s13 + $0x14] sm:$0xf]
    %v2128 = vld [vmem:[%s13 + $0x18] sm:$0xf]
    %v2129 = vld [vmem:[%s13 + $0x1c] sm:$0xf]
    %v2130 = vld [vmem:[%s13 + $0x20] sm:$0xf]
    %v2131 = vld [vmem:[%s13 + $0x24] sm:$0xf]
    %v2132 = vld [vmem:[%s13 + $0x28] sm:$0xf]
    %v2133 = vld [vmem:[%s13 + $0x2c] sm:$0xf]
    %v2134 = vld [vmem:[%s13 + $0x30] sm:$0xf]
    %v2135 = vld [vmem:[%s13 + $0x34] sm:$0xf]
    %v2136 = vld [vmem:[%s13 + $0x38] sm:$0xf]
    %v2137 = vld [vmem:[%s13 + $0x3c] sm:$0xf]
    %v2138 = vld [vmem:[%s13 + $0x40] sm:$0xf]
    %v2139 = vld [vmem:[%s13 + $0x44] sm:$0xf]
    %v2140 = vld [vmem:[%s13 + $0x48] sm:$0xf]
    %v2141 = vld [vmem:[%s13 + $0x4c] sm:$0xf]
    %v2142 = vld [vmem:[%s13 + $0x50] sm:$0xf]
    %v2143 = vld [vmem:[%s13 + $0x54] sm:$0xf]
    %v2144 = vld [vmem:[%s13 + $0x58] sm:$0xf]
    %v2145 = vld [vmem:[%s13 + $0x5c] sm:$0xf]
    %v2146 = vld [vmem:[%s13 + $0x60] sm:$0xf]
    %v2147 = vld [vmem:[%s13 + $0x64] sm:$0xf]
    %v2148 = vld [vmem:[%s13 + $0x68] sm:$0xf]
    %v2149 = vld [vmem:[%s13 + $0x6c] sm:$0xf]
    %v2150 = vld [vmem:[%s13 + $0x70] sm:$0xf]
    %v2151 = vld [vmem:[%s13 + $0x74] sm:$0xf]
    %v2152 = vld [vmem:[%s13 + $0x78] sm:$0xf]
    %v2153 = vld [vmem:[%s13 + $0x7c] sm:$0xf]
    %v2154 = vld [vmem:[%s14] sm:$0x1]
    %v2156 = vlaneseq
    %v2157 = vshrl.u32 %v2156, 7
    %v2158 = vsub.s32 0, %v2157
    %v2159 = vrot.slane %v2154, %v2158
    %v2193 = vunpack.c.l.b16 %v2122
    %v2194 = vunpack.c.l.b16 %v2123
    %v2195 = vunpack.c.l.b16 %v2124
    %v2196 = vunpack.c.l.b16 %v2125
    %v2197 = vunpack.c.l.b16 %v2126
    %v2198 = vunpack.c.l.b16 %v2127
    %v2199 = vunpack.c.l.b16 %v2128
    %v2200 = vunpack.c.l.b16 %v2129
    %v2201 = vunpack.c.l.b16 %v2130
    %v2202 = vunpack.c.l.b16 %v2131
    %v2203 = vunpack.c.l.b16 %v2132
    %v2204 = vunpack.c.l.b16 %v2133
    %v2205 = vunpack.c.l.b16 %v2134
    %v2206 = vunpack.c.l.b16 %v2135
    %v2207 = vunpack.c.l.b16 %v2136
    %v2208 = vunpack.c.l.b16 %v2137
    %v2209 = vunpack.c.l.b16 %v2138
    %v2210 = vunpack.c.l.b16 %v2139
    %v2211 = vunpack.c.l.b16 %v2140
    %v2212 = vunpack.c.l.b16 %v2141
    %v2213 = vunpack.c.l.b16 %v2142
    %v2214 = vunpack.c.l.b16 %v2143
    %v2215 = vunpack.c.l.b16 %v2144
    %v2216 = vunpack.c.l.b16 %v2145
    %v2217 = vunpack.c.l.b16 %v2146
    %v2218 = vunpack.c.l.b16 %v2147
    %v2219 = vunpack.c.l.b16 %v2148
    %v2220 = vunpack.c.l.b16 %v2149
    %v2221 = vunpack.c.l.b16 %v2150
    %v2222 = vunpack.c.l.b16 %v2151
    %v2223 = vunpack.c.l.b16 %v2152
    %v2224 = vunpack.c.l.b16 %v2153
    %v2225 = vpack.c.b16 %v2194, %v2193
    %v2226 = vpack.c.b16 %v2196, %v2195
    %v2227 = vpack.c.b16 %v2198, %v2197
    %v2228 = vpack.c.b16 %v2200, %v2199
    %v2229 = vpack.c.b16 %v2202, %v2201
    %v2230 = vpack.c.b16 %v2204, %v2203
    %v2231 = vpack.c.b16 %v2206, %v2205
    %v2232 = vpack.c.b16 %v2208, %v2207
    %v2233 = vpack.c.b16 %v2210, %v2209
    %v2234 = vpack.c.b16 %v2212, %v2211
    %v2235 = vpack.c.b16 %v2214, %v2213
    %v2236 = vpack.c.b16 %v2216, %v2215
    %v2237 = vpack.c.b16 %v2218, %v2217
    %v2238 = vpack.c.b16 %v2220, %v2219
    %v2239 = vpack.c.b16 %v2222, %v2221
    %v2240 = vpack.c.b16 %v2224, %v2223
    %2257 = vmatprep.subr.bf16.mxu0 0
    %2258 = vmatpush1.bf16.msra.mxu0 %v2232
    %2259 = vmatprep.subr.bf16.mxu0 0
    %2260 = vmatpush1.bf16.msra.mxu0 %v2231
    %2261 = vmatprep.subr.bf16.mxu0 0
    %2262 = vmatpush1.bf16.msra.mxu0 %v2230
    %2263 = vmatprep.subr.bf16.mxu0 0
    %2264 = vmatpush1.bf16.msra.mxu0 %v2229
    %2265 = vmatprep.subr.bf16.mxu0 0
    %2266 = vmatpush1.bf16.msra.mxu0 %v2228
    %2267 = vmatprep.subr.bf16.mxu0 0
    %2268 = vmatpush1.bf16.msra.mxu0 %v2227
    %2269 = vmatprep.subr.bf16.mxu0 0
    %2270 = vmatpush1.bf16.msra.mxu0 %v2226
    %2271 = vmatprep.subr.bf16.mxu0 0
    %2272 = vmatpush1.bf16.msra.mxu0 %v2225
    %2273 = vmatprep.subr.bf16.mxu0 0
    %2274 = vmatpush2.bf16.msra.mxu0 %v2240
    %2275 = vmatprep.subr.bf16.mxu0 0
    %2276 = vmatpush2.bf16.msra.mxu0 %v2239
    %2277 = vmatprep.subr.bf16.mxu0 0
    %2278 = vmatpush2.bf16.msra.mxu0 %v2238
    %2279 = vmatprep.subr.bf16.mxu0 0
    %2280 = vmatpush2.bf16.msra.mxu0 %v2237
    %2281 = vmatprep.subr.bf16.mxu0 0
    %2282 = vmatpush2.bf16.msra.mxu0 %v2236
    %2283 = vmatprep.subr.bf16.mxu0 0
    %2284 = vmatpush2.bf16.msra.mxu0 %v2235
    %2285 = vmatprep.subr.bf16.mxu0 0
    %2286 = vmatpush2.bf16.msra.mxu0 %v2234
    %2287 = vmatprep.subr.bf16.mxu0 0
    %2288 = vmatpush2.bf16.msra.mxu0 %v2233
    %2289 = vmatprep.mubr.bf16.mxu0 %v2091
    %2290 = vmatmul.mubr.bf16.gmra.mxu0 %v2090
    %v2291 = vpop.f32.mrf.mxu0
    %v2292 = vadd.f32 %v2159, %v2291
    %v2293 = vpop.f32.mrf.mxu0
    %v2294 = vpop.f32.mrf.mxu0
    %v2295 = vadd.f32 %v2159, %v2294
    %v2296 = vpop.f32.mrf.mxu0
    %2297 = vmatprep.mubr.bf16.mxu0 %v2093
    %2298 = vmatmul.mubr.bf16.gmra.mxu0 %v2092
    %v2299 = vpop.f32.mrf.mxu0
    %v2300 = vadd.f32 %v2159, %v2299
    %v2301 = vpop.f32.mrf.mxu0
    %v2302 = vpop.f32.mrf.mxu0
    %v2303 = vadd.f32 %v2159, %v2302
    %v2304 = vpop.f32.mrf.mxu0
    %2305 = vmatprep.mubr.bf16.mxu0 %v2095
    %2306 = vmatmul.mubr.bf16.gmra.mxu0 %v2094
    %v2307 = vpop.f32.mrf.mxu0
    %v2308 = vadd.f32 %v2159, %v2307
    %v2309 = vpop.f32.mrf.mxu0
    %v2310 = vpop.f32.mrf.mxu0
    %v2311 = vadd.f32 %v2159, %v2310
    %v2312 = vpop.f32.mrf.mxu0
    %2313 = vmatprep.mubr.bf16.mxu0 %v2097
    %2314 = vmatmul.mubr.bf16.gmra.mxu0 %v2096
    %v2315 = vpop.f32.mrf.mxu0
    %v2316 = vadd.f32 %v2159, %v2315
    %v2317 = vpop.f32.mrf.mxu0
    %v2318 = vpop.f32.mrf.mxu0
    %v2319 = vadd.f32 %v2159, %v2318
    %v2320 = vpop.f32.mrf.mxu0
    %2321 = vmatprep.mubr.bf16.mxu0 %v2099
    %2322 = vmatmul.mubr.bf16.gmra.mxu0 %v2098
    %v2323 = vpop.f32.mrf.mxu0
    %v2324 = vadd.f32 %v2159, %v2323
    %v2325 = vpop.f32.mrf.mxu0
    %v2326 = vpop.f32.mrf.mxu0
    %v2327 = vadd.f32 %v2159, %v2326
    %v2328 = vpop.f32.mrf.mxu0
    %2329 = vmatprep.mubr.bf16.mxu0 %v2101
    %2330 = vmatmul.mubr.bf16.gmra.mxu0 %v2100
    %v2331 = vpop.f32.mrf.mxu0
    %v2332 = vadd.f32 %v2159, %v2331
    %v2333 = vpop.f32.mrf.mxu0
    %v2334 = vpop.f32.mrf.mxu0
    %v2335 = vadd.f32 %v2159, %v2334
    %v2336 = vpop.f32.mrf.mxu0
    %2337 = vmatprep.mubr.bf16.mxu0 %v2103
    %2338 = vmatmul.mubr.bf16.gmra.mxu0 %v2102
    %v2339 = vpop.f32.mrf.mxu0
    %v2340 = vadd.f32 %v2159, %v2339
    %v2341 = vpop.f32.mrf.mxu0
    %v2342 = vpop.f32.mrf.mxu0
    %v2343 = vadd.f32 %v2159, %v2342
    %v2344 = vpop.f32.mrf.mxu0
    %2345 = vmatprep.mubr.bf16.mxu0 %v2105
    %2346 = vmatmul.mubr.bf16.gmra.mxu0 %v2104
    %v2347 = vpop.f32.mrf.mxu0
    %v2348 = vadd.f32 %v2159, %v2347
    %v2349 = vpop.f32.mrf.mxu0
    %v2350 = vpop.f32.mrf.mxu0
    %v2351 = vadd.f32 %v2159, %v2350
    %v2352 = vpop.f32.mrf.mxu0
    %2353 = vmatprep.mubr.bf16.mxu0 %v2107
    %2354 = vmatmul.mubr.bf16.gmra.mxu0 %v2106
    %v2355 = vpop.f32.mrf.mxu0
    %v2356 = vadd.f32 %v2159, %v2355
    %v2357 = vpop.f32.mrf.mxu0
    %v2358 = vpop.f32.mrf.mxu0
    %v2359 = vadd.f32 %v2159, %v2358
    %v2360 = vpop.f32.mrf.mxu0
    %2361 = vmatprep.mubr.bf16.mxu0 %v2109
    %2362 = vmatmul.mubr.bf16.gmra.mxu0 %v2108
    %v2363 = vpop.f32.mrf.mxu0
    %v2364 = vadd.f32 %v2159, %v2363
    %v2365 = vpop.f32.mrf.mxu0
    %v2366 = vpop.f32.mrf.mxu0
    %v2367 = vadd.f32 %v2159, %v2366
    %v2368 = vpop.f32.mrf.mxu0
    %2369 = vmatprep.mubr.bf16.mxu0 %v2111
    %2370 = vmatmul.mubr.bf16.gmra.mxu0 %v2110
    %v2371 = vpop.f32.mrf.mxu0
    %v2372 = vadd.f32 %v2159, %v2371
    %v2373 = vpop.f32.mrf.mxu0
    %v2374 = vpop.f32.mrf.mxu0
    %v2375 = vadd.f32 %v2159, %v2374
    %v2376 = vpop.f32.mrf.mxu0
    %2377 = vmatprep.mubr.bf16.mxu0 %v2113
    %2378 = vmatmul.mubr.bf16.gmra.mxu0 %v2112
    %v2379 = vpop.f32.mrf.mxu0
    %v2380 = vadd.f32 %v2159, %v2379
    %v2381 = vpop.f32.mrf.mxu0
    %v2382 = vpop.f32.mrf.mxu0
    %v2383 = vadd.f32 %v2159, %v2382
    %v2384 = vpop.f32.mrf.mxu0
    %2385 = vmatprep.mubr.bf16.mxu0 %v2115
    %2386 = vmatmul.mubr.bf16.gmra.mxu0 %v2114
    %v2387 = vpop.f32.mrf.mxu0
    %v2388 = vadd.f32 %v2159, %v2387
    %v2389 = vpop.f32.mrf.mxu0
    %v2390 = vpop.f32.mrf.mxu0
    %v2391 = vadd.f32 %v2159, %v2390
    %v2392 = vpop.f32.mrf.mxu0
    %2393 = vmatprep.mubr.bf16.mxu0 %v2117
    %2394 = vmatmul.mubr.bf16.gmra.mxu0 %v2116
    %v2395 = vpop.f32.mrf.mxu0
    %v2396 = vadd.f32 %v2159, %v2395
    %v2397 = vpop.f32.mrf.mxu0
    %v2398 = vpop.f32.mrf.mxu0
    %v2399 = vadd.f32 %v2159, %v2398
    %v2400 = vpop.f32.mrf.mxu0
    %2401 = vmatprep.mubr.bf16.mxu0 %v2119
    %2402 = vmatmul.mubr.bf16.gmra.mxu0 %v2118
    %v2403 = vpop.f32.mrf.mxu0
    %v2404 = vadd.f32 %v2159, %v2403
    %v2405 = vpop.f32.mrf.mxu0
    %v2406 = vpop.f32.mrf.mxu0
    %v2407 = vadd.f32 %v2159, %v2406
    %v2408 = vpop.f32.mrf.mxu0
    %2409 = vmatprep.mubr.bf16.mxu0 %v2121
    %2410 = vmatmul.mubr.bf16.gmra.mxu0 %v2120
    %v2411 = vpop.f32.mrf.mxu0
    %v2412 = vadd.f32 %v2159, %v2411
    %v2413 = vpop.f32.mrf.mxu0
    %v2414 = vpop.f32.mrf.mxu0
    %v2415 = vadd.f32 %v2159, %v2414
    %v2416 = vpop.f32.mrf.mxu0
    %2417 = vdwg.mxu0
    %v2418 = vmax.f32 %v2292, 0.0
    %v2419 = vmax.f32 %v2295, 0.0
    %v2420 = vmax.f32 %v2300, 0.0
    %v2421 = vmax.f32 %v2303, 0.0
    %v2422 = vmax.f32 %v2308, 0.0
    %v2423 = vmax.f32 %v2311, 0.0
    %v2424 = vmax.f32 %v2316, 0.0
    %v2425 = vmax.f32 %v2319, 0.0
    %v2426 = vmax.f32 %v2324, 0.0
    %v2427 = vmax.f32 %v2327, 0.0
    %v2428 = vmax.f32 %v2332, 0.0
    %v2429 = vmax.f32 %v2335, 0.0
    %v2430 = vmax.f32 %v2340, 0.0
    %v2431 = vmax.f32 %v2343, 0.0
    %v2432 = vmax.f32 %v2348, 0.0
    %v2433 = vmax.f32 %v2351, 0.0
    %v2434 = vmax.f32 %v2356, 0.0
    %v2435 = vmax.f32 %v2359, 0.0
    %v2436 = vmax.f32 %v2364, 0.0
    %v2437 = vmax.f32 %v2367, 0.0
    %v2438 = vmax.f32 %v2372, 0.0
    %v2439 = vmax.f32 %v2375, 0.0
    %v2440 = vmax.f32 %v2380, 0.0
    %v2441 = vmax.f32 %v2383, 0.0
    %v2442 = vmax.f32 %v2388, 0.0
    %v2443 = vmax.f32 %v2391, 0.0
    %v2444 = vmax.f32 %v2396, 0.0
    %v2445 = vmax.f32 %v2399, 0.0
    %v2446 = vmax.f32 %v2404, 0.0
    %v2447 = vmax.f32 %v2407, 0.0
    %v2448 = vmax.f32 %v2412, 0.0
    %v2449 = vmax.f32 %v2415, 0.0
    %v2450 = vmax.f32 %v2418, %v2419
    %v2451 = vrot.slane %v2450, 4
    %v2452 = vmax.f32 %v2450, %v2451
    %v2453 = vrot.slane %v2452, 2
    %v2454 = vmax.f32 %v2452, %v2453
    %v2455 = vrot.slane %v2454, 1
    %v2456 = vmax.f32 %v2454, %v2455
    %v2457 = vmax.f32 %v2420, %v2421
    %v2458 = vrot.slane %v2457, 4
    %v2459 = vmax.f32 %v2457, %v2458
    %v2460 = vrot.slane %v2459, 2
    %v2461 = vmax.f32 %v2459, %v2460
    %v2462 = vrot.slane %v2461, 1
    %v2463 = vmax.f32 %v2461, %v2462
    %v2464 = vmax.f32 %v2422, %v2423
    %v2465 = vrot.slane %v2464, 4
    %v2466 = vmax.f32 %v2464, %v2465
    %v2467 = vrot.slane %v2466, 2
    %v2468 = vmax.f32 %v2466, %v2467
    %v2469 = vrot.slane %v2468, 1
    %v2470 = vmax.f32 %v2468, %v2469
    %v2471 = vmax.f32 %v2424, %v2425
    %v2472 = vrot.slane %v2471, 4
    %v2473 = vmax.f32 %v2471, %v2472
    %v2474 = vrot.slane %v2473, 2
    %v2475 = vmax.f32 %v2473, %v2474
    %v2476 = vrot.slane %v2475, 1
    %v2477 = vmax.f32 %v2475, %v2476
    %v2478 = vmax.f32 %v2426, %v2427
    %v2479 = vrot.slane %v2478, 4
    %v2480 = vmax.f32 %v2478, %v2479
    %v2481 = vrot.slane %v2480, 2
    %v2482 = vmax.f32 %v2480, %v2481
    %v2483 = vrot.slane %v2482, 1
    %v2484 = vmax.f32 %v2482, %v2483
    %v2485 = vmax.f32 %v2428, %v2429
    %v2486 = vrot.slane %v2485, 4
    %v2487 = vmax.f32 %v2485, %v2486
    %v2488 = vrot.slane %v2487, 2
    %v2489 = vmax.f32 %v2487, %v2488
    %v2490 = vrot.slane %v2489, 1
    %v2491 = vmax.f32 %v2489, %v2490
    %v2492 = vmax.f32 %v2430, %v2431
    %v2493 = vrot.slane %v2492, 4
    %v2494 = vmax.f32 %v2492, %v2493
    %v2495 = vrot.slane %v2494, 2
    %v2496 = vmax.f32 %v2494, %v2495
    %v2497 = vrot.slane %v2496, 1
    %v2498 = vmax.f32 %v2496, %v2497
    %v2499 = vmax.f32 %v2432, %v2433
    %v2500 = vrot.slane %v2499, 4
    %v2501 = vmax.f32 %v2499, %v2500
    %v2502 = vrot.slane %v2501, 2
    %v2503 = vmax.f32 %v2501, %v2502
    %v2504 = vrot.slane %v2503, 1
    %v2505 = vmax.f32 %v2503, %v2504
    %v2506 = vmax.f32 %v2434, %v2435
    %v2507 = vrot.slane %v2506, 4
    %v2508 = vmax.f32 %v2506, %v2507
    %v2509 = vrot.slane %v2508, 2
    %v2510 = vmax.f32 %v2508, %v2509
    %v2511 = vrot.slane %v2510, 1
    %v2512 = vmax.f32 %v2510, %v2511
    %v2513 = vmax.f32 %v2436, %v2437
    %v2514 = vrot.slane %v2513, 4
    %v2515 = vmax.f32 %v2513, %v2514
    %v2516 = vrot.slane %v2515, 2
    %v2517 = vmax.f32 %v2515, %v2516
    %v2518 = vrot.slane %v2517, 1
    %v2519 = vmax.f32 %v2517, %v2518
    %v2520 = vmax.f32 %v2438, %v2439
    %v2521 = vrot.slane %v2520, 4
    %v2522 = vmax.f32 %v2520, %v2521
    %v2523 = vrot.slane %v2522, 2
    %v2524 = vmax.f32 %v2522, %v2523
    %v2525 = vrot.slane %v2524, 1
    %v2526 = vmax.f32 %v2524, %v2525
    %v2527 = vmax.f32 %v2440, %v2441
    %v2528 = vrot.slane %v2527, 4
    %v2529 = vmax.f32 %v2527, %v2528
    %v2530 = vrot.slane %v2529, 2
    %v2531 = vmax.f32 %v2529, %v2530
    %v2532 = vrot.slane %v2531, 1
    %v2533 = vmax.f32 %v2531, %v2532
    %v2534 = vmax.f32 %v2442, %v2443
    %v2535 = vrot.slane %v2534, 4
    %v2536 = vmax.f32 %v2534, %v2535
    %v2537 = vrot.slane %v2536, 2
    %v2538 = vmax.f32 %v2536, %v2537
    %v2539 = vrot.slane %v2538, 1
    %v2540 = vmax.f32 %v2538, %v2539
    %v2541 = vmax.f32 %v2444, %v2445
    %v2542 = vrot.slane %v2541, 4
    %v2543 = vmax.f32 %v2541, %v2542
    %v2544 = vrot.slane %v2543, 2
    %v2545 = vmax.f32 %v2543, %v2544
    %v2546 = vrot.slane %v2545, 1
    %v2547 = vmax.f32 %v2545, %v2546
    %v2548 = vmax.f32 %v2446, %v2447
    %v2549 = vrot.slane %v2548, 4
    %v2550 = vmax.f32 %v2548, %v2549
    %v2551 = vrot.slane %v2550, 2
    %v2552 = vmax.f32 %v2550, %v2551
    %v2553 = vrot.slane %v2552, 1
    %v2554 = vmax.f32 %v2552, %v2553
    %v2555 = vmax.f32 %v2448, %v2449
    %v2556 = vrot.slane %v2555, 4
    %v2557 = vmax.f32 %v2555, %v2556
    %v2558 = vrot.slane %v2557, 2
    %v2559 = vmax.f32 %v2557, %v2558
    %v2560 = vrot.slane %v2559, 1
    %v2561 = vmax.f32 %v2559, %v2560
    %v2562 = vld [vmem:[%s1] sm:$0xff]
    %v2563 = vld [vmem:[%s1 + $0x8] sm:$0xff]
    %v2564 = vpack.c.bf16 %v2563, %v2562
    %v2565 = vld [vmem:[%s15] sm:$0xf]
    %v2566 = vld [vmem:[%s16] sm:$0x1]
    %v2568 = vlaneseq
    %v2569 = vshrl.u32 %v2568, 7
    %v2570 = vsub.s32 0, %v2569
    %v2571 = vrot.slane %v2566, %v2570
    %v2574 = vsel %vm141, %v2564, 0
    %v2577 = vsel %vm190, %v2565, 0
    %2579 = vmatprep.subr.bf16.mxu0 0
    %2580 = vmatpush1.bf16.msra.mxu0 0
    %2581 = vmatprep.subr.bf16.mxu0 0
    %2582 = vmatpush1.bf16.msra.mxu0 0
    %2583 = vmatprep.subr.bf16.mxu0 0
    %2584 = vmatpush1.bf16.msra.mxu0 0
    %2585 = vmatprep.subr.bf16.mxu0 0
    %2586 = vmatpush1.bf16.msra.mxu0 0
    %2587 = vmatprep.subr.bf16.mxu0 0
    %2588 = vmatpush1.bf16.msra.mxu0 0
    %2589 = vmatprep.subr.bf16.mxu0 0
    %2590 = vmatpush1.bf16.msra.mxu0 0
    %2591 = vmatprep.subr.bf16.mxu0 0
    %2592 = vmatpush1.bf16.msra.mxu0 0
    %2593 = vmatprep.subr.bf16.mxu0 0
    %2594 = vmatpush1.bf16.msra.mxu0 %v2577
    %2595 = vmatprep.subr.bf16.mxu0 0
    %2596 = vmatpush2.bf16.msra.mxu0 0
    %2597 = vmatprep.subr.bf16.mxu0 0
    %2598 = vmatpush2.bf16.msra.mxu0 0
    %2599 = vmatprep.subr.bf16.mxu0 0
    %2600 = vmatpush2.bf16.msra.mxu0 0
    %2601 = vmatprep.subr.bf16.mxu0 0
    %2602 = vmatpush2.bf16.msra.mxu0 0
    %2603 = vmatprep.subr.bf16.mxu0 0
    %2604 = vmatpush2.bf16.msra.mxu0 0
    %2605 = vmatprep.subr.bf16.mxu0 0
    %2606 = vmatpush2.bf16.msra.mxu0 0
    %2607 = vmatprep.subr.bf16.mxu0 0
    %2608 = vmatpush2.bf16.msra.mxu0 0
    %2609 = vmatprep.subr.bf16.mxu0 0
    %2610 = vmatpush2.bf16.msra.mxu0 0
    %2611 = vmatprep.mubr.bf16.mxu0 0
    %2612 = vmatmul.mubr.bf16.gmra.mxu0 %v2574
    %v2613 = vpop.f32.mrf.mxu0
    %v2614 = vadd.f32 %v2571, %v2613
    %v2615 = vpop.f32.mrf.mxu0
    %v2616 = vpop.f32.mrf.mxu0
    %v2617 = vadd.f32 %v2571, %v2616
    %v2618 = vpop.f32.mrf.mxu0
    %2619 = vdwg.mxu0
    %v2620 = vmax.f32 %v2614, 0.0
    %v2621 = vmax.f32 %v2617, 0.0
    %v2622 = vpack.c.bf16 %v2621, %v2620
    %v2623 = vld [vmem:[%s17] sm:$0xf]
    %v2624 = vld [vmem:[%s17 + $0x4] sm:$0xf]
    %v2625 = vld [vmem:[%s17 + $0x8] sm:$0xf]
    %v2626 = vld [vmem:[%s17 + $0xc] sm:$0xf]
    %v2627 = vld [vmem:[%s17 + $0x10] sm:$0xf]
    %v2628 = vld [vmem:[%s17 + $0x14] sm:$0xf]
    %v2629 = vld [vmem:[%s17 + $0x18] sm:$0xf]
    %v2630 = vld [vmem:[%s17 + $0x1c] sm:$0xf]
    %v2631 = vld [vmem:[%s17 + $0x20] sm:$0xf]
    %v2632 = vld [vmem:[%s17 + $0x24] sm:$0xf]
    %v2633 = vld [vmem:[%s17 + $0x28] sm:$0xf]
    %v2634 = vld [vmem:[%s17 + $0x2c] sm:$0xf]
    %v2635 = vld [vmem:[%s17 + $0x30] sm:$0xf]
    %v2636 = vld [vmem:[%s17 + $0x34] sm:$0xf]
    %v2637 = vld [vmem:[%s17 + $0x38] sm:$0xf]
    %v2638 = vld [vmem:[%s17 + $0x3c] sm:$0xf]
    %v2639 = vld [vmem:[%s18] sm:$0x1]
    %v2641 = vlaneseq
    %v2642 = vshrl.u32 %v2641, 7
    %v2643 = vsub.s32 0, %v2642
    %v2644 = vrot.slane %v2639, %v2643
    %v2662 = vunpack.c.l.b16 %v2623
    %v2663 = vunpack.c.l.b16 %v2624
    %v2664 = vunpack.c.l.b16 %v2625
    %v2665 = vunpack.c.l.b16 %v2626
    %v2666 = vunpack.c.l.b16 %v2627
    %v2667 = vunpack.c.l.b16 %v2628
    %v2668 = vunpack.c.l.b16 %v2629
    %v2669 = vunpack.c.l.b16 %v2630
    %v2670 = vunpack.c.l.b16 %v2631
    %v2671 = vunpack.c.l.b16 %v2632
    %v2672 = vunpack.c.l.b16 %v2633
    %v2673 = vunpack.c.l.b16 %v2634
    %v2674 = vunpack.c.l.b16 %v2635
    %v2675 = vunpack.c.l.b16 %v2636
    %v2676 = vunpack.c.l.b16 %v2637
    %v2677 = vunpack.c.l.b16 %v2638
    %v2678 = vpack.c.b16 %v2663, %v2662
    %v2679 = vpack.c.b16 %v2665, %v2664
    %v2680 = vpack.c.b16 %v2667, %v2666
    %v2681 = vpack.c.b16 %v2669, %v2668
    %v2682 = vpack.c.b16 %v2671, %v2670
    %v2683 = vpack.c.b16 %v2673, %v2672
    %v2684 = vpack.c.b16 %v2675, %v2674
    %v2685 = vpack.c.b16 %v2677, %v2676
    %2694 = vmatprep.subr.bf16.mxu0 0
    %2695 = vmatpush1.bf16.msra.mxu0 %v2685
    %2696 = vmatprep.subr.bf16.mxu0 0
    %2697 = vmatpush1.bf16.msra.mxu0 %v2684
    %2698 = vmatprep.subr.bf16.mxu0 0
    %2699 = vmatpush1.bf16.msra.mxu0 %v2683
    %2700 = vmatprep.subr.bf16.mxu0 0
    %2701 = vmatpush1.bf16.msra.mxu0 %v2682
    %2702 = vmatprep.subr.bf16.mxu0 0
    %2703 = vmatpush1.bf16.msra.mxu0 %v2681
    %2704 = vmatprep.subr.bf16.mxu0 0
    %2705 = vmatpush1.bf16.msra.mxu0 %v2680
    %2706 = vmatprep.subr.bf16.mxu0 0
    %2707 = vmatpush1.bf16.msra.mxu0 %v2679
    %2708 = vmatprep.subr.bf16.mxu0 0
    %2709 = vmatpush1.bf16.msra.mxu0 %v2678
    %2710 = vmatprep.subr.bf16.mxu0 0
    %2711 = vmatpush2.bf16.msra.mxu0 0
    %2712 = vmatprep.subr.bf16.mxu0 0
    %2713 = vmatpush2.bf16.msra.mxu0 0
    %2714 = vmatprep.subr.bf16.mxu0 0
    %2715 = vmatpush2.bf16.msra.mxu0 0
    %2716 = vmatprep.subr.bf16.mxu0 0
    %2717 = vmatpush2.bf16.msra.mxu0 0
    %2718 = vmatprep.subr.bf16.mxu0 0
    %2719 = vmatpush2.bf16.msra.mxu0 0
    %2720 = vmatprep.subr.bf16.mxu0 0
    %2721 = vmatpush2.bf16.msra.mxu0 0
    %2722 = vmatprep.subr.bf16.mxu0 0
    %2723 = vmatpush2.bf16.msra.mxu0 0
    %2724 = vmatprep.subr.bf16.mxu0 0
    %2725 = vmatpush2.bf16.msra.mxu0 0
    %2726 = vmatprep.mubr.bf16.mxu0 0
    %2727 = vmatmul.mubr.bf16.gmra.mxu0 %v2622
    %v2728 = vpop.f32.mrf.mxu0
    %v2729 = vadd.f32 %v2644, %v2728
    %v2730 = vpop.f32.mrf.mxu0
    %v2731 = vpop.f32.mrf.mxu0
    %v2732 = vadd.f32 %v2644, %v2731
    %v2733 = vpop.f32.mrf.mxu0
    %2734 = vdwg.mxu0
    %v2735 = vmax.f32 %v2729, 0.0
    %v2736 = vmax.f32 %v2732, 0.0
    %v2737 = vpack.c.bf16 %v2736, %v2735
    %v2738 = vld [vmem:[%s19] sm:$0xf]
    %v2739 = vld [vmem:[%s19 + $0x4] sm:$0xf]
    %v2740 = vld [vmem:[%s19 + $0x8] sm:$0xf]
    %v2741 = vld [vmem:[%s19 + $0xc] sm:$0xf]
    %v2742 = vld [vmem:[%s19 + $0x10] sm:$0xf]
    %v2743 = vld [vmem:[%s19 + $0x14] sm:$0xf]
    %v2744 = vld [vmem:[%s19 + $0x18] sm:$0xf]
    %v2745 = vld [vmem:[%s19 + $0x1c] sm:$0xf]
    %v2746 = vld [vmem:[%s19 + $0x20] sm:$0xf]
    %v2747 = vld [vmem:[%s19 + $0x24] sm:$0xf]
    %v2748 = vld [vmem:[%s19 + $0x28] sm:$0xf]
    %v2749 = vld [vmem:[%s19 + $0x2c] sm:$0xf]
    %v2750 = vld [vmem:[%s19 + $0x30] sm:$0xf]
    %v2751 = vld [vmem:[%s19 + $0x34] sm:$0xf]
    %v2752 = vld [vmem:[%s19 + $0x38] sm:$0xf]
    %v2753 = vld [vmem:[%s19 + $0x3c] sm:$0xf]
    %v2754 = vld [vmem:[%s20] sm:$0x1]
    %v2756 = vlaneseq
    %v2757 = vshrl.u32 %v2756, 7
    %v2758 = vsub.s32 0, %v2757
    %v2759 = vrot.slane %v2754, %v2758
    %v2777 = vunpack.c.l.b16 %v2738
    %v2778 = vunpack.c.l.b16 %v2739
    %v2779 = vunpack.c.l.b16 %v2740
    %v2780 = vunpack.c.l.b16 %v2741
    %v2781 = vunpack.c.l.b16 %v2742
    %v2782 = vunpack.c.l.b16 %v2743
    %v2783 = vunpack.c.l.b16 %v2744
    %v2784 = vunpack.c.l.b16 %v2745
    %v2785 = vunpack.c.l.b16 %v2746
    %v2786 = vunpack.c.l.b16 %v2747
    %v2787 = vunpack.c.l.b16 %v2748
    %v2788 = vunpack.c.l.b16 %v2749
    %v2789 = vunpack.c.l.b16 %v2750
    %v2790 = vunpack.c.l.b16 %v2751
    %v2791 = vunpack.c.l.b16 %v2752
    %v2792 = vunpack.c.l.b16 %v2753
    %v2793 = vpack.c.b16 %v2778, %v2777
    %v2794 = vpack.c.b16 %v2780, %v2779
    %v2795 = vpack.c.b16 %v2782, %v2781
    %v2796 = vpack.c.b16 %v2784, %v2783
    %v2797 = vpack.c.b16 %v2786, %v2785
    %v2798 = vpack.c.b16 %v2788, %v2787
    %v2799 = vpack.c.b16 %v2790, %v2789
    %v2800 = vpack.c.b16 %v2792, %v2791
    %2809 = vmatprep.subr.bf16.mxu0 0
    %2810 = vmatpush1.bf16.msra.mxu0 %v2800
    %2811 = vmatprep.subr.bf16.mxu0 0
    %2812 = vmatpush1.bf16.msra.mxu0 %v2799
    %2813 = vmatprep.subr.bf16.mxu0 0
    %2814 = vmatpush1.bf16.msra.mxu0 %v2798
    %2815 = vmatprep.subr.bf16.mxu0 0
    %2816 = vmatpush1.bf16.msra.mxu0 %v2797
    %2817 = vmatprep.subr.bf16.mxu0 0
    %2818 = vmatpush1.bf16.msra.mxu0 %v2796
    %2819 = vmatprep.subr.bf16.mxu0 0
    %2820 = vmatpush1.bf16.msra.mxu0 %v2795
    %2821 = vmatprep.subr.bf16.mxu0 0
    %2822 = vmatpush1.bf16.msra.mxu0 %v2794
    %2823 = vmatprep.subr.bf16.mxu0 0
    %2824 = vmatpush1.bf16.msra.mxu0 %v2793
    %2825 = vmatprep.subr.bf16.mxu0 0
    %2826 = vmatpush2.bf16.msra.mxu0 0
    %2827 = vmatprep.subr.bf16.mxu0 0
    %2828 = vmatpush2.bf16.msra.mxu0 0
    %2829 = vmatprep.subr.bf16.mxu0 0
    %2830 = vmatpush2.bf16.msra.mxu0 0
    %2831 = vmatprep.subr.bf16.mxu0 0
    %2832 = vmatpush2.bf16.msra.mxu0 0
    %2833 = vmatprep.subr.bf16.mxu0 0
    %2834 = vmatpush2.bf16.msra.mxu0 0
    %2835 = vmatprep.subr.bf16.mxu0 0
    %2836 = vmatpush2.bf16.msra.mxu0 0
    %2837 = vmatprep.subr.bf16.mxu0 0
    %2838 = vmatpush2.bf16.msra.mxu0 0
    %2839 = vmatprep.subr.bf16.mxu0 0
    %2840 = vmatpush2.bf16.msra.mxu0 0
    %2841 = vmatprep.mubr.bf16.mxu0 0
    %2842 = vmatmul.mubr.bf16.gmra.mxu0 %v2737
    %v2843 = vpop.f32.mrf.mxu0
    %v2844 = vadd.f32 %v2759, %v2843
    %v2845 = vpop.f32.mrf.mxu0
    %v2846 = vpop.f32.mrf.mxu0
    %v2847 = vadd.f32 %v2759, %v2846
    %v2848 = vpop.f32.mrf.mxu0
    %2849 = vdwg.mxu0
    %v2850 = vpack.c.bf16 %v2847, %v2844
    %v2851 = vld [vmem:[%s21] sm:$0xff]
    %v2852 = vld [vmem:[%s21 + $0x8] sm:$0xff]
    %v2853 = vld [vmem:[%s21 + $0x10] sm:$0xff]
    %v2854 = vld [vmem:[%s21 + $0x18] sm:$0xff]
    %v2855 = vld [vmem:[%s21 + $0x20] sm:$0xff]
    %v2856 = vld [vmem:[%s21 + $0x28] sm:$0xff]
    %v2857 = vld [vmem:[%s21 + $0x30] sm:$0xff]
    %v2858 = vld [vmem:[%s21 + $0x38] sm:$0xff]
    %v2859 = vld [vmem:[%s21 + $0x40] sm:$0xff]
    %v2860 = vld [vmem:[%s21 + $0x48] sm:$0xff]
    %v2861 = vld [vmem:[%s21 + $0x50] sm:$0xff]
    %v2862 = vld [vmem:[%s21 + $0x58] sm:$0xff]
    %v2863 = vld [vmem:[%s21 + $0x60] sm:$0xff]
    %v2864 = vld [vmem:[%s21 + $0x68] sm:$0xff]
    %v2865 = vld [vmem:[%s21 + $0x70] sm:$0xff]
    %v2866 = vld [vmem:[%s21 + $0x78] sm:$0xff]
    %v2867 = vpack.c.bf16 %v2456, %v2456
    %v2868 = vpack.c.bf16 %v2463, %v2463
    %v2869 = vpack.c.bf16 %v2470, %v2470
    %v2870 = vpack.c.bf16 %v2477, %v2477
    %v2871 = vpack.c.bf16 %v2484, %v2484
    %v2872 = vpack.c.bf16 %v2491, %v2491
    %v2873 = vpack.c.bf16 %v2498, %v2498
    %v2874 = vpack.c.bf16 %v2505, %v2505
    %v2875 = vpack.c.bf16 %v2512, %v2512
    %v2876 = vpack.c.bf16 %v2519, %v2519
    %v2877 = vpack.c.bf16 %v2526, %v2526
    %v2878 = vpack.c.bf16 %v2533, %v2533
    %v2879 = vpack.c.bf16 %v2540, %v2540
    %v2880 = vpack.c.bf16 %v2547, %v2547
    %v2881 = vpack.c.bf16 %v2554, %v2554
    %v2882 = vpack.c.bf16 %v2561, %v2561
    %v2883 = vld [vmem:[%s22] sm:$0xff]
    %v2884 = vld [vmem:[%s22 + $0x8] sm:$0xff]
    %v2885 = vld [vmem:[%s22 + $0x10] sm:$0xff]
    %v2886 = vld [vmem:[%s22 + $0x18] sm:$0xff]
    %v2887 = vld [vmem:[%s22 + $0x20] sm:$0xff]
    %v2888 = vld [vmem:[%s22 + $0x28] sm:$0xff]
    %v2889 = vld [vmem:[%s22 + $0x30] sm:$0xff]
    %v2890 = vld [vmem:[%s22 + $0x38] sm:$0xff]
    %v2891 = vld [vmem:[%s22 + $0x40] sm:$0xff]
    %v2892 = vld [vmem:[%s22 + $0x48] sm:$0xff]
    %v2893 = vld [vmem:[%s22 + $0x50] sm:$0xff]
    %v2894 = vld [vmem:[%s22 + $0x58] sm:$0xff]
    %v2895 = vld [vmem:[%s22 + $0x60] sm:$0xff]
    %v2896 = vld [vmem:[%s22 + $0x68] sm:$0xff]
    %v2897 = vld [vmem:[%s22 + $0x70] sm:$0xff]
    %v2898 = vld [vmem:[%s22 + $0x78] sm:$0xff]
    %v2915 = vunpack.c.l.b16 %v2867
    %v2916 = vunpack.c.l.b16 %v2868
    %v2917 = vunpack.c.l.b16 %v2869
    %v2918 = vunpack.c.l.b16 %v2870
    %v2919 = vunpack.c.l.b16 %v2871
    %v2920 = vunpack.c.l.b16 %v2872
    %v2921 = vunpack.c.l.b16 %v2873
    %v2922 = vunpack.c.l.b16 %v2874
    %v2923 = vunpack.c.l.b16 %v2875
    %v2924 = vunpack.c.l.b16 %v2876
    %v2925 = vunpack.c.l.b16 %v2877
    %v2926 = vunpack.c.l.b16 %v2878
    %v2927 = vunpack.c.l.b16 %v2879
    %v2928 = vunpack.c.l.b16 %v2880
    %v2929 = vunpack.c.l.b16 %v2881
    %v2930 = vunpack.c.l.b16 %v2882
    %vm2931 = vcmask 1041409
    %v2932 = vsel %vm2931, %v2916, %v2915
    %vm2933 = vcmask 1042434
    %v2934 = vsel %vm2933, %v2917, %v2932
    %vm2935 = vcmask 1043459
    %v2936 = vsel %vm2935, %v2918, %v2934
    %vm2937 = vcmask 1044484
    %v2938 = vsel %vm2937, %v2919, %v2936
    %vm2939 = vcmask 1045509
    %v2940 = vsel %vm2939, %v2920, %v2938
    %vm2941 = vcmask 1046534
    %v2942 = vsel %vm2941, %v2921, %v2940
    %vm2943 = vcmask 1047559
    %v2944 = vsel %vm2943, %v2922, %v2942
    %v2945 = vsel %vm2931, %v2924, %v2923
    %v2946 = vsel %vm2933, %v2925, %v2945
    %v2947 = vsel %vm2935, %v2926, %v2946
    %v2948 = vsel %vm2937, %v2927, %v2947
    %v2949 = vsel %vm2939, %v2928, %v2948
    %v2950 = vsel %vm2941, %v2929, %v2949
    %v2951 = vsel %vm2943, %v2930, %v2950
    %v2952 = vpack.c.b16 %v2951, %v2944
    %v2970 = vunpack.c.l.b16 %v2883
    %v2971 = vunpack.c.h.b16 %v2883
    %v2972 = vunpack.c.l.b16 %v2884
    %v2973 = vunpack.c.h.b16 %v2884
    %v2974 = vunpack.c.l.b16 %v2885
    %v2975 = vunpack.c.h.b16 %v2885
    %v2976 = vunpack.c.l.b16 %v2886
    %v2977 = vunpack.c.h.b16 %v2886
    %v2978 = vunpack.c.l.b16 %v2887
    %v2979 = vunpack.c.h.b16 %v2887
    %v2980 = vunpack.c.l.b16 %v2888
    %v2981 = vunpack.c.h.b16 %v2888
    %v2982 = vunpack.c.l.b16 %v2889
    %v2983 = vunpack.c.h.b16 %v2889
    %v2984 = vunpack.c.l.b16 %v2890
    %v2985 = vunpack.c.h.b16 %v2890
    %v2986 = vunpack.c.l.b16 %v2891
    %v2987 = vunpack.c.h.b16 %v2891
    %v2988 = vunpack.c.l.b16 %v2892
    %v2989 = vunpack.c.h.b16 %v2892
    %v2990 = vunpack.c.l.b16 %v2893
    %v2991 = vunpack.c.h.b16 %v2893
    %v2992 = vunpack.c.l.b16 %v2894
    %v2993 = vunpack.c.h.b16 %v2894
    %v2994 = vunpack.c.l.b16 %v2895
    %v2995 = vunpack.c.h.b16 %v2895
    %v2996 = vunpack.c.l.b16 %v2896
    %v2997 = vunpack.c.h.b16 %v2896
    %v2998 = vunpack.c.l.b16 %v2897
    %v2999 = vunpack.c.h.b16 %v2897
    %v3000 = vunpack.c.l.b16 %v2898
    %v3001 = vunpack.c.h.b16 %v2898
    %v3002 = vpack.c.b16 %v2972, %v2970
    %v3003 = vpack.c.b16 %v2973, %v2971
    %v3004 = vpack.c.b16 %v2976, %v2974
    %v3005 = vpack.c.b16 %v2977, %v2975
    %v3006 = vpack.c.b16 %v2980, %v2978
    %v3007 = vpack.c.b16 %v2981, %v2979
    %v3008 = vpack.c.b16 %v2984, %v2982
    %v3009 = vpack.c.b16 %v2985, %v2983
    %v3010 = vpack.c.b16 %v2988, %v2986
    %v3011 = vpack.c.b16 %v2989, %v2987
    %v3012 = vpack.c.b16 %v2992, %v2990
    %v3013 = vpack.c.b16 %v2993, %v2991
    %v3014 = vpack.c.b16 %v2996, %v2994
    %v3015 = vpack.c.b16 %v2997, %v2995
    %v3016 = vpack.c.b16 %v3000, %v2998
    %v3017 = vpack.c.b16 %v3001, %v2999
    %3034 = vmatprep.subr.bf16.mxu0 %v3017
    %3035 = vmatpush1.bf16.msra.mxu0 %v3016
    %3036 = vmatprep.subr.bf16.mxu0 %v3015
    %3037 = vmatpush1.bf16.msra.mxu0 %v3014
    %3038 = vmatprep.subr.bf16.mxu0 %v3013
    %3039 = vmatpush1.bf16.msra.mxu0 %v3012
    %3040 = vmatprep.subr.bf16.mxu0 %v3011
    %3041 = vmatpush1.bf16.msra.mxu0 %v3010
    %3042 = vmatprep.subr.bf16.mxu0 %v3009
    %3043 = vmatpush1.bf16.msra.mxu0 %v3008
    %3044 = vmatprep.subr.bf16.mxu0 %v3007
    %3045 = vmatpush1.bf16.msra.mxu0 %v3006
    %3046 = vmatprep.subr.bf16.mxu0 %v3005
    %3047 = vmatpush1.bf16.msra.mxu0 %v3004
    %3048 = vmatprep.subr.bf16.mxu0 %v3003
    %3049 = vmatpush1.bf16.msra.mxu0 %v3002
    %3050 = vmatprep.subr.bf16.mxu0 0
    %3051 = vmatpush2.bf16.msra.mxu0 0
    %3052 = vmatprep.subr.bf16.mxu0 0
    %3053 = vmatpush2.bf16.msra.mxu0 0
    %3054 = vmatprep.subr.bf16.mxu0 0
    %3055 = vmatpush2.bf16.msra.mxu0 0
    %3056 = vmatprep.subr.bf16.mxu0 0
    %3057 = vmatpush2.bf16.msra.mxu0 0
    %3058 = vmatprep.subr.bf16.mxu0 0
    %3059 = vmatpush2.bf16.msra.mxu0 0
    %3060 = vmatprep.subr.bf16.mxu0 0
    %3061 = vmatpush2.bf16.msra.mxu0 0
    %3062 = vmatprep.subr.bf16.mxu0 0
    %3063 = vmatpush2.bf16.msra.mxu0 0
    %3064 = vmatprep.subr.bf16.mxu0 0
    %3065 = vmatpush2.bf16.msra.mxu0 0
    %3066 = vmatprep.mubr.bf16.mxu0 0
    %3067 = vmatmul.mubr.bf16.gmra.mxu0 %v2952
    %v3068 = vpop.f32.mrf.mxu0
    %v3069 = vadd.f32 0.0, %v3068
    %v3070 = vpop.f32.mrf.mxu0
    %v3071 = vadd.f32 0.0, %v3070
    %v3072 = vpop.f32.mrf.mxu0
    %v3073 = vadd.f32 0.0, %v3072
    %v3074 = vpop.f32.mrf.mxu0
    %v3075 = vadd.f32 0.0, %v3074
    %3076 = vdwg.mxu0
    %v3093 = vunpack.c.l.b16 %v2851
    %v3094 = vunpack.c.h.b16 %v2851
    %v3095 = vunpack.c.l.b16 %v2852
    %v3096 = vunpack.c.h.b16 %v2852
    %v3097 = vunpack.c.l.b16 %v2853
    %v3098 = vunpack.c.h.b16 %v2853
    %v3099 = vunpack.c.l.b16 %v2854
    %v3100 = vunpack.c.h.b16 %v2854
    %v3101 = vunpack.c.l.b16 %v2855
    %v3102 = vunpack.c.h.b16 %v2855
    %v3103 = vunpack.c.l.b16 %v2856
    %v3104 = vunpack.c.h.b16 %v2856
    %v3105 = vunpack.c.l.b16 %v2857
    %v3106 = vunpack.c.h.b16 %v2857
    %v3107 = vunpack.c.l.b16 %v2858
    %v3108 = vunpack.c.h.b16 %v2858
    %v3109 = vunpack.c.l.b16 %v2859
    %v3110 = vunpack.c.h.b16 %v2859
    %v3111 = vunpack.c.l.b16 %v2860
    %v3112 = vunpack.c.h.b16 %v2860
    %v3113 = vunpack.c.l.b16 %v2861
    %v3114 = vunpack.c.h.b16 %v2861
    %v3115 = vunpack.c.l.b16 %v2862
    %v3116 = vunpack.c.h.b16 %v2862
    %v3117 = vunpack.c.l.b16 %v2863
    %v3118 = vunpack.c.h.b16 %v2863
    %v3119 = vunpack.c.l.b16 %v2864
    %v3120 = vunpack.c.h.b16 %v2864
    %v3121 = vunpack.c.l.b16 %v2865
    %v3122 = vunpack.c.h.b16 %v2865
    %v3123 = vunpack.c.l.b16 %v2866
    %v3124 = vunpack.c.h.b16 %v2866
    %v3125 = vpack.c.b16 %v3095, %v3093
    %v3126 = vpack.c.b16 %v3096, %v3094
    %v3127 = vpack.c.b16 %v3099, %v3097
    %v3128 = vpack.c.b16 %v3100, %v3098
    %v3129 = vpack.c.b16 %v3103, %v3101
    %v3130 = vpack.c.b16 %v3104, %v3102
    %v3131 = vpack.c.b16 %v3107, %v3105
    %v3132 = vpack.c.b16 %v3108, %v3106
    %v3133 = vpack.c.b16 %v3111, %v3109
    %v3134 = vpack.c.b16 %v3112, %v3110
    %v3135 = vpack.c.b16 %v3115, %v3113
    %v3136 = vpack.c.b16 %v3116, %v3114
    %v3137 = vpack.c.b16 %v3119, %v3117
    %v3138 = vpack.c.b16 %v3120, %v3118
    %v3139 = vpack.c.b16 %v3123, %v3121
    %v3140 = vpack.c.b16 %v3124, %v3122
    %3157 = vmatprep.subr.bf16.mxu0 %v3140
    %3158 = vmatpush1.bf16.msra.mxu0 %v3139
    %3159 = vmatprep.subr.bf16.mxu0 %v3138
    %3160 = vmatpush1.bf16.msra.mxu0 %v3137
    %3161 = vmatprep.subr.bf16.mxu0 %v3136
    %3162 = vmatpush1.bf16.msra.mxu0 %v3135
    %3163 = vmatprep.subr.bf16.mxu0 %v3134
    %3164 = vmatpush1.bf16.msra.mxu0 %v3133
    %3165 = vmatprep.subr.bf16.mxu0 %v3132
    %3166 = vmatpush1.bf16.msra.mxu0 %v3131
    %3167 = vmatprep.subr.bf16.mxu0 %v3130
    %3168 = vmatpush1.bf16.msra.mxu0 %v3129
    %3169 = vmatprep.subr.bf16.mxu0 %v3128
    %3170 = vmatpush1.bf16.msra.mxu0 %v3127
    %3171 = vmatprep.subr.bf16.mxu0 %v3126
    %3172 = vmatpush1.bf16.msra.mxu0 %v3125
    %3173 = vmatprep.subr.bf16.mxu0 0
    %3174 = vmatpush2.bf16.msra.mxu0 0
    %3175 = vmatprep.subr.bf16.mxu0 0
    %3176 = vmatpush2.bf16.msra.mxu0 0
    %3177 = vmatprep.subr.bf16.mxu0 0
    %3178 = vmatpush2.bf16.msra.mxu0 0
    %3179 = vmatprep.subr.bf16.mxu0 0
    %3180 = vmatpush2.bf16.msra.mxu0 0
    %3181 = vmatprep.subr.bf16.mxu0 0
    %3182 = vmatpush2.bf16.msra.mxu0 0
    %3183 = vmatprep.subr.bf16.mxu0 0
    %3184 = vmatpush2.bf16.msra.mxu0 0
    %3185 = vmatprep.subr.bf16.mxu0 0
    %3186 = vmatpush2.bf16.msra.mxu0 0
    %3187 = vmatprep.subr.bf16.mxu0 0
    %3188 = vmatpush2.bf16.msra.mxu0 0
    %3189 = vmatprep.mubr.bf16.mxu0 0
    %3190 = vmatmul.mubr.bf16.gmra.mxu0 %v2850
    %v3191 = vpop.f32.mrf.mxu0
    %v3192 = vadd.f32 %v3069, %v3191
    %v3193 = vpop.f32.mrf.mxu0
    %v3194 = vadd.f32 %v3071, %v3193
    %v3195 = vpop.f32.mrf.mxu0
    %v3196 = vadd.f32 %v3073, %v3195
    %v3197 = vpop.f32.mrf.mxu0
    %v3198 = vadd.f32 %v3075, %v3197
    %3199 = vdwg.mxu0
    %v3200 = vld [vmem:[%s23] sm:$0x3]
    %v3202 = vlaneseq
    %v3203 = vshrl.u32 %v3202, 7
    %v3204 = vsub.s32 0, %v3203
    %v3205 = vrot.slane %v3200, %v3204
    %v3206 = vlaneseq
    %v3207 = vshrl.u32 %v3206, 7
    %v3208 = vsub.s32 1, %v3207
    %v3209 = vrot.slane %v3200, %v3208
    %v3212 = vadd.f32 %v3192, %v3205
    %v3213 = vadd.f32 %v3194, %v3209
    %v3214 = vadd.f32 %v3196, %v3205
    %v3215 = vadd.f32 %v3198, %v3209
    %v3216 = vmax.f32 %v3212, 0.0
    %v3217 = vmax.f32 %v3213, 0.0
    %v3218 = vmax.f32 %v3214, 0.0
    %v3219 = vmax.f32 %v3215, 0.0
    %v3220 = vpack.c.bf16 %v3218, %v3216
    %v3221 = vpack.c.bf16 %v3219, %v3217
    %v3222 = vld [vmem:[%s24] sm:$0xf]
    %v3223 = vld [vmem:[%s24 + $0x4] sm:$0xf]
    %v3224 = vld [vmem:[%s24 + $0x8] sm:$0xf]
    %v3225 = vld [vmem:[%s24 + $0xc] sm:$0xf]
    %v3226 = vld [vmem:[%s24 + $0x10] sm:$0xf]
    %v3227 = vld [vmem:[%s24 + $0x14] sm:$0xf]
    %v3228 = vld [vmem:[%s24 + $0x18] sm:$0xf]
    %v3229 = vld [vmem:[%s24 + $0x1c] sm:$0xf]
    %v3230 = vld [vmem:[%s24 + $0x20] sm:$0xf]
    %v3231 = vld [vmem:[%s24 + $0x24] sm:$0xf]
    %v3232 = vld [vmem:[%s24 + $0x28] sm:$0xf]
    %v3233 = vld [vmem:[%s24 + $0x2c] sm:$0xf]
    %v3234 = vld [vmem:[%s24 + $0x30] sm:$0xf]
    %v3235 = vld [vmem:[%s24 + $0x34] sm:$0xf]
    %v3236 = vld [vmem:[%s24 + $0x38] sm:$0xf]
    %v3237 = vld [vmem:[%s24 + $0x3c] sm:$0xf]
    %v3238 = vld [vmem:[%s24 + $0x40] sm:$0xf]
    %v3239 = vld [vmem:[%s24 + $0x44] sm:$0xf]
    %v3240 = vld [vmem:[%s24 + $0x48] sm:$0xf]
    %v3241 = vld [vmem:[%s24 + $0x4c] sm:$0xf]
    %v3242 = vld [vmem:[%s24 + $0x50] sm:$0xf]
    %v3243 = vld [vmem:[%s24 + $0x54] sm:$0xf]
    %v3244 = vld [vmem:[%s24 + $0x58] sm:$0xf]
    %v3245 = vld [vmem:[%s24 + $0x5c] sm:$0xf]
    %v3246 = vld [vmem:[%s24 + $0x60] sm:$0xf]
    %v3247 = vld [vmem:[%s24 + $0x64] sm:$0xf]
    %v3248 = vld [vmem:[%s24 + $0x68] sm:$0xf]
    %v3249 = vld [vmem:[%s24 + $0x6c] sm:$0xf]
    %v3250 = vld [vmem:[%s24 + $0x70] sm:$0xf]
    %v3251 = vld [vmem:[%s24 + $0x74] sm:$0xf]
    %v3252 = vld [vmem:[%s24 + $0x78] sm:$0xf]
    %v3253 = vld [vmem:[%s24 + $0x7c] sm:$0xf]
    %v3254 = vld [vmem:[%s25] sm:$0x1]
    %v3256 = vlaneseq
    %v3257 = vshrl.u32 %v3256, 7
    %v3258 = vsub.s32 0, %v3257
    %v3259 = vrot.slane %v3254, %v3258
    %v3293 = vunpack.c.l.b16 %v3222
    %v3294 = vunpack.c.l.b16 %v3223
    %v3295 = vunpack.c.l.b16 %v3224
    %v3296 = vunpack.c.l.b16 %v3225
    %v3297 = vunpack.c.l.b16 %v3226
    %v3298 = vunpack.c.l.b16 %v3227
    %v3299 = vunpack.c.l.b16 %v3228
    %v3300 = vunpack.c.l.b16 %v3229
    %v3301 = vunpack.c.l.b16 %v3230
    %v3302 = vunpack.c.l.b16 %v3231
    %v3303 = vunpack.c.l.b16 %v3232
    %v3304 = vunpack.c.l.b16 %v3233
    %v3305 = vunpack.c.l.b16 %v3234
    %v3306 = vunpack.c.l.b16 %v3235
    %v3307 = vunpack.c.l.b16 %v3236
    %v3308 = vunpack.c.l.b16 %v3237
    %v3309 = vunpack.c.l.b16 %v3238
    %v3310 = vunpack.c.l.b16 %v3239
    %v3311 = vunpack.c.l.b16 %v3240
    %v3312 = vunpack.c.l.b16 %v3241
    %v3313 = vunpack.c.l.b16 %v3242
    %v3314 = vunpack.c.l.b16 %v3243
    %v3315 = vunpack.c.l.b16 %v3244
    %v3316 = vunpack.c.l.b16 %v3245
    %v3317 = vunpack.c.l.b16 %v3246
    %v3318 = vunpack.c.l.b16 %v3247
    %v3319 = vunpack.c.l.b16 %v3248
    %v3320 = vunpack.c.l.b16 %v3249
    %v3321 = vunpack.c.l.b16 %v3250
    %v3322 = vunpack.c.l.b16 %v3251
    %v3323 = vunpack.c.l.b16 %v3252
    %v3324 = vunpack.c.l.b16 %v3253
    %v3325 = vpack.c.b16 %v3294, %v3293
    %v3326 = vpack.c.b16 %v3296, %v3295
    %v3327 = vpack.c.b16 %v3298, %v3297
    %v3328 = vpack.c.b16 %v3300, %v3299
    %v3329 = vpack.c.b16 %v3302, %v3301
    %v3330 = vpack.c.b16 %v3304, %v3303
    %v3331 = vpack.c.b16 %v3306, %v3305
    %v3332 = vpack.c.b16 %v3308, %v3307
    %v3333 = vpack.c.b16 %v3310, %v3309
    %v3334 = vpack.c.b16 %v3312, %v3311
    %v3335 = vpack.c.b16 %v3314, %v3313
    %v3336 = vpack.c.b16 %v3316, %v3315
    %v3337 = vpack.c.b16 %v3318, %v3317
    %v3338 = vpack.c.b16 %v3320, %v3319
    %v3339 = vpack.c.b16 %v3322, %v3321
    %v3340 = vpack.c.b16 %v3324, %v3323
    %3357 = vmatprep.subr.bf16.mxu0 0
    %3358 = vmatpush1.bf16.msra.mxu0 %v3332
    %3359 = vmatprep.subr.bf16.mxu0 0
    %3360 = vmatpush1.bf16.msra.mxu0 %v3331
    %3361 = vmatprep.subr.bf16.mxu0 0
    %3362 = vmatpush1.bf16.msra.mxu0 %v3330
    %3363 = vmatprep.subr.bf16.mxu0 0
    %3364 = vmatpush1.bf16.msra.mxu0 %v3329
    %3365 = vmatprep.subr.bf16.mxu0 0
    %3366 = vmatpush1.bf16.msra.mxu0 %v3328
    %3367 = vmatprep.subr.bf16.mxu0 0
    %3368 = vmatpush1.bf16.msra.mxu0 %v3327
    %3369 = vmatprep.subr.bf16.mxu0 0
    %3370 = vmatpush1.bf16.msra.mxu0 %v3326
    %3371 = vmatprep.subr.bf16.mxu0 0
    %3372 = vmatpush1.bf16.msra.mxu0 %v3325
    %3373 = vmatprep.subr.bf16.mxu0 0
    %3374 = vmatpush2.bf16.msra.mxu0 %v3340
    %3375 = vmatprep.subr.bf16.mxu0 0
    %3376 = vmatpush2.bf16.msra.mxu0 %v3339
    %3377 = vmatprep.subr.bf16.mxu0 0
    %3378 = vmatpush2.bf16.msra.mxu0 %v3338
    %3379 = vmatprep.subr.bf16.mxu0 0
    %3380 = vmatpush2.bf16.msra.mxu0 %v3337
    %3381 = vmatprep.subr.bf16.mxu0 0
    %3382 = vmatpush2.bf16.msra.mxu0 %v3336
    %3383 = vmatprep.subr.bf16.mxu0 0
    %3384 = vmatpush2.bf16.msra.mxu0 %v3335
    %3385 = vmatprep.subr.bf16.mxu0 0
    %3386 = vmatpush2.bf16.msra.mxu0 %v3334
    %3387 = vmatprep.subr.bf16.mxu0 0
    %3388 = vmatpush2.bf16.msra.mxu0 %v3333
    %3389 = vmatprep.mubr.bf16.mxu0 %v3221
    %3390 = vmatmul.mubr.bf16.gmra.mxu0 %v3220
    %v3391 = vpop.f32.mrf.mxu0
    %v3392 = vadd.f32 %v3259, %v3391
    %v3393 = vpop.f32.mrf.mxu0
    %v3394 = vpop.f32.mrf.mxu0
    %v3395 = vadd.f32 %v3259, %v3394
    %v3396 = vpop.f32.mrf.mxu0
    %3397 = vdwg.mxu0
    %3398 = vst [vmem:[#allocation2] sm:$0xff] %v3392
    %3399 = vst [vmem:[#allocation2 + $0x8] sm:$0xff] %v3395
    // Predicated region
    $region106: #{pointnet_encoder_forward.1} parent=1 // pred_check
      _
    $region107: #{pointnet_encoder_forward.1} parent=1 // pred_check_branch
      %3401 = sbr.rel (0) target = $region109
    $region108: #{pointnet_encoder_forward.1} parent=1 // pred_region
      %s3403 = ssub.s32 256, 256
      %3404 = vsyncadd [#allocation3], %s3403
      %s3405 = sshll.u32 [#allocation2], 4
      %s3406 = int_to_ptr.vmem [resolvable:$true] %s3405
      %3411 = dma.vmem_to_hbm [thread:$0]  %s3406, 256, %s26, [#allocation3], 128, 128, 8
    $region109: #{pointnet_encoder_forward.1} parent=1 // pred_fallthru
      _
    // Predicated region
    $region110: #{pointnet_encoder_forward.1} parent=1 // pred_check
      _
    $region111: #{pointnet_encoder_forward.1} parent=1 // pred_check_branch
      %3413 = sbr.rel (0) target = $region113
    $region112: #{pointnet_encoder_forward.1} parent=1 // pred_region
      %3414 = dma.done [#allocation3], 256
    $region113: #{pointnet_encoder_forward.1} parent=1 // pred_fallthru
      _
    %3415 = vsyncpa [#allocation3], 1

</llo_original>
